<compile_context>
chip_gen: v7x
topology: tpu7x:2x2x1
jax: 0.10.0
libtpu: 0.0.40
codegen_flags: <defaults>
</compile_context>

<pallas_src>
import jax
import jax.numpy as jnp
import numpy as np
from jax.experimental import pallas as pl
from jax.experimental.pallas import tpu as pltpu


def _downsample_kernel(w_ref, r_ref, c_ref, x_ref, o_ref):
    """Fused 3x3 conv (pad=1, no bias) + PixelUnshuffle(2) for one image.

    w_ref : (Cout*Cin*9,) f32 SMEM  -- conv weights, flat PyTorch OIHW order
                                       (scalar-prefetched).
    r_ref : (4*Hh, H)     f32 VMEM  -- stacked row-gather matrices R_r, r = i+dy.
    c_ref : (4, W, Wh)    f32 VMEM  -- column-gather matrices C_s, s = j+dx-1
                                       (stored at index s+1).
    x_ref : (1, Cin, H, W)     VMEM -- input image block (NCHW, W on lanes).
    o_ref : (1, 4*Cout, Hh, Wh)VMEM -- fused output, channel = co*4 + i*2 + j.
    """
    _, Cin, H, W = x_ref.shape
    _, Cout4, Hh, Wh = o_ref.shape
    Cout = Cout4 // 4

    r_mat = r_ref[...]                      # hoisted: loaded once per image
    c_mats = [c_ref[s] for s in range(4)]   # hoisted: 4 x (W, Wh)

    # Independent partial accumulators (break the serial add chain while
    # keeping vreg pressure comfortably under the 64-vreg file).
    n_grp = 2 if Cin > 1 else 1
    parts = [[None] * n_grp for _ in range(Cout4)]

    for ci in range(Cin):
        xp = x_ref[0, ci].astype(jnp.float32)            # (H, W), aligned load

        # Idle-MXU gathers, hoisted out of the co/i/j/dy/dx loops:
        #   t[s][(i+dy)*Hh + h, w] = x[ci, 2h+i+dy-1, 2w+j+dx-1]  (0 if OOB)
        t = [jnp.dot(r_mat,
                     jnp.dot(xp, c_mats[s], preferred_element_type=jnp.float32),
                     preferred_element_type=jnp.float32)
             for s in range(4)]                           # 4 x (4*Hh, Wh)
        taps = [[t[s][r * Hh:(r + 1) * Hh, :] for s in range(4)]
                for r in range(4)]                        # taps[r][s] : (Hh, Wh)

        grp = ci % n_grp
        for co in range(Cout):
            for i in range(2):
                for j in range(2):
                    contrib = None
                    for dy in range(3):
                        for dx in range(3):
                            wv = w_ref[((co * Cin + ci) * 3 + dy) * 3 + dx]
                            term = wv * taps[i + dy][j + dx]
                            contrib = term if contrib is None else contrib + term
                    oc = co * 4 + i * 2 + j
                    prev = parts[oc][grp]
                    parts[oc][grp] = contrib if prev is None else prev + contrib

    for oc in range(Cout4):
        acc = parts[oc][0]
        for grp in range(1, n_grp):
            if parts[oc][grp] is not None:
                acc = acc + parts[oc][grp]
        o_ref[0, oc] = acc.astype(o_ref.dtype)


def downsample_forward(x_nchw, weight_oihw):
    """DownSample forward. x_nchw: (N, C, H, W); weight_oihw: (C//2, C, 3, 3)."""
    N, C, H, W = x_nchw.shape
    Cout = weight_oihw.shape[0]
    assert weight_oihw.shape == (Cout, C, 3, 3) and Cout == C // 2
    assert H % 2 == 0 and W % 2 == 0
    Hh, Wh = H // 2, W // 2

    # Flat OIHW weights (free metadata reshape) -> SMEM scalar prefetch.
    w_flat = weight_oihw.astype(jnp.float32).reshape(-1)

    # Constant gather matrices (tiny, built host-side, resident in VMEM).
    # Row gather: R[r*Hh + h, row] = 1 iff row == 2h + r - 1  (r = i + dy).
    p = np.arange(4 * Hh)
    src_row = 2 * (p % Hh) + (p // Hh) - 1
    r_mat = (np.arange(H)[None, :] == src_row[:, None]).astype(np.float32)
    # Column gather: C[s+1, c, w] = 1 iff c == 2w + s  (s = j + dx - 1).
    s_val = (np.arange(4) - 1)[:, None, None]
    c_mat = (np.arange(W)[None, :, None] ==
             (2 * np.arange(Wh)[None, None, :] + s_val)).astype(np.float32)

    return pl.pallas_call(
        _downsample_kernel,
        out_shape=jax.ShapeDtypeStruct((N, 4 * Cout, Hh, Wh), x_nchw.dtype),
        grid_spec=pltpu.PrefetchScalarGridSpec(
            num_scalar_prefetch=1,              # weights -> SMEM before the grid
            grid=(N,),
            in_specs=[
                pl.BlockSpec((4 * Hh, H), lambda n, w: (0, 0)),
                pl.BlockSpec((4, W, Wh), lambda n, w: (0, 0, 0)),
                pl.BlockSpec((1, C, H, W), lambda n, w: (n, 0, 0, 0)),
            ],
            out_specs=pl.BlockSpec((1, 4 * Cout, Hh, Wh),
                                   lambda n, w: (n, 0, 0, 0)),
        ),
        compiler_params=pltpu.CompilerParams(
            dimension_semantics=("parallel",)),   # safe: no cross-step state
    )(w_flat, jnp.asarray(r_mat), jnp.asarray(c_mat), x_nchw)


if __name__ == "__main__":
    key = jax.random.PRNGKey(0)
    k_x, k_w = jax.random.split(key)

    # channels=4 -> Conv2d(4, 2, 3, padding=1, bias=False) -> PixelUnshuffle(2)
    N, C, H, W = 2, 4, 16, 16
    x = jax.random.normal(k_x, (N, C, H, W), dtype=jnp.float32)
    weight = jax.random.normal(k_w, (C // 2, C, 3, 3), dtype=jnp.float32) * 0.1

    out = jax.block_until_ready(downsample_forward(x, weight))

    # Independent reference: XLA conv + explicit strided-slice pixel unshuffle
    # (built differently from the kernel path on purpose).
    ref_conv = jax.lax.conv_general_dilated(
        x, weight, window_strides=(1, 1), padding=((1, 1), (1, 1)),
        dimension_numbers=("NCHW", "OIHW", "NCHW"))
    Co = C // 2
    ref = jnp.stack([ref_conv[:, :, i::2, j::2]
                     for i in range(2) for j in range(2)],
                    axis=2).reshape(N, Co * 4, H // 2, W // 2)

    assert out.shape == (N, 2 * C, H // 2, W // 2), out.shape
    assert jnp.allclose(out, ref, atol=1e-4, rtol=1e-4), \
        float(jnp.max(jnp.abs(out - ref)))
    print("KERNEL_OK")
</pallas_src>

<mosaic_0001>
module attributes {stable_mosaic.version = 11 : i64} {
  func.func @_downsample_kernel(%arg0: i32, %arg1: memref<72xf32, #tpu.memory_space<smem>>, %arg2: memref<32x16xf32, #tpu.memory_space<vmem>>, %arg3: memref<4x16x8xf32, #tpu.memory_space<vmem>>, %arg4: memref<1x4x16x16xf32, #tpu.memory_space<vmem>>, %arg5: memref<1x8x8x8xf32, #tpu.memory_space<vmem>>) attributes {dimension_semantics = [#tpu.dimension_semantics<parallel>], iteration_bounds = array<i64: 2>, scalar_prefetch = 1 : i64, scratch_operands = 0 : i64, tpu.core_type = #tpu.core_type<tc>, window_params = [{pipeline_mode = #tpu.pipeline_mode<synchronous>, transform_indices = @transform_0, window_bounds = array<i64: 32, 16>}, {pipeline_mode = #tpu.pipeline_mode<synchronous>, transform_indices = @transform_1, window_bounds = array<i64: 4, 16, 8>}, {transform_indices = @transform_2, window_bounds = array<i64: 1, 4, 16, 16>}, {transform_indices = @transform_3, window_bounds = array<i64: 1, 8, 8, 8>}]} {
    %c0 = arith.constant 0 : index
    %c0_0 = arith.constant 0 : index
    %0 = vector.load %arg2[%c0, %c0_0] : memref<32x16xf32, #tpu.memory_space<vmem>>, vector<32x16xf32>
    %c0_1 = arith.constant 0 : index
    %c0_2 = arith.constant 0 : index
    %c0_3 = arith.constant 0 : index
    %1 = vector.load %arg3[%c0_1, %c0_2, %c0_3] : memref<4x16x8xf32, #tpu.memory_space<vmem>>, vector<1x16x8xf32>
    %2 = vector.shape_cast %1 : vector<1x16x8xf32> to vector<16x8xf32>
    %c1 = arith.constant 1 : index
    %c0_4 = arith.constant 0 : index
    %c0_5 = arith.constant 0 : index
    %3 = vector.load %arg3[%c1, %c0_4, %c0_5] : memref<4x16x8xf32, #tpu.memory_space<vmem>>, vector<1x16x8xf32>
    %4 = vector.shape_cast %3 : vector<1x16x8xf32> to vector<16x8xf32>
    %c2 = arith.constant 2 : index
    %c0_6 = arith.constant 0 : index
    %c0_7 = arith.constant 0 : index
    %5 = vector.load %arg3[%c2, %c0_6, %c0_7] : memref<4x16x8xf32, #tpu.memory_space<vmem>>, vector<1x16x8xf32>
    %6 = vector.shape_cast %5 : vector<1x16x8xf32> to vector<16x8xf32>
    %c3 = arith.constant 3 : index
    %c0_8 = arith.constant 0 : index
    %c0_9 = arith.constant 0 : index
    %7 = vector.load %arg3[%c3, %c0_8, %c0_9] : memref<4x16x8xf32, #tpu.memory_space<vmem>>, vector<1x16x8xf32>
    %8 = vector.shape_cast %7 : vector<1x16x8xf32> to vector<16x8xf32>
    %c0_10 = arith.constant 0 : index
    %c0_11 = arith.constant 0 : index
    %c0_12 = arith.constant 0 : index
    %c0_13 = arith.constant 0 : index
    %9 = vector.load %arg4[%c0_10, %c0_11, %c0_12, %c0_13] : memref<1x4x16x16xf32, #tpu.memory_space<vmem>>, vector<1x1x16x16xf32>
    %10 = vector.shape_cast %9 : vector<1x1x16x16xf32> to vector<16x16xf32>
    %cst = arith.constant dense<0.000000e+00> : vector<16x8xf32>
    %11 = tpu.matmul %10, %2, %cst {dimension_numbers = #tpu.dot_dimension_numbers<[1], [0], [0], [1], [0, 0, 1, 1], [], []>} : vector<16x16xf32>, vector<16x8xf32>, vector<16x8xf32> -> vector<16x8xf32>
    %cst_14 = arith.constant dense<0.000000e+00> : vector<32x8xf32>
    %12 = tpu.matmul %0, %11, %cst_14 {dimension_numbers = #tpu.dot_dimension_numbers<[1], [0], [0], [1], [0, 0, 1, 1], [], []>} : vector<32x16xf32>, vector<16x8xf32>, vector<32x8xf32> -> vector<32x8xf32>
    %cst_15 = arith.constant dense<0.000000e+00> : vector<16x8xf32>
    %13 = tpu.matmul %10, %4, %cst_15 {dimension_numbers = #tpu.dot_dimension_numbers<[1], [0], [0], [1], [0, 0, 1, 1], [], []>} : vector<16x16xf32>, vector<16x8xf32>, vector<16x8xf32> -> vector<16x8xf32>
    %cst_16 = arith.constant dense<0.000000e+00> : vector<32x8xf32>
    %14 = tpu.matmul %0, %13, %cst_16 {dimension_numbers = #tpu.dot_dimension_numbers<[1], [0], [0], [1], [0, 0, 1, 1], [], []>} : vector<32x16xf32>, vector<16x8xf32>, vector<32x8xf32> -> vector<32x8xf32>
    %cst_17 = arith.constant dense<0.000000e+00> : vector<16x8xf32>
    %15 = tpu.matmul %10, %6, %cst_17 {dimension_numbers = #tpu.dot_dimension_numbers<[1], [0], [0], [1], [0, 0, 1, 1], [], []>} : vector<16x16xf32>, vector<16x8xf32>, vector<16x8xf32> -> vector<16x8xf32>
    %cst_18 = arith.constant dense<0.000000e+00> : vector<32x8xf32>
    %16 = tpu.matmul %0, %15, %cst_18 {dimension_numbers = #tpu.dot_dimension_numbers<[1], [0], [0], [1], [0, 0, 1, 1], [], []>} : vector<32x16xf32>, vector<16x8xf32>, vector<32x8xf32> -> vector<32x8xf32>
    %cst_19 = arith.constant dense<0.000000e+00> : vector<16x8xf32>
    %17 = tpu.matmul %10, %8, %cst_19 {dimension_numbers = #tpu.dot_dimension_numbers<[1], [0], [0], [1], [0, 0, 1, 1], [], []>} : vector<16x16xf32>, vector<16x8xf32>, vector<16x8xf32> -> vector<16x8xf32>
    %cst_20 = arith.constant dense<0.000000e+00> : vector<32x8xf32>
    %18 = tpu.matmul %0, %17, %cst_20 {dimension_numbers = #tpu.dot_dimension_numbers<[1], [0], [0], [1], [0, 0, 1, 1], [], []>} : vector<32x16xf32>, vector<16x8xf32>, vector<32x8xf32> -> vector<32x8xf32>
    %19 = vector.extract_strided_slice %12 {offsets = [0, 0], sizes = [8, 8], strides = [1, 1]} : vector<32x8xf32> to vector<8x8xf32>
    %20 = vector.extract_strided_slice %14 {offsets = [0, 0], sizes = [8, 8], strides = [1, 1]} : vector<32x8xf32> to vector<8x8xf32>
    %21 = vector.extract_strided_slice %16 {offsets = [0, 0], sizes = [8, 8], strides = [1, 1]} : vector<32x8xf32> to vector<8x8xf32>
    %22 = vector.extract_strided_slice %18 {offsets = [0, 0], sizes = [8, 8], strides = [1, 1]} : vector<32x8xf32> to vector<8x8xf32>
    %23 = vector.extract_strided_slice %12 {offsets = [8, 0], sizes = [8, 8], strides = [1, 1]} : vector<32x8xf32> to vector<8x8xf32>
    %24 = vector.extract_strided_slice %14 {offsets = [8, 0], sizes = [8, 8], strides = [1, 1]} : vector<32x8xf32> to vector<8x8xf32>
    %25 = vector.extract_strided_slice %16 {offsets = [8, 0], sizes = [8, 8], strides = [1, 1]} : vector<32x8xf32> to vector<8x8xf32>
    %26 = vector.extract_strided_slice %18 {offsets = [8, 0], sizes = [8, 8], strides = [1, 1]} : vector<32x8xf32> to vector<8x8xf32>
    %27 = vector.extract_strided_slice %12 {offsets = [16, 0], sizes = [8, 8], strides = [1, 1]} : vector<32x8xf32> to vector<8x8xf32>
    %28 = vector.extract_strided_slice %14 {offsets = [16, 0], sizes = [8, 8], strides = [1, 1]} : vector<32x8xf32> to vector<8x8xf32>
    %29 = vector.extract_strided_slice %16 {offsets = [16, 0], sizes = [8, 8], strides = [1, 1]} : vector<32x8xf32> to vector<8x8xf32>
    %30 = vector.extract_strided_slice %18 {offsets = [16, 0], sizes = [8, 8], strides = [1, 1]} : vector<32x8xf32> to vector<8x8xf32>
    %31 = vector.extract_strided_slice %12 {offsets = [24, 0], sizes = [8, 8], strides = [1, 1]} : vector<32x8xf32> to vector<8x8xf32>
    %32 = vector.extract_strided_slice %14 {offsets = [24, 0], sizes = [8, 8], strides = [1, 1]} : vector<32x8xf32> to vector<8x8xf32>
    %33 = vector.extract_strided_slice %16 {offsets = [24, 0], sizes = [8, 8], strides = [1, 1]} : vector<32x8xf32> to vector<8x8xf32>
    %34 = vector.extract_strided_slice %18 {offsets = [24, 0], sizes = [8, 8], strides = [1, 1]} : vector<32x8xf32> to vector<8x8xf32>
    %c0_21 = arith.constant 0 : index
    %35 = memref.load %arg1[%c0_21] : memref<72xf32, #tpu.memory_space<smem>>
    %36 = vector.broadcast %35 : f32 to vector<8x8xf32>
    %37 = arith.mulf %36, %19 : vector<8x8xf32>
    %c1_22 = arith.constant 1 : index
    %38 = memref.load %arg1[%c1_22] : memref<72xf32, #tpu.memory_space<smem>>
    %39 = vector.broadcast %38 : f32 to vector<8x8xf32>
    %40 = arith.mulf %39, %20 : vector<8x8xf32>
    %41 = arith.addf %37, %40 : vector<8x8xf32>
    %c2_23 = arith.constant 2 : index
    %42 = memref.load %arg1[%c2_23] : memref<72xf32, #tpu.memory_space<smem>>
    %43 = vector.broadcast %42 : f32 to vector<8x8xf32>
    %44 = arith.mulf %43, %21 : vector<8x8xf32>
    %45 = arith.addf %41, %44 : vector<8x8xf32>
    %c3_24 = arith.constant 3 : index
    %46 = memref.load %arg1[%c3_24] : memref<72xf32, #tpu.memory_space<smem>>
    %47 = vector.broadcast %46 : f32 to vector<8x8xf32>
    %48 = arith.mulf %47, %23 : vector<8x8xf32>
    %49 = arith.addf %45, %48 : vector<8x8xf32>
    %c4 = arith.constant 4 : index
    %50 = memref.load %arg1[%c4] : memref<72xf32, #tpu.memory_space<smem>>
    %51 = vector.broadcast %50 : f32 to vector<8x8xf32>
    %52 = arith.mulf %51, %24 : vector<8x8xf32>
    %53 = arith.addf %49, %52 : vector<8x8xf32>
    %c5 = arith.constant 5 : index
    %54 = memref.load %arg1[%c5] : memref<72xf32, #tpu.memory_space<smem>>
    %55 = vector.broadcast %54 : f32 to vector<8x8xf32>
    %56 = arith.mulf %55, %25 : vector<8x8xf32>
    %57 = arith.addf %53, %56 : vector<8x8xf32>
    %c6 = arith.constant 6 : index
    %58 = memref.load %arg1[%c6] : memref<72xf32, #tpu.memory_space<smem>>
    %59 = vector.broadcast %58 : f32 to vector<8x8xf32>
    %60 = arith.mulf %59, %27 : vector<8x8xf32>
    %61 = arith.addf %57, %60 : vector<8x8xf32>
    %c7 = arith.constant 7 : index
    %62 = memref.load %arg1[%c7] : memref<72xf32, #tpu.memory_space<smem>>
    %63 = vector.broadcast %62 : f32 to vector<8x8xf32>
    %64 = arith.mulf %63, %28 : vector<8x8xf32>
    %65 = arith.addf %61, %64 : vector<8x8xf32>
    %c8 = arith.constant 8 : index
    %66 = memref.load %arg1[%c8] : memref<72xf32, #tpu.memory_space<smem>>
    %67 = vector.broadcast %66 : f32 to vector<8x8xf32>
    %68 = arith.mulf %67, %29 : vector<8x8xf32>
    %69 = arith.addf %65, %68 : vector<8x8xf32>
    %c0_25 = arith.constant 0 : index
    %70 = memref.load %arg1[%c0_25] : memref<72xf32, #tpu.memory_space<smem>>
    %71 = vector.broadcast %70 : f32 to vector<8x8xf32>
    %72 = arith.mulf %71, %20 : vector<8x8xf32>
    %c1_26 = arith.constant 1 : index
    %73 = memref.load %arg1[%c1_26] : memref<72xf32, #tpu.memory_space<smem>>
    %74 = vector.broadcast %73 : f32 to vector<8x8xf32>
    %75 = arith.mulf %74, %21 : vector<8x8xf32>
    %76 = arith.addf %72, %75 : vector<8x8xf32>
    %c2_27 = arith.constant 2 : index
    %77 = memref.load %arg1[%c2_27] : memref<72xf32, #tpu.memory_space<smem>>
    %78 = vector.broadcast %77 : f32 to vector<8x8xf32>
    %79 = arith.mulf %78, %22 : vector<8x8xf32>
    %80 = arith.addf %76, %79 : vector<8x8xf32>
    %c3_28 = arith.constant 3 : index
    %81 = memref.load %arg1[%c3_28] : memref<72xf32, #tpu.memory_space<smem>>
    %82 = vector.broadcast %81 : f32 to vector<8x8xf32>
    %83 = arith.mulf %82, %24 : vector<8x8xf32>
    %84 = arith.addf %80, %83 : vector<8x8xf32>
    %c4_29 = arith.constant 4 : index
    %85 = memref.load %arg1[%c4_29] : memref<72xf32, #tpu.memory_space<smem>>
    %86 = vector.broadcast %85 : f32 to vector<8x8xf32>
    %87 = arith.mulf %86, %25 : vector<8x8xf32>
    %88 = arith.addf %84, %87 : vector<8x8xf32>
    %c5_30 = arith.constant 5 : index
    %89 = memref.load %arg1[%c5_30] : memref<72xf32, #tpu.memory_space<smem>>
    %90 = vector.broadcast %89 : f32 to vector<8x8xf32>
    %91 = arith.mulf %90, %26 : vector<8x8xf32>
    %92 = arith.addf %88, %91 : vector<8x8xf32>
    %c6_31 = arith.constant 6 : index
    %93 = memref.load %arg1[%c6_31] : memref<72xf32, #tpu.memory_space<smem>>
    %94 = vector.broadcast %93 : f32 to vector<8x8xf32>
    %95 = arith.mulf %94, %28 : vector<8x8xf32>
    %96 = arith.addf %92, %95 : vector<8x8xf32>
    %c7_32 = arith.constant 7 : index
    %97 = memref.load %arg1[%c7_32] : memref<72xf32, #tpu.memory_space<smem>>
    %98 = vector.broadcast %97 : f32 to vector<8x8xf32>
    %99 = arith.mulf %98, %29 : vector<8x8xf32>
    %100 = arith.addf %96, %99 : vector<8x8xf32>
    %c8_33 = arith.constant 8 : index
    %101 = memref.load %arg1[%c8_33] : memref<72xf32, #tpu.memory_space<smem>>
    %102 = vector.broadcast %101 : f32 to vector<8x8xf32>
    %103 = arith.mulf %102, %30 : vector<8x8xf32>
    %104 = arith.addf %100, %103 : vector<8x8xf32>
    %c0_34 = arith.constant 0 : index
    %105 = memref.load %arg1[%c0_34] : memref<72xf32, #tpu.memory_space<smem>>
    %106 = vector.broadcast %105 : f32 to vector<8x8xf32>
    %107 = arith.mulf %106, %23 : vector<8x8xf32>
    %c1_35 = arith.constant 1 : index
    %108 = memref.load %arg1[%c1_35] : memref<72xf32, #tpu.memory_space<smem>>
    %109 = vector.broadcast %108 : f32 to vector<8x8xf32>
    %110 = arith.mulf %109, %24 : vector<8x8xf32>
    %111 = arith.addf %107, %110 : vector<8x8xf32>
    %c2_36 = arith.constant 2 : index
    %112 = memref.load %arg1[%c2_36] : memref<72xf32, #tpu.memory_space<smem>>
    %113 = vector.broadcast %112 : f32 to vector<8x8xf32>
    %114 = arith.mulf %113, %25 : vector<8x8xf32>
    %115 = arith.addf %111, %114 : vector<8x8xf32>
    %c3_37 = arith.constant 3 : index
    %116 = memref.load %arg1[%c3_37] : memref<72xf32, #tpu.memory_space<smem>>
    %117 = vector.broadcast %116 : f32 to vector<8x8xf32>
    %118 = arith.mulf %117, %27 : vector<8x8xf32>
    %119 = arith.addf %115, %118 : vector<8x8xf32>
    %c4_38 = arith.constant 4 : index
    %120 = memref.load %arg1[%c4_38] : memref<72xf32, #tpu.memory_space<smem>>
    %121 = vector.broadcast %120 : f32 to vector<8x8xf32>
    %122 = arith.mulf %121, %28 : vector<8x8xf32>
    %123 = arith.addf %119, %122 : vector<8x8xf32>
    %c5_39 = arith.constant 5 : index
    %124 = memref.load %arg1[%c5_39] : memref<72xf32, #tpu.memory_space<smem>>
    %125 = vector.broadcast %124 : f32 to vector<8x8xf32>
    %126 = arith.mulf %125, %29 : vector<8x8xf32>
    %127 = arith.addf %123, %126 : vector<8x8xf32>
    %c6_40 = arith.constant 6 : index
    %128 = memref.load %arg1[%c6_40] : memref<72xf32, #tpu.memory_space<smem>>
    %129 = vector.broadcast %128 : f32 to vector<8x8xf32>
    %130 = arith.mulf %129, %31 : vector<8x8xf32>
    %131 = arith.addf %127, %130 : vector<8x8xf32>
    %c7_41 = arith.constant 7 : index
    %132 = memref.load %arg1[%c7_41] : memref<72xf32, #tpu.memory_space<smem>>
    %133 = vector.broadcast %132 : f32 to vector<8x8xf32>
    %134 = arith.mulf %133, %32 : vector<8x8xf32>
    %135 = arith.addf %131, %134 : vector<8x8xf32>
    %c8_42 = arith.constant 8 : index
    %136 = memref.load %arg1[%c8_42] : memref<72xf32, #tpu.memory_space<smem>>
    %137 = vector.broadcast %136 : f32 to vector<8x8xf32>
    %138 = arith.mulf %137, %33 : vector<8x8xf32>
    %139 = arith.addf %135, %138 : vector<8x8xf32>
    %c0_43 = arith.constant 0 : index
    %140 = memref.load %arg1[%c0_43] : memref<72xf32, #tpu.memory_space<smem>>
    %141 = vector.broadcast %140 : f32 to vector<8x8xf32>
    %142 = arith.mulf %141, %24 : vector<8x8xf32>
    %c1_44 = arith.constant 1 : index
    %143 = memref.load %arg1[%c1_44] : memref<72xf32, #tpu.memory_space<smem>>
    %144 = vector.broadcast %143 : f32 to vector<8x8xf32>
    %145 = arith.mulf %144, %25 : vector<8x8xf32>
    %146 = arith.addf %142, %145 : vector<8x8xf32>
    %c2_45 = arith.constant 2 : index
    %147 = memref.load %arg1[%c2_45] : memref<72xf32, #tpu.memory_space<smem>>
    %148 = vector.broadcast %147 : f32 to vector<8x8xf32>
    %149 = arith.mulf %148, %26 : vector<8x8xf32>
    %150 = arith.addf %146, %149 : vector<8x8xf32>
    %c3_46 = arith.constant 3 : index
    %151 = memref.load %arg1[%c3_46] : memref<72xf32, #tpu.memory_space<smem>>
    %152 = vector.broadcast %151 : f32 to vector<8x8xf32>
    %153 = arith.mulf %152, %28 : vector<8x8xf32>
    %154 = arith.addf %150, %153 : vector<8x8xf32>
    %c4_47 = arith.constant 4 : index
    %155 = memref.load %arg1[%c4_47] : memref<72xf32, #tpu.memory_space<smem>>
    %156 = vector.broadcast %155 : f32 to vector<8x8xf32>
    %157 = arith.mulf %156, %29 : vector<8x8xf32>
    %158 = arith.addf %154, %157 : vector<8x8xf32>
    %c5_48 = arith.constant 5 : index
    %159 = memref.load %arg1[%c5_48] : memref<72xf32, #tpu.memory_space<smem>>
    %160 = vector.broadcast %159 : f32 to vector<8x8xf32>
    %161 = arith.mulf %160, %30 : vector<8x8xf32>
    %162 = arith.addf %158, %161 : vector<8x8xf32>
    %c6_49 = arith.constant 6 : index
    %163 = memref.load %arg1[%c6_49] : memref<72xf32, #tpu.memory_space<smem>>
    %164 = vector.broadcast %163 : f32 to vector<8x8xf32>
    %165 = arith.mulf %164, %32 : vector<8x8xf32>
    %166 = arith.addf %162, %165 : vector<8x8xf32>
    %c7_50 = arith.constant 7 : index
    %167 = memref.load %arg1[%c7_50] : memref<72xf32, #tpu.memory_space<smem>>
    %168 = vector.broadcast %167 : f32 to vector<8x8xf32>
    %169 = arith.mulf %168, %33 : vector<8x8xf32>
    %170 = arith.addf %166, %169 : vector<8x8xf32>
    %c8_51 = arith.constant 8 : index
    %171 = memref.load %arg1[%c8_51] : memref<72xf32, #tpu.memory_space<smem>>
    %172 = vector.broadcast %171 : f32 to vector<8x8xf32>
    %173 = arith.mulf %172, %34 : vector<8x8xf32>
    %174 = arith.addf %170, %173 : vector<8x8xf32>
    %c36 = arith.constant 36 : index
    %175 = memref.load %arg1[%c36] : memref<72xf32, #tpu.memory_space<smem>>
    %176 = vector.broadcast %175 : f32 to vector<8x8xf32>
    %177 = arith.mulf %176, %19 : vector<8x8xf32>
    %c37 = arith.constant 37 : index
    %178 = memref.load %arg1[%c37] : memref<72xf32, #tpu.memory_space<smem>>
    %179 = vector.broadcast %178 : f32 to vector<8x8xf32>
    %180 = arith.mulf %179, %20 : vector<8x8xf32>
    %181 = arith.addf %177, %180 : vector<8x8xf32>
    %c38 = arith.constant 38 : index
    %182 = memref.load %arg1[%c38] : memref<72xf32, #tpu.memory_space<smem>>
    %183 = vector.broadcast %182 : f32 to vector<8x8xf32>
    %184 = arith.mulf %183, %21 : vector<8x8xf32>
    %185 = arith.addf %181, %184 : vector<8x8xf32>
    %c39 = arith.constant 39 : index
    %186 = memref.load %arg1[%c39] : memref<72xf32, #tpu.memory_space<smem>>
    %187 = vector.broadcast %186 : f32 to vector<8x8xf32>
    %188 = arith.mulf %187, %23 : vector<8x8xf32>
    %189 = arith.addf %185, %188 : vector<8x8xf32>
    %c40 = arith.constant 40 : index
    %190 = memref.load %arg1[%c40] : memref<72xf32, #tpu.memory_space<smem>>
    %191 = vector.broadcast %190 : f32 to vector<8x8xf32>
    %192 = arith.mulf %191, %24 : vector<8x8xf32>
    %193 = arith.addf %189, %192 : vector<8x8xf32>
    %c41 = arith.constant 41 : index
    %194 = memref.load %arg1[%c41] : memref<72xf32, #tpu.memory_space<smem>>
    %195 = vector.broadcast %194 : f32 to vector<8x8xf32>
    %196 = arith.mulf %195, %25 : vector<8x8xf32>
    %197 = arith.addf %193, %196 : vector<8x8xf32>
    %c42 = arith.constant 42 : index
    %198 = memref.load %arg1[%c42] : memref<72xf32, #tpu.memory_space<smem>>
    %199 = vector.broadcast %198 : f32 to vector<8x8xf32>
    %200 = arith.mulf %199, %27 : vector<8x8xf32>
    %201 = arith.addf %197, %200 : vector<8x8xf32>
    %c43 = arith.constant 43 : index
    %202 = memref.load %arg1[%c43] : memref<72xf32, #tpu.memory_space<smem>>
    %203 = vector.broadcast %202 : f32 to vector<8x8xf32>
    %204 = arith.mulf %203, %28 : vector<8x8xf32>
    %205 = arith.addf %201, %204 : vector<8x8xf32>
    %c44 = arith.constant 44 : index
    %206 = memref.load %arg1[%c44] : memref<72xf32, #tpu.memory_space<smem>>
    %207 = vector.broadcast %206 : f32 to vector<8x8xf32>
    %208 = arith.mulf %207, %29 : vector<8x8xf32>
    %209 = arith.addf %205, %208 : vector<8x8xf32>
    %c36_52 = arith.constant 36 : index
    %210 = memref.load %arg1[%c36_52] : memref<72xf32, #tpu.memory_space<smem>>
    %211 = vector.broadcast %210 : f32 to vector<8x8xf32>
    %212 = arith.mulf %211, %20 : vector<8x8xf32>
    %c37_53 = arith.constant 37 : index
    %213 = memref.load %arg1[%c37_53] : memref<72xf32, #tpu.memory_space<smem>>
    %214 = vector.broadcast %213 : f32 to vector<8x8xf32>
    %215 = arith.mulf %214, %21 : vector<8x8xf32>
    %216 = arith.addf %212, %215 : vector<8x8xf32>
    %c38_54 = arith.constant 38 : index
    %217 = memref.load %arg1[%c38_54] : memref<72xf32, #tpu.memory_space<smem>>
    %218 = vector.broadcast %217 : f32 to vector<8x8xf32>
    %219 = arith.mulf %218, %22 : vector<8x8xf32>
    %220 = arith.addf %216, %219 : vector<8x8xf32>
    %c39_55 = arith.constant 39 : index
    %221 = memref.load %arg1[%c39_55] : memref<72xf32, #tpu.memory_space<smem>>
    %222 = vector.broadcast %221 : f32 to vector<8x8xf32>
    %223 = arith.mulf %222, %24 : vector<8x8xf32>
    %224 = arith.addf %220, %223 : vector<8x8xf32>
    %c40_56 = arith.constant 40 : index
    %225 = memref.load %arg1[%c40_56] : memref<72xf32, #tpu.memory_space<smem>>
    %226 = vector.broadcast %225 : f32 to vector<8x8xf32>
    %227 = arith.mulf %226, %25 : vector<8x8xf32>
    %228 = arith.addf %224, %227 : vector<8x8xf32>
    %c41_57 = arith.constant 41 : index
    %229 = memref.load %arg1[%c41_57] : memref<72xf32, #tpu.memory_space<smem>>
    %230 = vector.broadcast %229 : f32 to vector<8x8xf32>
    %231 = arith.mulf %230, %26 : vector<8x8xf32>
    %232 = arith.addf %228, %231 : vector<8x8xf32>
    %c42_58 = arith.constant 42 : index
    %233 = memref.load %arg1[%c42_58] : memref<72xf32, #tpu.memory_space<smem>>
    %234 = vector.broadcast %233 : f32 to vector<8x8xf32>
    %235 = arith.mulf %234, %28 : vector<8x8xf32>
    %236 = arith.addf %232, %235 : vector<8x8xf32>
    %c43_59 = arith.constant 43 : index
    %237 = memref.load %arg1[%c43_59] : memref<72xf32, #tpu.memory_space<smem>>
    %238 = vector.broadcast %237 : f32 to vector<8x8xf32>
    %239 = arith.mulf %238, %29 : vector<8x8xf32>
    %240 = arith.addf %236, %239 : vector<8x8xf32>
    %c44_60 = arith.constant 44 : index
    %241 = memref.load %arg1[%c44_60] : memref<72xf32, #tpu.memory_space<smem>>
    %242 = vector.broadcast %241 : f32 to vector<8x8xf32>
    %243 = arith.mulf %242, %30 : vector<8x8xf32>
    %244 = arith.addf %240, %243 : vector<8x8xf32>
    %c36_61 = arith.constant 36 : index
    %245 = memref.load %arg1[%c36_61] : memref<72xf32, #tpu.memory_space<smem>>
    %246 = vector.broadcast %245 : f32 to vector<8x8xf32>
    %247 = arith.mulf %246, %23 : vector<8x8xf32>
    %c37_62 = arith.constant 37 : index
    %248 = memref.load %arg1[%c37_62] : memref<72xf32, #tpu.memory_space<smem>>
    %249 = vector.broadcast %248 : f32 to vector<8x8xf32>
    %250 = arith.mulf %249, %24 : vector<8x8xf32>
    %251 = arith.addf %247, %250 : vector<8x8xf32>
    %c38_63 = arith.constant 38 : index
    %252 = memref.load %arg1[%c38_63] : memref<72xf32, #tpu.memory_space<smem>>
    %253 = vector.broadcast %252 : f32 to vector<8x8xf32>
    %254 = arith.mulf %253, %25 : vector<8x8xf32>
    %255 = arith.addf %251, %254 : vector<8x8xf32>
    %c39_64 = arith.constant 39 : index
    %256 = memref.load %arg1[%c39_64] : memref<72xf32, #tpu.memory_space<smem>>
    %257 = vector.broadcast %256 : f32 to vector<8x8xf32>
    %258 = arith.mulf %257, %27 : vector<8x8xf32>
    %259 = arith.addf %255, %258 : vector<8x8xf32>
    %c40_65 = arith.constant 40 : index
    %260 = memref.load %arg1[%c40_65] : memref<72xf32, #tpu.memory_space<smem>>
    %261 = vector.broadcast %260 : f32 to vector<8x8xf32>
    %262 = arith.mulf %261, %28 : vector<8x8xf32>
    %263 = arith.addf %259, %262 : vector<8x8xf32>
    %c41_66 = arith.constant 41 : index
    %264 = memref.load %arg1[%c41_66] : memref<72xf32, #tpu.memory_space<smem>>
    %265 = vector.broadcast %264 : f32 to vector<8x8xf32>
    %266 = arith.mulf %265, %29 : vector<8x8xf32>
    %267 = arith.addf %263, %266 : vector<8x8xf32>
    %c42_67 = arith.constant 42 : index
    %268 = memref.load %arg1[%c42_67] : memref<72xf32, #tpu.memory_space<smem>>
    %269 = vector.broadcast %268 : f32 to vector<8x8xf32>
    %270 = arith.mulf %269, %31 : vector<8x8xf32>
    %271 = arith.addf %267, %270 : vector<8x8xf32>
    %c43_68 = arith.constant 43 : index
    %272 = memref.load %arg1[%c43_68] : memref<72xf32, #tpu.memory_space<smem>>
    %273 = vector.broadcast %272 : f32 to vector<8x8xf32>
    %274 = arith.mulf %273, %32 : vector<8x8xf32>
    %275 = arith.addf %271, %274 : vector<8x8xf32>
    %c44_69 = arith.constant 44 : index
    %276 = memref.load %arg1[%c44_69] : memref<72xf32, #tpu.memory_space<smem>>
    %277 = vector.broadcast %276 : f32 to vector<8x8xf32>
    %278 = arith.mulf %277, %33 : vector<8x8xf32>
    %279 = arith.addf %275, %278 : vector<8x8xf32>
    %c36_70 = arith.constant 36 : index
    %280 = memref.load %arg1[%c36_70] : memref<72xf32, #tpu.memory_space<smem>>
    %281 = vector.broadcast %280 : f32 to vector<8x8xf32>
    %282 = arith.mulf %281, %24 : vector<8x8xf32>
    %c37_71 = arith.constant 37 : index
    %283 = memref.load %arg1[%c37_71] : memref<72xf32, #tpu.memory_space<smem>>
    %284 = vector.broadcast %283 : f32 to vector<8x8xf32>
    %285 = arith.mulf %284, %25 : vector<8x8xf32>
    %286 = arith.addf %282, %285 : vector<8x8xf32>
    %c38_72 = arith.constant 38 : index
    %287 = memref.load %arg1[%c38_72] : memref<72xf32, #tpu.memory_space<smem>>
    %288 = vector.broadcast %287 : f32 to vector<8x8xf32>
    %289 = arith.mulf %288, %26 : vector<8x8xf32>
    %290 = arith.addf %286, %289 : vector<8x8xf32>
    %c39_73 = arith.constant 39 : index
    %291 = memref.load %arg1[%c39_73] : memref<72xf32, #tpu.memory_space<smem>>
    %292 = vector.broadcast %291 : f32 to vector<8x8xf32>
    %293 = arith.mulf %292, %28 : vector<8x8xf32>
    %294 = arith.addf %290, %293 : vector<8x8xf32>
    %c40_74 = arith.constant 40 : index
    %295 = memref.load %arg1[%c40_74] : memref<72xf32, #tpu.memory_space<smem>>
    %296 = vector.broadcast %295 : f32 to vector<8x8xf32>
    %297 = arith.mulf %296, %29 : vector<8x8xf32>
    %298 = arith.addf %294, %297 : vector<8x8xf32>
    %c41_75 = arith.constant 41 : index
    %299 = memref.load %arg1[%c41_75] : memref<72xf32, #tpu.memory_space<smem>>
    %300 = vector.broadcast %299 : f32 to vector<8x8xf32>
    %301 = arith.mulf %300, %30 : vector<8x8xf32>
    %302 = arith.addf %298, %301 : vector<8x8xf32>
    %c42_76 = arith.constant 42 : index
    %303 = memref.load %arg1[%c42_76] : memref<72xf32, #tpu.memory_space<smem>>
    %304 = vector.broadcast %303 : f32 to vector<8x8xf32>
    %305 = arith.mulf %304, %32 : vector<8x8xf32>
    %306 = arith.addf %302, %305 : vector<8x8xf32>
    %c43_77 = arith.constant 43 : index
    %307 = memref.load %arg1[%c43_77] : memref<72xf32, #tpu.memory_space<smem>>
    %308 = vector.broadcast %307 : f32 to vector<8x8xf32>
    %309 = arith.mulf %308, %33 : vector<8x8xf32>
    %310 = arith.addf %306, %309 : vector<8x8xf32>
    %c44_78 = arith.constant 44 : index
    %311 = memref.load %arg1[%c44_78] : memref<72xf32, #tpu.memory_space<smem>>
    %312 = vector.broadcast %311 : f32 to vector<8x8xf32>
    %313 = arith.mulf %312, %34 : vector<8x8xf32>
    %314 = arith.addf %310, %313 : vector<8x8xf32>
    %c0_79 = arith.constant 0 : index
    %c1_80 = arith.constant 1 : index
    %c0_81 = arith.constant 0 : index
    %c0_82 = arith.constant 0 : index
    %315 = vector.load %arg4[%c0_79, %c1_80, %c0_81, %c0_82] : memref<1x4x16x16xf32, #tpu.memory_space<vmem>>, vector<1x1x16x16xf32>
    %316 = vector.shape_cast %315 : vector<1x1x16x16xf32> to vector<16x16xf32>
    %cst_83 = arith.constant dense<0.000000e+00> : vector<16x8xf32>
    %317 = tpu.matmul %316, %2, %cst_83 {dimension_numbers = #tpu.dot_dimension_numbers<[1], [0], [0], [1], [0, 0, 1, 1], [], []>} : vector<16x16xf32>, vector<16x8xf32>, vector<16x8xf32> -> vector<16x8xf32>
    %cst_84 = arith.constant dense<0.000000e+00> : vector<32x8xf32>
    %318 = tpu.matmul %0, %317, %cst_84 {dimension_numbers = #tpu.dot_dimension_numbers<[1], [0], [0], [1], [0, 0, 1, 1], [], []>} : vector<32x16xf32>, vector<16x8xf32>, vector<32x8xf32> -> vector<32x8xf32>
    %cst_85 = arith.constant dense<0.000000e+00> : vector<16x8xf32>
    %319 = tpu.matmul %316, %4, %cst_85 {dimension_numbers = #tpu.dot_dimension_numbers<[1], [0], [0], [1], [0, 0, 1, 1], [], []>} : vector<16x16xf32>, vector<16x8xf32>, vector<16x8xf32> -> vector<16x8xf32>
    %cst_86 = arith.constant dense<0.000000e+00> : vector<32x8xf32>
    %320 = tpu.matmul %0, %319, %cst_86 {dimension_numbers = #tpu.dot_dimension_numbers<[1], [0], [0], [1], [0, 0, 1, 1], [], []>} : vector<32x16xf32>, vector<16x8xf32>, vector<32x8xf32> -> vector<32x8xf32>
    %cst_87 = arith.constant dense<0.000000e+00> : vector<16x8xf32>
    %321 = tpu.matmul %316, %6, %cst_87 {dimension_numbers = #tpu.dot_dimension_numbers<[1], [0], [0], [1], [0, 0, 1, 1], [], []>} : vector<16x16xf32>, vector<16x8xf32>, vector<16x8xf32> -> vector<16x8xf32>
    %cst_88 = arith.constant dense<0.000000e+00> : vector<32x8xf32>
    %322 = tpu.matmul %0, %321, %cst_88 {dimension_numbers = #tpu.dot_dimension_numbers<[1], [0], [0], [1], [0, 0, 1, 1], [], []>} : vector<32x16xf32>, vector<16x8xf32>, vector<32x8xf32> -> vector<32x8xf32>
    %cst_89 = arith.constant dense<0.000000e+00> : vector<16x8xf32>
    %323 = tpu.matmul %316, %8, %cst_89 {dimension_numbers = #tpu.dot_dimension_numbers<[1], [0], [0], [1], [0, 0, 1, 1], [], []>} : vector<16x16xf32>, vector<16x8xf32>, vector<16x8xf32> -> vector<16x8xf32>
    %cst_90 = arith.constant dense<0.000000e+00> : vector<32x8xf32>
    %324 = tpu.matmul %0, %323, %cst_90 {dimension_numbers = #tpu.dot_dimension_numbers<[1], [0], [0], [1], [0, 0, 1, 1], [], []>} : vector<32x16xf32>, vector<16x8xf32>, vector<32x8xf32> -> vector<32x8xf32>
    %325 = vector.extract_strided_slice %318 {offsets = [0, 0], sizes = [8, 8], strides = [1, 1]} : vector<32x8xf32> to vector<8x8xf32>
    %326 = vector.extract_strided_slice %320 {offsets = [0, 0], sizes = [8, 8], strides = [1, 1]} : vector<32x8xf32> to vector<8x8xf32>
    %327 = vector.extract_strided_slice %322 {offsets = [0, 0], sizes = [8, 8], strides = [1, 1]} : vector<32x8xf32> to vector<8x8xf32>
    %328 = vector.extract_strided_slice %324 {offsets = [0, 0], sizes = [8, 8], strides = [1, 1]} : vector<32x8xf32> to vector<8x8xf32>
    %329 = vector.extract_strided_slice %318 {offsets = [8, 0], sizes = [8, 8], strides = [1, 1]} : vector<32x8xf32> to vector<8x8xf32>
    %330 = vector.extract_strided_slice %320 {offsets = [8, 0], sizes = [8, 8], strides = [1, 1]} : vector<32x8xf32> to vector<8x8xf32>
    %331 = vector.extract_strided_slice %322 {offsets = [8, 0], sizes = [8, 8], strides = [1, 1]} : vector<32x8xf32> to vector<8x8xf32>
    %332 = vector.extract_strided_slice %324 {offsets = [8, 0], sizes = [8, 8], strides = [1, 1]} : vector<32x8xf32> to vector<8x8xf32>
    %333 = vector.extract_strided_slice %318 {offsets = [16, 0], sizes = [8, 8], strides = [1, 1]} : vector<32x8xf32> to vector<8x8xf32>
    %334 = vector.extract_strided_slice %320 {offsets = [16, 0], sizes = [8, 8], strides = [1, 1]} : vector<32x8xf32> to vector<8x8xf32>
    %335 = vector.extract_strided_slice %322 {offsets = [16, 0], sizes = [8, 8], strides = [1, 1]} : vector<32x8xf32> to vector<8x8xf32>
    %336 = vector.extract_strided_slice %324 {offsets = [16, 0], sizes = [8, 8], strides = [1, 1]} : vector<32x8xf32> to vector<8x8xf32>
    %337 = vector.extract_strided_slice %318 {offsets = [24, 0], sizes = [8, 8], strides = [1, 1]} : vector<32x8xf32> to vector<8x8xf32>
    %338 = vector.extract_strided_slice %320 {offsets = [24, 0], sizes = [8, 8], strides = [1, 1]} : vector<32x8xf32> to vector<8x8xf32>
    %339 = vector.extract_strided_slice %322 {offsets = [24, 0], sizes = [8, 8], strides = [1, 1]} : vector<32x8xf32> to vector<8x8xf32>
    %340 = vector.extract_strided_slice %324 {offsets = [24, 0], sizes = [8, 8], strides = [1, 1]} : vector<32x8xf32> to vector<8x8xf32>
    %c9 = arith.constant 9 : index
    %341 = memref.load %arg1[%c9] : memref<72xf32, #tpu.memory_space<smem>>
    %342 = vector.broadcast %341 : f32 to vector<8x8xf32>
    %343 = arith.mulf %342, %325 : vector<8x8xf32>
    %c10 = arith.constant 10 : index
    %344 = memref.load %arg1[%c10] : memref<72xf32, #tpu.memory_space<smem>>
    %345 = vector.broadcast %344 : f32 to vector<8x8xf32>
    %346 = arith.mulf %345, %326 : vector<8x8xf32>
    %347 = arith.addf %343, %346 : vector<8x8xf32>
    %c11 = arith.constant 11 : index
    %348 = memref.load %arg1[%c11] : memref<72xf32, #tpu.memory_space<smem>>
    %349 = vector.broadcast %348 : f32 to vector<8x8xf32>
    %350 = arith.mulf %349, %327 : vector<8x8xf32>
    %351 = arith.addf %347, %350 : vector<8x8xf32>
    %c12 = arith.constant 12 : index
    %352 = memref.load %arg1[%c12] : memref<72xf32, #tpu.memory_space<smem>>
    %353 = vector.broadcast %352 : f32 to vector<8x8xf32>
    %354 = arith.mulf %353, %329 : vector<8x8xf32>
    %355 = arith.addf %351, %354 : vector<8x8xf32>
    %c13 = arith.constant 13 : index
    %356 = memref.load %arg1[%c13] : memref<72xf32, #tpu.memory_space<smem>>
    %357 = vector.broadcast %356 : f32 to vector<8x8xf32>
    %358 = arith.mulf %357, %330 : vector<8x8xf32>
    %359 = arith.addf %355, %358 : vector<8x8xf32>
    %c14 = arith.constant 14 : index
    %360 = memref.load %arg1[%c14] : memref<72xf32, #tpu.memory_space<smem>>
    %361 = vector.broadcast %360 : f32 to vector<8x8xf32>
    %362 = arith.mulf %361, %331 : vector<8x8xf32>
    %363 = arith.addf %359, %362 : vector<8x8xf32>
    %c15 = arith.constant 15 : index
    %364 = memref.load %arg1[%c15] : memref<72xf32, #tpu.memory_space<smem>>
    %365 = vector.broadcast %364 : f32 to vector<8x8xf32>
    %366 = arith.mulf %365, %333 : vector<8x8xf32>
    %367 = arith.addf %363, %366 : vector<8x8xf32>
    %c16 = arith.constant 16 : index
    %368 = memref.load %arg1[%c16] : memref<72xf32, #tpu.memory_space<smem>>
    %369 = vector.broadcast %368 : f32 to vector<8x8xf32>
    %370 = arith.mulf %369, %334 : vector<8x8xf32>
    %371 = arith.addf %367, %370 : vector<8x8xf32>
    %c17 = arith.constant 17 : index
    %372 = memref.load %arg1[%c17] : memref<72xf32, #tpu.memory_space<smem>>
    %373 = vector.broadcast %372 : f32 to vector<8x8xf32>
    %374 = arith.mulf %373, %335 : vector<8x8xf32>
    %375 = arith.addf %371, %374 : vector<8x8xf32>
    %c9_91 = arith.constant 9 : index
    %376 = memref.load %arg1[%c9_91] : memref<72xf32, #tpu.memory_space<smem>>
    %377 = vector.broadcast %376 : f32 to vector<8x8xf32>
    %378 = arith.mulf %377, %326 : vector<8x8xf32>
    %c10_92 = arith.constant 10 : index
    %379 = memref.load %arg1[%c10_92] : memref<72xf32, #tpu.memory_space<smem>>
    %380 = vector.broadcast %379 : f32 to vector<8x8xf32>
    %381 = arith.mulf %380, %327 : vector<8x8xf32>
    %382 = arith.addf %378, %381 : vector<8x8xf32>
    %c11_93 = arith.constant 11 : index
    %383 = memref.load %arg1[%c11_93] : memref<72xf32, #tpu.memory_space<smem>>
    %384 = vector.broadcast %383 : f32 to vector<8x8xf32>
    %385 = arith.mulf %384, %328 : vector<8x8xf32>
    %386 = arith.addf %382, %385 : vector<8x8xf32>
    %c12_94 = arith.constant 12 : index
    %387 = memref.load %arg1[%c12_94] : memref<72xf32, #tpu.memory_space<smem>>
    %388 = vector.broadcast %387 : f32 to vector<8x8xf32>
    %389 = arith.mulf %388, %330 : vector<8x8xf32>
    %390 = arith.addf %386, %389 : vector<8x8xf32>
    %c13_95 = arith.constant 13 : index
    %391 = memref.load %arg1[%c13_95] : memref<72xf32, #tpu.memory_space<smem>>
    %392 = vector.broadcast %391 : f32 to vector<8x8xf32>
    %393 = arith.mulf %392, %331 : vector<8x8xf32>
    %394 = arith.addf %390, %393 : vector<8x8xf32>
    %c14_96 = arith.constant 14 : index
    %395 = memref.load %arg1[%c14_96] : memref<72xf32, #tpu.memory_space<smem>>
    %396 = vector.broadcast %395 : f32 to vector<8x8xf32>
    %397 = arith.mulf %396, %332 : vector<8x8xf32>
    %398 = arith.addf %394, %397 : vector<8x8xf32>
    %c15_97 = arith.constant 15 : index
    %399 = memref.load %arg1[%c15_97] : memref<72xf32, #tpu.memory_space<smem>>
    %400 = vector.broadcast %399 : f32 to vector<8x8xf32>
    %401 = arith.mulf %400, %334 : vector<8x8xf32>
    %402 = arith.addf %398, %401 : vector<8x8xf32>
    %c16_98 = arith.constant 16 : index
    %403 = memref.load %arg1[%c16_98] : memref<72xf32, #tpu.memory_space<smem>>
    %404 = vector.broadcast %403 : f32 to vector<8x8xf32>
    %405 = arith.mulf %404, %335 : vector<8x8xf32>
    %406 = arith.addf %402, %405 : vector<8x8xf32>
    %c17_99 = arith.constant 17 : index
    %407 = memref.load %arg1[%c17_99] : memref<72xf32, #tpu.memory_space<smem>>
    %408 = vector.broadcast %407 : f32 to vector<8x8xf32>
    %409 = arith.mulf %408, %336 : vector<8x8xf32>
    %410 = arith.addf %406, %409 : vector<8x8xf32>
    %c9_100 = arith.constant 9 : index
    %411 = memref.load %arg1[%c9_100] : memref<72xf32, #tpu.memory_space<smem>>
    %412 = vector.broadcast %411 : f32 to vector<8x8xf32>
    %413 = arith.mulf %412, %329 : vector<8x8xf32>
    %c10_101 = arith.constant 10 : index
    %414 = memref.load %arg1[%c10_101] : memref<72xf32, #tpu.memory_space<smem>>
    %415 = vector.broadcast %414 : f32 to vector<8x8xf32>
    %416 = arith.mulf %415, %330 : vector<8x8xf32>
    %417 = arith.addf %413, %416 : vector<8x8xf32>
    %c11_102 = arith.constant 11 : index
    %418 = memref.load %arg1[%c11_102] : memref<72xf32, #tpu.memory_space<smem>>
    %419 = vector.broadcast %418 : f32 to vector<8x8xf32>
    %420 = arith.mulf %419, %331 : vector<8x8xf32>
    %421 = arith.addf %417, %420 : vector<8x8xf32>
    %c12_103 = arith.constant 12 : index
    %422 = memref.load %arg1[%c12_103] : memref<72xf32, #tpu.memory_space<smem>>
    %423 = vector.broadcast %422 : f32 to vector<8x8xf32>
    %424 = arith.mulf %423, %333 : vector<8x8xf32>
    %425 = arith.addf %421, %424 : vector<8x8xf32>
    %c13_104 = arith.constant 13 : index
    %426 = memref.load %arg1[%c13_104] : memref<72xf32, #tpu.memory_space<smem>>
    %427 = vector.broadcast %426 : f32 to vector<8x8xf32>
    %428 = arith.mulf %427, %334 : vector<8x8xf32>
    %429 = arith.addf %425, %428 : vector<8x8xf32>
    %c14_105 = arith.constant 14 : index
    %430 = memref.load %arg1[%c14_105] : memref<72xf32, #tpu.memory_space<smem>>
    %431 = vector.broadcast %430 : f32 to vector<8x8xf32>
    %432 = arith.mulf %431, %335 : vector<8x8xf32>
    %433 = arith.addf %429, %432 : vector<8x8xf32>
    %c15_106 = arith.constant 15 : index
    %434 = memref.load %arg1[%c15_106] : memref<72xf32, #tpu.memory_space<smem>>
    %435 = vector.broadcast %434 : f32 to vector<8x8xf32>
    %436 = arith.mulf %435, %337 : vector<8x8xf32>
    %437 = arith.addf %433, %436 : vector<8x8xf32>
    %c16_107 = arith.constant 16 : index
    %438 = memref.load %arg1[%c16_107] : memref<72xf32, #tpu.memory_space<smem>>
    %439 = vector.broadcast %438 : f32 to vector<8x8xf32>
    %440 = arith.mulf %439, %338 : vector<8x8xf32>
    %441 = arith.addf %437, %440 : vector<8x8xf32>
    %c17_108 = arith.constant 17 : index
    %442 = memref.load %arg1[%c17_108] : memref<72xf32, #tpu.memory_space<smem>>
    %443 = vector.broadcast %442 : f32 to vector<8x8xf32>
    %444 = arith.mulf %443, %339 : vector<8x8xf32>
    %445 = arith.addf %441, %444 : vector<8x8xf32>
    %c9_109 = arith.constant 9 : index
    %446 = memref.load %arg1[%c9_109] : memref<72xf32, #tpu.memory_space<smem>>
    %447 = vector.broadcast %446 : f32 to vector<8x8xf32>
    %448 = arith.mulf %447, %330 : vector<8x8xf32>
    %c10_110 = arith.constant 10 : index
    %449 = memref.load %arg1[%c10_110] : memref<72xf32, #tpu.memory_space<smem>>
    %450 = vector.broadcast %449 : f32 to vector<8x8xf32>
    %451 = arith.mulf %450, %331 : vector<8x8xf32>
    %452 = arith.addf %448, %451 : vector<8x8xf32>
    %c11_111 = arith.constant 11 : index
    %453 = memref.load %arg1[%c11_111] : memref<72xf32, #tpu.memory_space<smem>>
    %454 = vector.broadcast %453 : f32 to vector<8x8xf32>
    %455 = arith.mulf %454, %332 : vector<8x8xf32>
    %456 = arith.addf %452, %455 : vector<8x8xf32>
    %c12_112 = arith.constant 12 : index
    %457 = memref.load %arg1[%c12_112] : memref<72xf32, #tpu.memory_space<smem>>
    %458 = vector.broadcast %457 : f32 to vector<8x8xf32>
    %459 = arith.mulf %458, %334 : vector<8x8xf32>
    %460 = arith.addf %456, %459 : vector<8x8xf32>
    %c13_113 = arith.constant 13 : index
    %461 = memref.load %arg1[%c13_113] : memref<72xf32, #tpu.memory_space<smem>>
    %462 = vector.broadcast %461 : f32 to vector<8x8xf32>
    %463 = arith.mulf %462, %335 : vector<8x8xf32>
    %464 = arith.addf %460, %463 : vector<8x8xf32>
    %c14_114 = arith.constant 14 : index
    %465 = memref.load %arg1[%c14_114] : memref<72xf32, #tpu.memory_space<smem>>
    %466 = vector.broadcast %465 : f32 to vector<8x8xf32>
    %467 = arith.mulf %466, %336 : vector<8x8xf32>
    %468 = arith.addf %464, %467 : vector<8x8xf32>
    %c15_115 = arith.constant 15 : index
    %469 = memref.load %arg1[%c15_115] : memref<72xf32, #tpu.memory_space<smem>>
    %470 = vector.broadcast %469 : f32 to vector<8x8xf32>
    %471 = arith.mulf %470, %338 : vector<8x8xf32>
    %472 = arith.addf %468, %471 : vector<8x8xf32>
    %c16_116 = arith.constant 16 : index
    %473 = memref.load %arg1[%c16_116] : memref<72xf32, #tpu.memory_space<smem>>
    %474 = vector.broadcast %473 : f32 to vector<8x8xf32>
    %475 = arith.mulf %474, %339 : vector<8x8xf32>
    %476 = arith.addf %472, %475 : vector<8x8xf32>
    %c17_117 = arith.constant 17 : index
    %477 = memref.load %arg1[%c17_117] : memref<72xf32, #tpu.memory_space<smem>>
    %478 = vector.broadcast %477 : f32 to vector<8x8xf32>
    %479 = arith.mulf %478, %340 : vector<8x8xf32>
    %480 = arith.addf %476, %479 : vector<8x8xf32>
    %c45 = arith.constant 45 : index
    %481 = memref.load %arg1[%c45] : memref<72xf32, #tpu.memory_space<smem>>
    %482 = vector.broadcast %481 : f32 to vector<8x8xf32>
    %483 = arith.mulf %482, %325 : vector<8x8xf32>
    %c46 = arith.constant 46 : index
    %484 = memref.load %arg1[%c46] : memref<72xf32, #tpu.memory_space<smem>>
    %485 = vector.broadcast %484 : f32 to vector<8x8xf32>
    %486 = arith.mulf %485, %326 : vector<8x8xf32>
    %487 = arith.addf %483, %486 : vector<8x8xf32>
    %c47 = arith.constant 47 : index
    %488 = memref.load %arg1[%c47] : memref<72xf32, #tpu.memory_space<smem>>
    %489 = vector.broadcast %488 : f32 to vector<8x8xf32>
    %490 = arith.mulf %489, %327 : vector<8x8xf32>
    %491 = arith.addf %487, %490 : vector<8x8xf32>
    %c48 = arith.constant 48 : index
    %492 = memref.load %arg1[%c48] : memref<72xf32, #tpu.memory_space<smem>>
    %493 = vector.broadcast %492 : f32 to vector<8x8xf32>
    %494 = arith.mulf %493, %329 : vector<8x8xf32>
    %495 = arith.addf %491, %494 : vector<8x8xf32>
    %c49 = arith.constant 49 : index
    %496 = memref.load %arg1[%c49] : memref<72xf32, #tpu.memory_space<smem>>
    %497 = vector.broadcast %496 : f32 to vector<8x8xf32>
    %498 = arith.mulf %497, %330 : vector<8x8xf32>
    %499 = arith.addf %495, %498 : vector<8x8xf32>
    %c50 = arith.constant 50 : index
    %500 = memref.load %arg1[%c50] : memref<72xf32, #tpu.memory_space<smem>>
    %501 = vector.broadcast %500 : f32 to vector<8x8xf32>
    %502 = arith.mulf %501, %331 : vector<8x8xf32>
    %503 = arith.addf %499, %502 : vector<8x8xf32>
    %c51 = arith.constant 51 : index
    %504 = memref.load %arg1[%c51] : memref<72xf32, #tpu.memory_space<smem>>
    %505 = vector.broadcast %504 : f32 to vector<8x8xf32>
    %506 = arith.mulf %505, %333 : vector<8x8xf32>
    %507 = arith.addf %503, %506 : vector<8x8xf32>
    %c52 = arith.constant 52 : index
    %508 = memref.load %arg1[%c52] : memref<72xf32, #tpu.memory_space<smem>>
    %509 = vector.broadcast %508 : f32 to vector<8x8xf32>
    %510 = arith.mulf %509, %334 : vector<8x8xf32>
    %511 = arith.addf %507, %510 : vector<8x8xf32>
    %c53 = arith.constant 53 : index
    %512 = memref.load %arg1[%c53] : memref<72xf32, #tpu.memory_space<smem>>
    %513 = vector.broadcast %512 : f32 to vector<8x8xf32>
    %514 = arith.mulf %513, %335 : vector<8x8xf32>
    %515 = arith.addf %511, %514 : vector<8x8xf32>
    %c45_118 = arith.constant 45 : index
    %516 = memref.load %arg1[%c45_118] : memref<72xf32, #tpu.memory_space<smem>>
    %517 = vector.broadcast %516 : f32 to vector<8x8xf32>
    %518 = arith.mulf %517, %326 : vector<8x8xf32>
    %c46_119 = arith.constant 46 : index
    %519 = memref.load %arg1[%c46_119] : memref<72xf32, #tpu.memory_space<smem>>
    %520 = vector.broadcast %519 : f32 to vector<8x8xf32>
    %521 = arith.mulf %520, %327 : vector<8x8xf32>
    %522 = arith.addf %518, %521 : vector<8x8xf32>
    %c47_120 = arith.constant 47 : index
    %523 = memref.load %arg1[%c47_120] : memref<72xf32, #tpu.memory_space<smem>>
    %524 = vector.broadcast %523 : f32 to vector<8x8xf32>
    %525 = arith.mulf %524, %328 : vector<8x8xf32>
    %526 = arith.addf %522, %525 : vector<8x8xf32>
    %c48_121 = arith.constant 48 : index
    %527 = memref.load %arg1[%c48_121] : memref<72xf32, #tpu.memory_space<smem>>
    %528 = vector.broadcast %527 : f32 to vector<8x8xf32>
    %529 = arith.mulf %528, %330 : vector<8x8xf32>
    %530 = arith.addf %526, %529 : vector<8x8xf32>
    %c49_122 = arith.constant 49 : index
    %531 = memref.load %arg1[%c49_122] : memref<72xf32, #tpu.memory_space<smem>>
    %532 = vector.broadcast %531 : f32 to vector<8x8xf32>
    %533 = arith.mulf %532, %331 : vector<8x8xf32>
    %534 = arith.addf %530, %533 : vector<8x8xf32>
    %c50_123 = arith.constant 50 : index
    %535 = memref.load %arg1[%c50_123] : memref<72xf32, #tpu.memory_space<smem>>
    %536 = vector.broadcast %535 : f32 to vector<8x8xf32>
    %537 = arith.mulf %536, %332 : vector<8x8xf32>
    %538 = arith.addf %534, %537 : vector<8x8xf32>
    %c51_124 = arith.constant 51 : index
    %539 = memref.load %arg1[%c51_124] : memref<72xf32, #tpu.memory_space<smem>>
    %540 = vector.broadcast %539 : f32 to vector<8x8xf32>
    %541 = arith.mulf %540, %334 : vector<8x8xf32>
    %542 = arith.addf %538, %541 : vector<8x8xf32>
    %c52_125 = arith.constant 52 : index
    %543 = memref.load %arg1[%c52_125] : memref<72xf32, #tpu.memory_space<smem>>
    %544 = vector.broadcast %543 : f32 to vector<8x8xf32>
    %545 = arith.mulf %544, %335 : vector<8x8xf32>
    %546 = arith.addf %542, %545 : vector<8x8xf32>
    %c53_126 = arith.constant 53 : index
    %547 = memref.load %arg1[%c53_126] : memref<72xf32, #tpu.memory_space<smem>>
    %548 = vector.broadcast %547 : f32 to vector<8x8xf32>
    %549 = arith.mulf %548, %336 : vector<8x8xf32>
    %550 = arith.addf %546, %549 : vector<8x8xf32>
    %c45_127 = arith.constant 45 : index
    %551 = memref.load %arg1[%c45_127] : memref<72xf32, #tpu.memory_space<smem>>
    %552 = vector.broadcast %551 : f32 to vector<8x8xf32>
    %553 = arith.mulf %552, %329 : vector<8x8xf32>
    %c46_128 = arith.constant 46 : index
    %554 = memref.load %arg1[%c46_128] : memref<72xf32, #tpu.memory_space<smem>>
    %555 = vector.broadcast %554 : f32 to vector<8x8xf32>
    %556 = arith.mulf %555, %330 : vector<8x8xf32>
    %557 = arith.addf %553, %556 : vector<8x8xf32>
    %c47_129 = arith.constant 47 : index
    %558 = memref.load %arg1[%c47_129] : memref<72xf32, #tpu.memory_space<smem>>
    %559 = vector.broadcast %558 : f32 to vector<8x8xf32>
    %560 = arith.mulf %559, %331 : vector<8x8xf32>
    %561 = arith.addf %557, %560 : vector<8x8xf32>
    %c48_130 = arith.constant 48 : index
    %562 = memref.load %arg1[%c48_130] : memref<72xf32, #tpu.memory_space<smem>>
    %563 = vector.broadcast %562 : f32 to vector<8x8xf32>
    %564 = arith.mulf %563, %333 : vector<8x8xf32>
    %565 = arith.addf %561, %564 : vector<8x8xf32>
    %c49_131 = arith.constant 49 : index
    %566 = memref.load %arg1[%c49_131] : memref<72xf32, #tpu.memory_space<smem>>
    %567 = vector.broadcast %566 : f32 to vector<8x8xf32>
    %568 = arith.mulf %567, %334 : vector<8x8xf32>
    %569 = arith.addf %565, %568 : vector<8x8xf32>
    %c50_132 = arith.constant 50 : index
    %570 = memref.load %arg1[%c50_132] : memref<72xf32, #tpu.memory_space<smem>>
    %571 = vector.broadcast %570 : f32 to vector<8x8xf32>
    %572 = arith.mulf %571, %335 : vector<8x8xf32>
    %573 = arith.addf %569, %572 : vector<8x8xf32>
    %c51_133 = arith.constant 51 : index
    %574 = memref.load %arg1[%c51_133] : memref<72xf32, #tpu.memory_space<smem>>
    %575 = vector.broadcast %574 : f32 to vector<8x8xf32>
    %576 = arith.mulf %575, %337 : vector<8x8xf32>
    %577 = arith.addf %573, %576 : vector<8x8xf32>
    %c52_134 = arith.constant 52 : index
    %578 = memref.load %arg1[%c52_134] : memref<72xf32, #tpu.memory_space<smem>>
    %579 = vector.broadcast %578 : f32 to vector<8x8xf32>
    %580 = arith.mulf %579, %338 : vector<8x8xf32>
    %581 = arith.addf %577, %580 : vector<8x8xf32>
    %c53_135 = arith.constant 53 : index
    %582 = memref.load %arg1[%c53_135] : memref<72xf32, #tpu.memory_space<smem>>
    %583 = vector.broadcast %582 : f32 to vector<8x8xf32>
    %584 = arith.mulf %583, %339 : vector<8x8xf32>
    %585 = arith.addf %581, %584 : vector<8x8xf32>
    %c45_136 = arith.constant 45 : index
    %586 = memref.load %arg1[%c45_136] : memref<72xf32, #tpu.memory_space<smem>>
    %587 = vector.broadcast %586 : f32 to vector<8x8xf32>
    %588 = arith.mulf %587, %330 : vector<8x8xf32>
    %c46_137 = arith.constant 46 : index
    %589 = memref.load %arg1[%c46_137] : memref<72xf32, #tpu.memory_space<smem>>
    %590 = vector.broadcast %589 : f32 to vector<8x8xf32>
    %591 = arith.mulf %590, %331 : vector<8x8xf32>
    %592 = arith.addf %588, %591 : vector<8x8xf32>
    %c47_138 = arith.constant 47 : index
    %593 = memref.load %arg1[%c47_138] : memref<72xf32, #tpu.memory_space<smem>>
    %594 = vector.broadcast %593 : f32 to vector<8x8xf32>
    %595 = arith.mulf %594, %332 : vector<8x8xf32>
    %596 = arith.addf %592, %595 : vector<8x8xf32>
    %c48_139 = arith.constant 48 : index
    %597 = memref.load %arg1[%c48_139] : memref<72xf32, #tpu.memory_space<smem>>
    %598 = vector.broadcast %597 : f32 to vector<8x8xf32>
    %599 = arith.mulf %598, %334 : vector<8x8xf32>
    %600 = arith.addf %596, %599 : vector<8x8xf32>
    %c49_140 = arith.constant 49 : index
    %601 = memref.load %arg1[%c49_140] : memref<72xf32, #tpu.memory_space<smem>>
    %602 = vector.broadcast %601 : f32 to vector<8x8xf32>
    %603 = arith.mulf %602, %335 : vector<8x8xf32>
    %604 = arith.addf %600, %603 : vector<8x8xf32>
    %c50_141 = arith.constant 50 : index
    %605 = memref.load %arg1[%c50_141] : memref<72xf32, #tpu.memory_space<smem>>
    %606 = vector.broadcast %605 : f32 to vector<8x8xf32>
    %607 = arith.mulf %606, %336 : vector<8x8xf32>
    %608 = arith.addf %604, %607 : vector<8x8xf32>
    %c51_142 = arith.constant 51 : index
    %609 = memref.load %arg1[%c51_142] : memref<72xf32, #tpu.memory_space<smem>>
    %610 = vector.broadcast %609 : f32 to vector<8x8xf32>
    %611 = arith.mulf %610, %338 : vector<8x8xf32>
    %612 = arith.addf %608, %611 : vector<8x8xf32>
    %c52_143 = arith.constant 52 : index
    %613 = memref.load %arg1[%c52_143] : memref<72xf32, #tpu.memory_space<smem>>
    %614 = vector.broadcast %613 : f32 to vector<8x8xf32>
    %615 = arith.mulf %614, %339 : vector<8x8xf32>
    %616 = arith.addf %612, %615 : vector<8x8xf32>
    %c53_144 = arith.constant 53 : index
    %617 = memref.load %arg1[%c53_144] : memref<72xf32, #tpu.memory_space<smem>>
    %618 = vector.broadcast %617 : f32 to vector<8x8xf32>
    %619 = arith.mulf %618, %340 : vector<8x8xf32>
    %620 = arith.addf %616, %619 : vector<8x8xf32>
    %c0_145 = arith.constant 0 : index
    %c2_146 = arith.constant 2 : index
    %c0_147 = arith.constant 0 : index
    %c0_148 = arith.constant 0 : index
    %621 = vector.load %arg4[%c0_145, %c2_146, %c0_147, %c0_148] : memref<1x4x16x16xf32, #tpu.memory_space<vmem>>, vector<1x1x16x16xf32>
    %622 = vector.shape_cast %621 : vector<1x1x16x16xf32> to vector<16x16xf32>
    %cst_149 = arith.constant dense<0.000000e+00> : vector<16x8xf32>
    %623 = tpu.matmul %622, %2, %cst_149 {dimension_numbers = #tpu.dot_dimension_numbers<[1], [0], [0], [1], [0, 0, 1, 1], [], []>} : vector<16x16xf32>, vector<16x8xf32>, vector<16x8xf32> -> vector<16x8xf32>
    %cst_150 = arith.constant dense<0.000000e+00> : vector<32x8xf32>
    %624 = tpu.matmul %0, %623, %cst_150 {dimension_numbers = #tpu.dot_dimension_numbers<[1], [0], [0], [1], [0, 0, 1, 1], [], []>} : vector<32x16xf32>, vector<16x8xf32>, vector<32x8xf32> -> vector<32x8xf32>
    %cst_151 = arith.constant dense<0.000000e+00> : vector<16x8xf32>
    %625 = tpu.matmul %622, %4, %cst_151 {dimension_numbers = #tpu.dot_dimension_numbers<[1], [0], [0], [1], [0, 0, 1, 1], [], []>} : vector<16x16xf32>, vector<16x8xf32>, vector<16x8xf32> -> vector<16x8xf32>
    %cst_152 = arith.constant dense<0.000000e+00> : vector<32x8xf32>
    %626 = tpu.matmul %0, %625, %cst_152 {dimension_numbers = #tpu.dot_dimension_numbers<[1], [0], [0], [1], [0, 0, 1, 1], [], []>} : vector<32x16xf32>, vector<16x8xf32>, vector<32x8xf32> -> vector<32x8xf32>
    %cst_153 = arith.constant dense<0.000000e+00> : vector<16x8xf32>
    %627 = tpu.matmul %622, %6, %cst_153 {dimension_numbers = #tpu.dot_dimension_numbers<[1], [0], [0], [1], [0, 0, 1, 1], [], []>} : vector<16x16xf32>, vector<16x8xf32>, vector<16x8xf32> -> vector<16x8xf32>
    %cst_154 = arith.constant dense<0.000000e+00> : vector<32x8xf32>
    %628 = tpu.matmul %0, %627, %cst_154 {dimension_numbers = #tpu.dot_dimension_numbers<[1], [0], [0], [1], [0, 0, 1, 1], [], []>} : vector<32x16xf32>, vector<16x8xf32>, vector<32x8xf32> -> vector<32x8xf32>
    %cst_155 = arith.constant dense<0.000000e+00> : vector<16x8xf32>
    %629 = tpu.matmul %622, %8, %cst_155 {dimension_numbers = #tpu.dot_dimension_numbers<[1], [0], [0], [1], [0, 0, 1, 1], [], []>} : vector<16x16xf32>, vector<16x8xf32>, vector<16x8xf32> -> vector<16x8xf32>
    %cst_156 = arith.constant dense<0.000000e+00> : vector<32x8xf32>
    %630 = tpu.matmul %0, %629, %cst_156 {dimension_numbers = #tpu.dot_dimension_numbers<[1], [0], [0], [1], [0, 0, 1, 1], [], []>} : vector<32x16xf32>, vector<16x8xf32>, vector<32x8xf32> -> vector<32x8xf32>
    %631 = vector.extract_strided_slice %624 {offsets = [0, 0], sizes = [8, 8], strides = [1, 1]} : vector<32x8xf32> to vector<8x8xf32>
    %632 = vector.extract_strided_slice %626 {offsets = [0, 0], sizes = [8, 8], strides = [1, 1]} : vector<32x8xf32> to vector<8x8xf32>
    %633 = vector.extract_strided_slice %628 {offsets = [0, 0], sizes = [8, 8], strides = [1, 1]} : vector<32x8xf32> to vector<8x8xf32>
    %634 = vector.extract_strided_slice %630 {offsets = [0, 0], sizes = [8, 8], strides = [1, 1]} : vector<32x8xf32> to vector<8x8xf32>
    %635 = vector.extract_strided_slice %624 {offsets = [8, 0], sizes = [8, 8], strides = [1, 1]} : vector<32x8xf32> to vector<8x8xf32>
    %636 = vector.extract_strided_slice %626 {offsets = [8, 0], sizes = [8, 8], strides = [1, 1]} : vector<32x8xf32> to vector<8x8xf32>
    %637 = vector.extract_strided_slice %628 {offsets = [8, 0], sizes = [8, 8], strides = [1, 1]} : vector<32x8xf32> to vector<8x8xf32>
    %638 = vector.extract_strided_slice %630 {offsets = [8, 0], sizes = [8, 8], strides = [1, 1]} : vector<32x8xf32> to vector<8x8xf32>
    %639 = vector.extract_strided_slice %624 {offsets = [16, 0], sizes = [8, 8], strides = [1, 1]} : vector<32x8xf32> to vector<8x8xf32>
    %640 = vector.extract_strided_slice %626 {offsets = [16, 0], sizes = [8, 8], strides = [1, 1]} : vector<32x8xf32> to vector<8x8xf32>
    %641 = vector.extract_strided_slice %628 {offsets = [16, 0], sizes = [8, 8], strides = [1, 1]} : vector<32x8xf32> to vector<8x8xf32>
    %642 = vector.extract_strided_slice %630 {offsets = [16, 0], sizes = [8, 8], strides = [1, 1]} : vector<32x8xf32> to vector<8x8xf32>
    %643 = vector.extract_strided_slice %624 {offsets = [24, 0], sizes = [8, 8], strides = [1, 1]} : vector<32x8xf32> to vector<8x8xf32>
    %644 = vector.extract_strided_slice %626 {offsets = [24, 0], sizes = [8, 8], strides = [1, 1]} : vector<32x8xf32> to vector<8x8xf32>
    %645 = vector.extract_strided_slice %628 {offsets = [24, 0], sizes = [8, 8], strides = [1, 1]} : vector<32x8xf32> to vector<8x8xf32>
    %646 = vector.extract_strided_slice %630 {offsets = [24, 0], sizes = [8, 8], strides = [1, 1]} : vector<32x8xf32> to vector<8x8xf32>
    %c18 = arith.constant 18 : index
    %647 = memref.load %arg1[%c18] : memref<72xf32, #tpu.memory_space<smem>>
    %648 = vector.broadcast %647 : f32 to vector<8x8xf32>
    %649 = arith.mulf %648, %631 : vector<8x8xf32>
    %c19 = arith.constant 19 : index
    %650 = memref.load %arg1[%c19] : memref<72xf32, #tpu.memory_space<smem>>
    %651 = vector.broadcast %650 : f32 to vector<8x8xf32>
    %652 = arith.mulf %651, %632 : vector<8x8xf32>
    %653 = arith.addf %649, %652 : vector<8x8xf32>
    %c20 = arith.constant 20 : index
    %654 = memref.load %arg1[%c20] : memref<72xf32, #tpu.memory_space<smem>>
    %655 = vector.broadcast %654 : f32 to vector<8x8xf32>
    %656 = arith.mulf %655, %633 : vector<8x8xf32>
    %657 = arith.addf %653, %656 : vector<8x8xf32>
    %c21 = arith.constant 21 : index
    %658 = memref.load %arg1[%c21] : memref<72xf32, #tpu.memory_space<smem>>
    %659 = vector.broadcast %658 : f32 to vector<8x8xf32>
    %660 = arith.mulf %659, %635 : vector<8x8xf32>
    %661 = arith.addf %657, %660 : vector<8x8xf32>
    %c22 = arith.constant 22 : index
    %662 = memref.load %arg1[%c22] : memref<72xf32, #tpu.memory_space<smem>>
    %663 = vector.broadcast %662 : f32 to vector<8x8xf32>
    %664 = arith.mulf %663, %636 : vector<8x8xf32>
    %665 = arith.addf %661, %664 : vector<8x8xf32>
    %c23 = arith.constant 23 : index
    %666 = memref.load %arg1[%c23] : memref<72xf32, #tpu.memory_space<smem>>
    %667 = vector.broadcast %666 : f32 to vector<8x8xf32>
    %668 = arith.mulf %667, %637 : vector<8x8xf32>
    %669 = arith.addf %665, %668 : vector<8x8xf32>
    %c24 = arith.constant 24 : index
    %670 = memref.load %arg1[%c24] : memref<72xf32, #tpu.memory_space<smem>>
    %671 = vector.broadcast %670 : f32 to vector<8x8xf32>
    %672 = arith.mulf %671, %639 : vector<8x8xf32>
    %673 = arith.addf %669, %672 : vector<8x8xf32>
    %c25 = arith.constant 25 : index
    %674 = memref.load %arg1[%c25] : memref<72xf32, #tpu.memory_space<smem>>
    %675 = vector.broadcast %674 : f32 to vector<8x8xf32>
    %676 = arith.mulf %675, %640 : vector<8x8xf32>
    %677 = arith.addf %673, %676 : vector<8x8xf32>
    %c26 = arith.constant 26 : index
    %678 = memref.load %arg1[%c26] : memref<72xf32, #tpu.memory_space<smem>>
    %679 = vector.broadcast %678 : f32 to vector<8x8xf32>
    %680 = arith.mulf %679, %641 : vector<8x8xf32>
    %681 = arith.addf %677, %680 : vector<8x8xf32>
    %682 = arith.addf %69, %681 : vector<8x8xf32>
    %c18_157 = arith.constant 18 : index
    %683 = memref.load %arg1[%c18_157] : memref<72xf32, #tpu.memory_space<smem>>
    %684 = vector.broadcast %683 : f32 to vector<8x8xf32>
    %685 = arith.mulf %684, %632 : vector<8x8xf32>
    %c19_158 = arith.constant 19 : index
    %686 = memref.load %arg1[%c19_158] : memref<72xf32, #tpu.memory_space<smem>>
    %687 = vector.broadcast %686 : f32 to vector<8x8xf32>
    %688 = arith.mulf %687, %633 : vector<8x8xf32>
    %689 = arith.addf %685, %688 : vector<8x8xf32>
    %c20_159 = arith.constant 20 : index
    %690 = memref.load %arg1[%c20_159] : memref<72xf32, #tpu.memory_space<smem>>
    %691 = vector.broadcast %690 : f32 to vector<8x8xf32>
    %692 = arith.mulf %691, %634 : vector<8x8xf32>
    %693 = arith.addf %689, %692 : vector<8x8xf32>
    %c21_160 = arith.constant 21 : index
    %694 = memref.load %arg1[%c21_160] : memref<72xf32, #tpu.memory_space<smem>>
    %695 = vector.broadcast %694 : f32 to vector<8x8xf32>
    %696 = arith.mulf %695, %636 : vector<8x8xf32>
    %697 = arith.addf %693, %696 : vector<8x8xf32>
    %c22_161 = arith.constant 22 : index
    %698 = memref.load %arg1[%c22_161] : memref<72xf32, #tpu.memory_space<smem>>
    %699 = vector.broadcast %698 : f32 to vector<8x8xf32>
    %700 = arith.mulf %699, %637 : vector<8x8xf32>
    %701 = arith.addf %697, %700 : vector<8x8xf32>
    %c23_162 = arith.constant 23 : index
    %702 = memref.load %arg1[%c23_162] : memref<72xf32, #tpu.memory_space<smem>>
    %703 = vector.broadcast %702 : f32 to vector<8x8xf32>
    %704 = arith.mulf %703, %638 : vector<8x8xf32>
    %705 = arith.addf %701, %704 : vector<8x8xf32>
    %c24_163 = arith.constant 24 : index
    %706 = memref.load %arg1[%c24_163] : memref<72xf32, #tpu.memory_space<smem>>
    %707 = vector.broadcast %706 : f32 to vector<8x8xf32>
    %708 = arith.mulf %707, %640 : vector<8x8xf32>
    %709 = arith.addf %705, %708 : vector<8x8xf32>
    %c25_164 = arith.constant 25 : index
    %710 = memref.load %arg1[%c25_164] : memref<72xf32, #tpu.memory_space<smem>>
    %711 = vector.broadcast %710 : f32 to vector<8x8xf32>
    %712 = arith.mulf %711, %641 : vector<8x8xf32>
    %713 = arith.addf %709, %712 : vector<8x8xf32>
    %c26_165 = arith.constant 26 : index
    %714 = memref.load %arg1[%c26_165] : memref<72xf32, #tpu.memory_space<smem>>
    %715 = vector.broadcast %714 : f32 to vector<8x8xf32>
    %716 = arith.mulf %715, %642 : vector<8x8xf32>
    %717 = arith.addf %713, %716 : vector<8x8xf32>
    %718 = arith.addf %104, %717 : vector<8x8xf32>
    %c18_166 = arith.constant 18 : index
    %719 = memref.load %arg1[%c18_166] : memref<72xf32, #tpu.memory_space<smem>>
    %720 = vector.broadcast %719 : f32 to vector<8x8xf32>
    %721 = arith.mulf %720, %635 : vector<8x8xf32>
    %c19_167 = arith.constant 19 : index
    %722 = memref.load %arg1[%c19_167] : memref<72xf32, #tpu.memory_space<smem>>
    %723 = vector.broadcast %722 : f32 to vector<8x8xf32>
    %724 = arith.mulf %723, %636 : vector<8x8xf32>
    %725 = arith.addf %721, %724 : vector<8x8xf32>
    %c20_168 = arith.constant 20 : index
    %726 = memref.load %arg1[%c20_168] : memref<72xf32, #tpu.memory_space<smem>>
    %727 = vector.broadcast %726 : f32 to vector<8x8xf32>
    %728 = arith.mulf %727, %637 : vector<8x8xf32>
    %729 = arith.addf %725, %728 : vector<8x8xf32>
    %c21_169 = arith.constant 21 : index
    %730 = memref.load %arg1[%c21_169] : memref<72xf32, #tpu.memory_space<smem>>
    %731 = vector.broadcast %730 : f32 to vector<8x8xf32>
    %732 = arith.mulf %731, %639 : vector<8x8xf32>
    %733 = arith.addf %729, %732 : vector<8x8xf32>
    %c22_170 = arith.constant 22 : index
    %734 = memref.load %arg1[%c22_170] : memref<72xf32, #tpu.memory_space<smem>>
    %735 = vector.broadcast %734 : f32 to vector<8x8xf32>
    %736 = arith.mulf %735, %640 : vector<8x8xf32>
    %737 = arith.addf %733, %736 : vector<8x8xf32>
    %c23_171 = arith.constant 23 : index
    %738 = memref.load %arg1[%c23_171] : memref<72xf32, #tpu.memory_space<smem>>
    %739 = vector.broadcast %738 : f32 to vector<8x8xf32>
    %740 = arith.mulf %739, %641 : vector<8x8xf32>
    %741 = arith.addf %737, %740 : vector<8x8xf32>
    %c24_172 = arith.constant 24 : index
    %742 = memref.load %arg1[%c24_172] : memref<72xf32, #tpu.memory_space<smem>>
    %743 = vector.broadcast %742 : f32 to vector<8x8xf32>
    %744 = arith.mulf %743, %643 : vector<8x8xf32>
    %745 = arith.addf %741, %744 : vector<8x8xf32>
    %c25_173 = arith.constant 25 : index
    %746 = memref.load %arg1[%c25_173] : memref<72xf32, #tpu.memory_space<smem>>
    %747 = vector.broadcast %746 : f32 to vector<8x8xf32>
    %748 = arith.mulf %747, %644 : vector<8x8xf32>
    %749 = arith.addf %745, %748 : vector<8x8xf32>
    %c26_174 = arith.constant 26 : index
    %750 = memref.load %arg1[%c26_174] : memref<72xf32, #tpu.memory_space<smem>>
    %751 = vector.broadcast %750 : f32 to vector<8x8xf32>
    %752 = arith.mulf %751, %645 : vector<8x8xf32>
    %753 = arith.addf %749, %752 : vector<8x8xf32>
    %754 = arith.addf %139, %753 : vector<8x8xf32>
    %c18_175 = arith.constant 18 : index
    %755 = memref.load %arg1[%c18_175] : memref<72xf32, #tpu.memory_space<smem>>
    %756 = vector.broadcast %755 : f32 to vector<8x8xf32>
    %757 = arith.mulf %756, %636 : vector<8x8xf32>
    %c19_176 = arith.constant 19 : index
    %758 = memref.load %arg1[%c19_176] : memref<72xf32, #tpu.memory_space<smem>>
    %759 = vector.broadcast %758 : f32 to vector<8x8xf32>
    %760 = arith.mulf %759, %637 : vector<8x8xf32>
    %761 = arith.addf %757, %760 : vector<8x8xf32>
    %c20_177 = arith.constant 20 : index
    %762 = memref.load %arg1[%c20_177] : memref<72xf32, #tpu.memory_space<smem>>
    %763 = vector.broadcast %762 : f32 to vector<8x8xf32>
    %764 = arith.mulf %763, %638 : vector<8x8xf32>
    %765 = arith.addf %761, %764 : vector<8x8xf32>
    %c21_178 = arith.constant 21 : index
    %766 = memref.load %arg1[%c21_178] : memref<72xf32, #tpu.memory_space<smem>>
    %767 = vector.broadcast %766 : f32 to vector<8x8xf32>
    %768 = arith.mulf %767, %640 : vector<8x8xf32>
    %769 = arith.addf %765, %768 : vector<8x8xf32>
    %c22_179 = arith.constant 22 : index
    %770 = memref.load %arg1[%c22_179] : memref<72xf32, #tpu.memory_space<smem>>
    %771 = vector.broadcast %770 : f32 to vector<8x8xf32>
    %772 = arith.mulf %771, %641 : vector<8x8xf32>
    %773 = arith.addf %769, %772 : vector<8x8xf32>
    %c23_180 = arith.constant 23 : index
    %774 = memref.load %arg1[%c23_180] : memref<72xf32, #tpu.memory_space<smem>>
    %775 = vector.broadcast %774 : f32 to vector<8x8xf32>
    %776 = arith.mulf %775, %642 : vector<8x8xf32>
    %777 = arith.addf %773, %776 : vector<8x8xf32>
    %c24_181 = arith.constant 24 : index
    %778 = memref.load %arg1[%c24_181] : memref<72xf32, #tpu.memory_space<smem>>
    %779 = vector.broadcast %778 : f32 to vector<8x8xf32>
    %780 = arith.mulf %779, %644 : vector<8x8xf32>
    %781 = arith.addf %777, %780 : vector<8x8xf32>
    %c25_182 = arith.constant 25 : index
    %782 = memref.load %arg1[%c25_182] : memref<72xf32, #tpu.memory_space<smem>>
    %783 = vector.broadcast %782 : f32 to vector<8x8xf32>
    %784 = arith.mulf %783, %645 : vector<8x8xf32>
    %785 = arith.addf %781, %784 : vector<8x8xf32>
    %c26_183 = arith.constant 26 : index
    %786 = memref.load %arg1[%c26_183] : memref<72xf32, #tpu.memory_space<smem>>
    %787 = vector.broadcast %786 : f32 to vector<8x8xf32>
    %788 = arith.mulf %787, %646 : vector<8x8xf32>
    %789 = arith.addf %785, %788 : vector<8x8xf32>
    %790 = arith.addf %174, %789 : vector<8x8xf32>
    %c54 = arith.constant 54 : index
    %791 = memref.load %arg1[%c54] : memref<72xf32, #tpu.memory_space<smem>>
    %792 = vector.broadcast %791 : f32 to vector<8x8xf32>
    %793 = arith.mulf %792, %631 : vector<8x8xf32>
    %c55 = arith.constant 55 : index
    %794 = memref.load %arg1[%c55] : memref<72xf32, #tpu.memory_space<smem>>
    %795 = vector.broadcast %794 : f32 to vector<8x8xf32>
    %796 = arith.mulf %795, %632 : vector<8x8xf32>
    %797 = arith.addf %793, %796 : vector<8x8xf32>
    %c56 = arith.constant 56 : index
    %798 = memref.load %arg1[%c56] : memref<72xf32, #tpu.memory_space<smem>>
    %799 = vector.broadcast %798 : f32 to vector<8x8xf32>
    %800 = arith.mulf %799, %633 : vector<8x8xf32>
    %801 = arith.addf %797, %800 : vector<8x8xf32>
    %c57 = arith.constant 57 : index
    %802 = memref.load %arg1[%c57] : memref<72xf32, #tpu.memory_space<smem>>
    %803 = vector.broadcast %802 : f32 to vector<8x8xf32>
    %804 = arith.mulf %803, %635 : vector<8x8xf32>
    %805 = arith.addf %801, %804 : vector<8x8xf32>
    %c58 = arith.constant 58 : index
    %806 = memref.load %arg1[%c58] : memref<72xf32, #tpu.memory_space<smem>>
    %807 = vector.broadcast %806 : f32 to vector<8x8xf32>
    %808 = arith.mulf %807, %636 : vector<8x8xf32>
    %809 = arith.addf %805, %808 : vector<8x8xf32>
    %c59 = arith.constant 59 : index
    %810 = memref.load %arg1[%c59] : memref<72xf32, #tpu.memory_space<smem>>
    %811 = vector.broadcast %810 : f32 to vector<8x8xf32>
    %812 = arith.mulf %811, %637 : vector<8x8xf32>
    %813 = arith.addf %809, %812 : vector<8x8xf32>
    %c60 = arith.constant 60 : index
    %814 = memref.load %arg1[%c60] : memref<72xf32, #tpu.memory_space<smem>>
    %815 = vector.broadcast %814 : f32 to vector<8x8xf32>
    %816 = arith.mulf %815, %639 : vector<8x8xf32>
    %817 = arith.addf %813, %816 : vector<8x8xf32>
    %c61 = arith.constant 61 : index
    %818 = memref.load %arg1[%c61] : memref<72xf32, #tpu.memory_space<smem>>
    %819 = vector.broadcast %818 : f32 to vector<8x8xf32>
    %820 = arith.mulf %819, %640 : vector<8x8xf32>
    %821 = arith.addf %817, %820 : vector<8x8xf32>
    %c62 = arith.constant 62 : index
    %822 = memref.load %arg1[%c62] : memref<72xf32, #tpu.memory_space<smem>>
    %823 = vector.broadcast %822 : f32 to vector<8x8xf32>
    %824 = arith.mulf %823, %641 : vector<8x8xf32>
    %825 = arith.addf %821, %824 : vector<8x8xf32>
    %826 = arith.addf %209, %825 : vector<8x8xf32>
    %c54_184 = arith.constant 54 : index
    %827 = memref.load %arg1[%c54_184] : memref<72xf32, #tpu.memory_space<smem>>
    %828 = vector.broadcast %827 : f32 to vector<8x8xf32>
    %829 = arith.mulf %828, %632 : vector<8x8xf32>
    %c55_185 = arith.constant 55 : index
    %830 = memref.load %arg1[%c55_185] : memref<72xf32, #tpu.memory_space<smem>>
    %831 = vector.broadcast %830 : f32 to vector<8x8xf32>
    %832 = arith.mulf %831, %633 : vector<8x8xf32>
    %833 = arith.addf %829, %832 : vector<8x8xf32>
    %c56_186 = arith.constant 56 : index
    %834 = memref.load %arg1[%c56_186] : memref<72xf32, #tpu.memory_space<smem>>
    %835 = vector.broadcast %834 : f32 to vector<8x8xf32>
    %836 = arith.mulf %835, %634 : vector<8x8xf32>
    %837 = arith.addf %833, %836 : vector<8x8xf32>
    %c57_187 = arith.constant 57 : index
    %838 = memref.load %arg1[%c57_187] : memref<72xf32, #tpu.memory_space<smem>>
    %839 = vector.broadcast %838 : f32 to vector<8x8xf32>
    %840 = arith.mulf %839, %636 : vector<8x8xf32>
    %841 = arith.addf %837, %840 : vector<8x8xf32>
    %c58_188 = arith.constant 58 : index
    %842 = memref.load %arg1[%c58_188] : memref<72xf32, #tpu.memory_space<smem>>
    %843 = vector.broadcast %842 : f32 to vector<8x8xf32>
    %844 = arith.mulf %843, %637 : vector<8x8xf32>
    %845 = arith.addf %841, %844 : vector<8x8xf32>
    %c59_189 = arith.constant 59 : index
    %846 = memref.load %arg1[%c59_189] : memref<72xf32, #tpu.memory_space<smem>>
    %847 = vector.broadcast %846 : f32 to vector<8x8xf32>
    %848 = arith.mulf %847, %638 : vector<8x8xf32>
    %849 = arith.addf %845, %848 : vector<8x8xf32>
    %c60_190 = arith.constant 60 : index
    %850 = memref.load %arg1[%c60_190] : memref<72xf32, #tpu.memory_space<smem>>
    %851 = vector.broadcast %850 : f32 to vector<8x8xf32>
    %852 = arith.mulf %851, %640 : vector<8x8xf32>
    %853 = arith.addf %849, %852 : vector<8x8xf32>
    %c61_191 = arith.constant 61 : index
    %854 = memref.load %arg1[%c61_191] : memref<72xf32, #tpu.memory_space<smem>>
    %855 = vector.broadcast %854 : f32 to vector<8x8xf32>
    %856 = arith.mulf %855, %641 : vector<8x8xf32>
    %857 = arith.addf %853, %856 : vector<8x8xf32>
    %c62_192 = arith.constant 62 : index
    %858 = memref.load %arg1[%c62_192] : memref<72xf32, #tpu.memory_space<smem>>
    %859 = vector.broadcast %858 : f32 to vector<8x8xf32>
    %860 = arith.mulf %859, %642 : vector<8x8xf32>
    %861 = arith.addf %857, %860 : vector<8x8xf32>
    %862 = arith.addf %244, %861 : vector<8x8xf32>
    %c54_193 = arith.constant 54 : index
    %863 = memref.load %arg1[%c54_193] : memref<72xf32, #tpu.memory_space<smem>>
    %864 = vector.broadcast %863 : f32 to vector<8x8xf32>
    %865 = arith.mulf %864, %635 : vector<8x8xf32>
    %c55_194 = arith.constant 55 : index
    %866 = memref.load %arg1[%c55_194] : memref<72xf32, #tpu.memory_space<smem>>
    %867 = vector.broadcast %866 : f32 to vector<8x8xf32>
    %868 = arith.mulf %867, %636 : vector<8x8xf32>
    %869 = arith.addf %865, %868 : vector<8x8xf32>
    %c56_195 = arith.constant 56 : index
    %870 = memref.load %arg1[%c56_195] : memref<72xf32, #tpu.memory_space<smem>>
    %871 = vector.broadcast %870 : f32 to vector<8x8xf32>
    %872 = arith.mulf %871, %637 : vector<8x8xf32>
    %873 = arith.addf %869, %872 : vector<8x8xf32>
    %c57_196 = arith.constant 57 : index
    %874 = memref.load %arg1[%c57_196] : memref<72xf32, #tpu.memory_space<smem>>
    %875 = vector.broadcast %874 : f32 to vector<8x8xf32>
    %876 = arith.mulf %875, %639 : vector<8x8xf32>
    %877 = arith.addf %873, %876 : vector<8x8xf32>
    %c58_197 = arith.constant 58 : index
    %878 = memref.load %arg1[%c58_197] : memref<72xf32, #tpu.memory_space<smem>>
    %879 = vector.broadcast %878 : f32 to vector<8x8xf32>
    %880 = arith.mulf %879, %640 : vector<8x8xf32>
    %881 = arith.addf %877, %880 : vector<8x8xf32>
    %c59_198 = arith.constant 59 : index
    %882 = memref.load %arg1[%c59_198] : memref<72xf32, #tpu.memory_space<smem>>
    %883 = vector.broadcast %882 : f32 to vector<8x8xf32>
    %884 = arith.mulf %883, %641 : vector<8x8xf32>
    %885 = arith.addf %881, %884 : vector<8x8xf32>
    %c60_199 = arith.constant 60 : index
    %886 = memref.load %arg1[%c60_199] : memref<72xf32, #tpu.memory_space<smem>>
    %887 = vector.broadcast %886 : f32 to vector<8x8xf32>
    %888 = arith.mulf %887, %643 : vector<8x8xf32>
    %889 = arith.addf %885, %888 : vector<8x8xf32>
    %c61_200 = arith.constant 61 : index
    %890 = memref.load %arg1[%c61_200] : memref<72xf32, #tpu.memory_space<smem>>
    %891 = vector.broadcast %890 : f32 to vector<8x8xf32>
    %892 = arith.mulf %891, %644 : vector<8x8xf32>
    %893 = arith.addf %889, %892 : vector<8x8xf32>
    %c62_201 = arith.constant 62 : index
    %894 = memref.load %arg1[%c62_201] : memref<72xf32, #tpu.memory_space<smem>>
    %895 = vector.broadcast %894 : f32 to vector<8x8xf32>
    %896 = arith.mulf %895, %645 : vector<8x8xf32>
    %897 = arith.addf %893, %896 : vector<8x8xf32>
    %898 = arith.addf %279, %897 : vector<8x8xf32>
    %c54_202 = arith.constant 54 : index
    %899 = memref.load %arg1[%c54_202] : memref<72xf32, #tpu.memory_space<smem>>
    %900 = vector.broadcast %899 : f32 to vector<8x8xf32>
    %901 = arith.mulf %900, %636 : vector<8x8xf32>
    %c55_203 = arith.constant 55 : index
    %902 = memref.load %arg1[%c55_203] : memref<72xf32, #tpu.memory_space<smem>>
    %903 = vector.broadcast %902 : f32 to vector<8x8xf32>
    %904 = arith.mulf %903, %637 : vector<8x8xf32>
    %905 = arith.addf %901, %904 : vector<8x8xf32>
    %c56_204 = arith.constant 56 : index
    %906 = memref.load %arg1[%c56_204] : memref<72xf32, #tpu.memory_space<smem>>
    %907 = vector.broadcast %906 : f32 to vector<8x8xf32>
    %908 = arith.mulf %907, %638 : vector<8x8xf32>
    %909 = arith.addf %905, %908 : vector<8x8xf32>
    %c57_205 = arith.constant 57 : index
    %910 = memref.load %arg1[%c57_205] : memref<72xf32, #tpu.memory_space<smem>>
    %911 = vector.broadcast %910 : f32 to vector<8x8xf32>
    %912 = arith.mulf %911, %640 : vector<8x8xf32>
    %913 = arith.addf %909, %912 : vector<8x8xf32>
    %c58_206 = arith.constant 58 : index
    %914 = memref.load %arg1[%c58_206] : memref<72xf32, #tpu.memory_space<smem>>
    %915 = vector.broadcast %914 : f32 to vector<8x8xf32>
    %916 = arith.mulf %915, %641 : vector<8x8xf32>
    %917 = arith.addf %913, %916 : vector<8x8xf32>
    %c59_207 = arith.constant 59 : index
    %918 = memref.load %arg1[%c59_207] : memref<72xf32, #tpu.memory_space<smem>>
    %919 = vector.broadcast %918 : f32 to vector<8x8xf32>
    %920 = arith.mulf %919, %642 : vector<8x8xf32>
    %921 = arith.addf %917, %920 : vector<8x8xf32>
    %c60_208 = arith.constant 60 : index
    %922 = memref.load %arg1[%c60_208] : memref<72xf32, #tpu.memory_space<smem>>
    %923 = vector.broadcast %922 : f32 to vector<8x8xf32>
    %924 = arith.mulf %923, %644 : vector<8x8xf32>
    %925 = arith.addf %921, %924 : vector<8x8xf32>
    %c61_209 = arith.constant 61 : index
    %926 = memref.load %arg1[%c61_209] : memref<72xf32, #tpu.memory_space<smem>>
    %927 = vector.broadcast %926 : f32 to vector<8x8xf32>
    %928 = arith.mulf %927, %645 : vector<8x8xf32>
    %929 = arith.addf %925, %928 : vector<8x8xf32>
    %c62_210 = arith.constant 62 : index
    %930 = memref.load %arg1[%c62_210] : memref<72xf32, #tpu.memory_space<smem>>
    %931 = vector.broadcast %930 : f32 to vector<8x8xf32>
    %932 = arith.mulf %931, %646 : vector<8x8xf32>
    %933 = arith.addf %929, %932 : vector<8x8xf32>
    %934 = arith.addf %314, %933 : vector<8x8xf32>
    %c0_211 = arith.constant 0 : index
    %c3_212 = arith.constant 3 : index
    %c0_213 = arith.constant 0 : index
    %c0_214 = arith.constant 0 : index
    %935 = vector.load %arg4[%c0_211, %c3_212, %c0_213, %c0_214] : memref<1x4x16x16xf32, #tpu.memory_space<vmem>>, vector<1x1x16x16xf32>
    %936 = vector.shape_cast %935 : vector<1x1x16x16xf32> to vector<16x16xf32>
    %cst_215 = arith.constant dense<0.000000e+00> : vector<16x8xf32>
    %937 = tpu.matmul %936, %2, %cst_215 {dimension_numbers = #tpu.dot_dimension_numbers<[1], [0], [0], [1], [0, 0, 1, 1], [], []>} : vector<16x16xf32>, vector<16x8xf32>, vector<16x8xf32> -> vector<16x8xf32>
    %cst_216 = arith.constant dense<0.000000e+00> : vector<32x8xf32>
    %938 = tpu.matmul %0, %937, %cst_216 {dimension_numbers = #tpu.dot_dimension_numbers<[1], [0], [0], [1], [0, 0, 1, 1], [], []>} : vector<32x16xf32>, vector<16x8xf32>, vector<32x8xf32> -> vector<32x8xf32>
    %cst_217 = arith.constant dense<0.000000e+00> : vector<16x8xf32>
    %939 = tpu.matmul %936, %4, %cst_217 {dimension_numbers = #tpu.dot_dimension_numbers<[1], [0], [0], [1], [0, 0, 1, 1], [], []>} : vector<16x16xf32>, vector<16x8xf32>, vector<16x8xf32> -> vector<16x8xf32>
    %cst_218 = arith.constant dense<0.000000e+00> : vector<32x8xf32>
    %940 = tpu.matmul %0, %939, %cst_218 {dimension_numbers = #tpu.dot_dimension_numbers<[1], [0], [0], [1], [0, 0, 1, 1], [], []>} : vector<32x16xf32>, vector<16x8xf32>, vector<32x8xf32> -> vector<32x8xf32>
    %cst_219 = arith.constant dense<0.000000e+00> : vector<16x8xf32>
    %941 = tpu.matmul %936, %6, %cst_219 {dimension_numbers = #tpu.dot_dimension_numbers<[1], [0], [0], [1], [0, 0, 1, 1], [], []>} : vector<16x16xf32>, vector<16x8xf32>, vector<16x8xf32> -> vector<16x8xf32>
    %cst_220 = arith.constant dense<0.000000e+00> : vector<32x8xf32>
    %942 = tpu.matmul %0, %941, %cst_220 {dimension_numbers = #tpu.dot_dimension_numbers<[1], [0], [0], [1], [0, 0, 1, 1], [], []>} : vector<32x16xf32>, vector<16x8xf32>, vector<32x8xf32> -> vector<32x8xf32>
    %cst_221 = arith.constant dense<0.000000e+00> : vector<16x8xf32>
    %943 = tpu.matmul %936, %8, %cst_221 {dimension_numbers = #tpu.dot_dimension_numbers<[1], [0], [0], [1], [0, 0, 1, 1], [], []>} : vector<16x16xf32>, vector<16x8xf32>, vector<16x8xf32> -> vector<16x8xf32>
    %cst_222 = arith.constant dense<0.000000e+00> : vector<32x8xf32>
    %944 = tpu.matmul %0, %943, %cst_222 {dimension_numbers = #tpu.dot_dimension_numbers<[1], [0], [0], [1], [0, 0, 1, 1], [], []>} : vector<32x16xf32>, vector<16x8xf32>, vector<32x8xf32> -> vector<32x8xf32>
    %945 = vector.extract_strided_slice %938 {offsets = [0, 0], sizes = [8, 8], strides = [1, 1]} : vector<32x8xf32> to vector<8x8xf32>
    %946 = vector.extract_strided_slice %940 {offsets = [0, 0], sizes = [8, 8], strides = [1, 1]} : vector<32x8xf32> to vector<8x8xf32>
    %947 = vector.extract_strided_slice %942 {offsets = [0, 0], sizes = [8, 8], strides = [1, 1]} : vector<32x8xf32> to vector<8x8xf32>
    %948 = vector.extract_strided_slice %944 {offsets = [0, 0], sizes = [8, 8], strides = [1, 1]} : vector<32x8xf32> to vector<8x8xf32>
    %949 = vector.extract_strided_slice %938 {offsets = [8, 0], sizes = [8, 8], strides = [1, 1]} : vector<32x8xf32> to vector<8x8xf32>
    %950 = vector.extract_strided_slice %940 {offsets = [8, 0], sizes = [8, 8], strides = [1, 1]} : vector<32x8xf32> to vector<8x8xf32>
    %951 = vector.extract_strided_slice %942 {offsets = [8, 0], sizes = [8, 8], strides = [1, 1]} : vector<32x8xf32> to vector<8x8xf32>
    %952 = vector.extract_strided_slice %944 {offsets = [8, 0], sizes = [8, 8], strides = [1, 1]} : vector<32x8xf32> to vector<8x8xf32>
    %953 = vector.extract_strided_slice %938 {offsets = [16, 0], sizes = [8, 8], strides = [1, 1]} : vector<32x8xf32> to vector<8x8xf32>
    %954 = vector.extract_strided_slice %940 {offsets = [16, 0], sizes = [8, 8], strides = [1, 1]} : vector<32x8xf32> to vector<8x8xf32>
    %955 = vector.extract_strided_slice %942 {offsets = [16, 0], sizes = [8, 8], strides = [1, 1]} : vector<32x8xf32> to vector<8x8xf32>
    %956 = vector.extract_strided_slice %944 {offsets = [16, 0], sizes = [8, 8], strides = [1, 1]} : vector<32x8xf32> to vector<8x8xf32>
    %957 = vector.extract_strided_slice %938 {offsets = [24, 0], sizes = [8, 8], strides = [1, 1]} : vector<32x8xf32> to vector<8x8xf32>
    %958 = vector.extract_strided_slice %940 {offsets = [24, 0], sizes = [8, 8], strides = [1, 1]} : vector<32x8xf32> to vector<8x8xf32>
    %959 = vector.extract_strided_slice %942 {offsets = [24, 0], sizes = [8, 8], strides = [1, 1]} : vector<32x8xf32> to vector<8x8xf32>
    %960 = vector.extract_strided_slice %944 {offsets = [24, 0], sizes = [8, 8], strides = [1, 1]} : vector<32x8xf32> to vector<8x8xf32>
    %c27 = arith.constant 27 : index
    %961 = memref.load %arg1[%c27] : memref<72xf32, #tpu.memory_space<smem>>
    %962 = vector.broadcast %961 : f32 to vector<8x8xf32>
    %963 = arith.mulf %962, %945 : vector<8x8xf32>
    %c28 = arith.constant 28 : index
    %964 = memref.load %arg1[%c28] : memref<72xf32, #tpu.memory_space<smem>>
    %965 = vector.broadcast %964 : f32 to vector<8x8xf32>
    %966 = arith.mulf %965, %946 : vector<8x8xf32>
    %967 = arith.addf %963, %966 : vector<8x8xf32>
    %c29 = arith.constant 29 : index
    %968 = memref.load %arg1[%c29] : memref<72xf32, #tpu.memory_space<smem>>
    %969 = vector.broadcast %968 : f32 to vector<8x8xf32>
    %970 = arith.mulf %969, %947 : vector<8x8xf32>
    %971 = arith.addf %967, %970 : vector<8x8xf32>
    %c30 = arith.constant 30 : index
    %972 = memref.load %arg1[%c30] : memref<72xf32, #tpu.memory_space<smem>>
    %973 = vector.broadcast %972 : f32 to vector<8x8xf32>
    %974 = arith.mulf %973, %949 : vector<8x8xf32>
    %975 = arith.addf %971, %974 : vector<8x8xf32>
    %c31 = arith.constant 31 : index
    %976 = memref.load %arg1[%c31] : memref<72xf32, #tpu.memory_space<smem>>
    %977 = vector.broadcast %976 : f32 to vector<8x8xf32>
    %978 = arith.mulf %977, %950 : vector<8x8xf32>
    %979 = arith.addf %975, %978 : vector<8x8xf32>
    %c32 = arith.constant 32 : index
    %980 = memref.load %arg1[%c32] : memref<72xf32, #tpu.memory_space<smem>>
    %981 = vector.broadcast %980 : f32 to vector<8x8xf32>
    %982 = arith.mulf %981, %951 : vector<8x8xf32>
    %983 = arith.addf %979, %982 : vector<8x8xf32>
    %c33 = arith.constant 33 : index
    %984 = memref.load %arg1[%c33] : memref<72xf32, #tpu.memory_space<smem>>
    %985 = vector.broadcast %984 : f32 to vector<8x8xf32>
    %986 = arith.mulf %985, %953 : vector<8x8xf32>
    %987 = arith.addf %983, %986 : vector<8x8xf32>
    %c34 = arith.constant 34 : index
    %988 = memref.load %arg1[%c34] : memref<72xf32, #tpu.memory_space<smem>>
    %989 = vector.broadcast %988 : f32 to vector<8x8xf32>
    %990 = arith.mulf %989, %954 : vector<8x8xf32>
    %991 = arith.addf %987, %990 : vector<8x8xf32>
    %c35 = arith.constant 35 : index
    %992 = memref.load %arg1[%c35] : memref<72xf32, #tpu.memory_space<smem>>
    %993 = vector.broadcast %992 : f32 to vector<8x8xf32>
    %994 = arith.mulf %993, %955 : vector<8x8xf32>
    %995 = arith.addf %991, %994 : vector<8x8xf32>
    %996 = arith.addf %375, %995 : vector<8x8xf32>
    %c27_223 = arith.constant 27 : index
    %997 = memref.load %arg1[%c27_223] : memref<72xf32, #tpu.memory_space<smem>>
    %998 = vector.broadcast %997 : f32 to vector<8x8xf32>
    %999 = arith.mulf %998, %946 : vector<8x8xf32>
    %c28_224 = arith.constant 28 : index
    %1000 = memref.load %arg1[%c28_224] : memref<72xf32, #tpu.memory_space<smem>>
    %1001 = vector.broadcast %1000 : f32 to vector<8x8xf32>
    %1002 = arith.mulf %1001, %947 : vector<8x8xf32>
    %1003 = arith.addf %999, %1002 : vector<8x8xf32>
    %c29_225 = arith.constant 29 : index
    %1004 = memref.load %arg1[%c29_225] : memref<72xf32, #tpu.memory_space<smem>>
    %1005 = vector.broadcast %1004 : f32 to vector<8x8xf32>
    %1006 = arith.mulf %1005, %948 : vector<8x8xf32>
    %1007 = arith.addf %1003, %1006 : vector<8x8xf32>
    %c30_226 = arith.constant 30 : index
    %1008 = memref.load %arg1[%c30_226] : memref<72xf32, #tpu.memory_space<smem>>
    %1009 = vector.broadcast %1008 : f32 to vector<8x8xf32>
    %1010 = arith.mulf %1009, %950 : vector<8x8xf32>
    %1011 = arith.addf %1007, %1010 : vector<8x8xf32>
    %c31_227 = arith.constant 31 : index
    %1012 = memref.load %arg1[%c31_227] : memref<72xf32, #tpu.memory_space<smem>>
    %1013 = vector.broadcast %1012 : f32 to vector<8x8xf32>
    %1014 = arith.mulf %1013, %951 : vector<8x8xf32>
    %1015 = arith.addf %1011, %1014 : vector<8x8xf32>
    %c32_228 = arith.constant 32 : index
    %1016 = memref.load %arg1[%c32_228] : memref<72xf32, #tpu.memory_space<smem>>
    %1017 = vector.broadcast %1016 : f32 to vector<8x8xf32>
    %1018 = arith.mulf %1017, %952 : vector<8x8xf32>
    %1019 = arith.addf %1015, %1018 : vector<8x8xf32>
    %c33_229 = arith.constant 33 : index
    %1020 = memref.load %arg1[%c33_229] : memref<72xf32, #tpu.memory_space<smem>>
    %1021 = vector.broadcast %1020 : f32 to vector<8x8xf32>
    %1022 = arith.mulf %1021, %954 : vector<8x8xf32>
    %1023 = arith.addf %1019, %1022 : vector<8x8xf32>
    %c34_230 = arith.constant 34 : index
    %1024 = memref.load %arg1[%c34_230] : memref<72xf32, #tpu.memory_space<smem>>
    %1025 = vector.broadcast %1024 : f32 to vector<8x8xf32>
    %1026 = arith.mulf %1025, %955 : vector<8x8xf32>
    %1027 = arith.addf %1023, %1026 : vector<8x8xf32>
    %c35_231 = arith.constant 35 : index
    %1028 = memref.load %arg1[%c35_231] : memref<72xf32, #tpu.memory_space<smem>>
    %1029 = vector.broadcast %1028 : f32 to vector<8x8xf32>
    %1030 = arith.mulf %1029, %956 : vector<8x8xf32>
    %1031 = arith.addf %1027, %1030 : vector<8x8xf32>
    %1032 = arith.addf %410, %1031 : vector<8x8xf32>
    %c27_232 = arith.constant 27 : index
    %1033 = memref.load %arg1[%c27_232] : memref<72xf32, #tpu.memory_space<smem>>
    %1034 = vector.broadcast %1033 : f32 to vector<8x8xf32>
    %1035 = arith.mulf %1034, %949 : vector<8x8xf32>
    %c28_233 = arith.constant 28 : index
    %1036 = memref.load %arg1[%c28_233] : memref<72xf32, #tpu.memory_space<smem>>
    %1037 = vector.broadcast %1036 : f32 to vector<8x8xf32>
    %1038 = arith.mulf %1037, %950 : vector<8x8xf32>
    %1039 = arith.addf %1035, %1038 : vector<8x8xf32>
    %c29_234 = arith.constant 29 : index
    %1040 = memref.load %arg1[%c29_234] : memref<72xf32, #tpu.memory_space<smem>>
    %1041 = vector.broadcast %1040 : f32 to vector<8x8xf32>
    %1042 = arith.mulf %1041, %951 : vector<8x8xf32>
    %1043 = arith.addf %1039, %1042 : vector<8x8xf32>
    %c30_235 = arith.constant 30 : index
    %1044 = memref.load %arg1[%c30_235] : memref<72xf32, #tpu.memory_space<smem>>
    %1045 = vector.broadcast %1044 : f32 to vector<8x8xf32>
    %1046 = arith.mulf %1045, %953 : vector<8x8xf32>
    %1047 = arith.addf %1043, %1046 : vector<8x8xf32>
    %c31_236 = arith.constant 31 : index
    %1048 = memref.load %arg1[%c31_236] : memref<72xf32, #tpu.memory_space<smem>>
    %1049 = vector.broadcast %1048 : f32 to vector<8x8xf32>
    %1050 = arith.mulf %1049, %954 : vector<8x8xf32>
    %1051 = arith.addf %1047, %1050 : vector<8x8xf32>
    %c32_237 = arith.constant 32 : index
    %1052 = memref.load %arg1[%c32_237] : memref<72xf32, #tpu.memory_space<smem>>
    %1053 = vector.broadcast %1052 : f32 to vector<8x8xf32>
    %1054 = arith.mulf %1053, %955 : vector<8x8xf32>
    %1055 = arith.addf %1051, %1054 : vector<8x8xf32>
    %c33_238 = arith.constant 33 : index
    %1056 = memref.load %arg1[%c33_238] : memref<72xf32, #tpu.memory_space<smem>>
    %1057 = vector.broadcast %1056 : f32 to vector<8x8xf32>
    %1058 = arith.mulf %1057, %957 : vector<8x8xf32>
    %1059 = arith.addf %1055, %1058 : vector<8x8xf32>
    %c34_239 = arith.constant 34 : index
    %1060 = memref.load %arg1[%c34_239] : memref<72xf32, #tpu.memory_space<smem>>
    %1061 = vector.broadcast %1060 : f32 to vector<8x8xf32>
    %1062 = arith.mulf %1061, %958 : vector<8x8xf32>
    %1063 = arith.addf %1059, %1062 : vector<8x8xf32>
    %c35_240 = arith.constant 35 : index
    %1064 = memref.load %arg1[%c35_240] : memref<72xf32, #tpu.memory_space<smem>>
    %1065 = vector.broadcast %1064 : f32 to vector<8x8xf32>
    %1066 = arith.mulf %1065, %959 : vector<8x8xf32>
    %1067 = arith.addf %1063, %1066 : vector<8x8xf32>
    %1068 = arith.addf %445, %1067 : vector<8x8xf32>
    %c27_241 = arith.constant 27 : index
    %1069 = memref.load %arg1[%c27_241] : memref<72xf32, #tpu.memory_space<smem>>
    %1070 = vector.broadcast %1069 : f32 to vector<8x8xf32>
    %1071 = arith.mulf %1070, %950 : vector<8x8xf32>
    %c28_242 = arith.constant 28 : index
    %1072 = memref.load %arg1[%c28_242] : memref<72xf32, #tpu.memory_space<smem>>
    %1073 = vector.broadcast %1072 : f32 to vector<8x8xf32>
    %1074 = arith.mulf %1073, %951 : vector<8x8xf32>
    %1075 = arith.addf %1071, %1074 : vector<8x8xf32>
    %c29_243 = arith.constant 29 : index
    %1076 = memref.load %arg1[%c29_243] : memref<72xf32, #tpu.memory_space<smem>>
    %1077 = vector.broadcast %1076 : f32 to vector<8x8xf32>
    %1078 = arith.mulf %1077, %952 : vector<8x8xf32>
    %1079 = arith.addf %1075, %1078 : vector<8x8xf32>
    %c30_244 = arith.constant 30 : index
    %1080 = memref.load %arg1[%c30_244] : memref<72xf32, #tpu.memory_space<smem>>
    %1081 = vector.broadcast %1080 : f32 to vector<8x8xf32>
    %1082 = arith.mulf %1081, %954 : vector<8x8xf32>
    %1083 = arith.addf %1079, %1082 : vector<8x8xf32>
    %c31_245 = arith.constant 31 : index
    %1084 = memref.load %arg1[%c31_245] : memref<72xf32, #tpu.memory_space<smem>>
    %1085 = vector.broadcast %1084 : f32 to vector<8x8xf32>
    %1086 = arith.mulf %1085, %955 : vector<8x8xf32>
    %1087 = arith.addf %1083, %1086 : vector<8x8xf32>
    %c32_246 = arith.constant 32 : index
    %1088 = memref.load %arg1[%c32_246] : memref<72xf32, #tpu.memory_space<smem>>
    %1089 = vector.broadcast %1088 : f32 to vector<8x8xf32>
    %1090 = arith.mulf %1089, %956 : vector<8x8xf32>
    %1091 = arith.addf %1087, %1090 : vector<8x8xf32>
    %c33_247 = arith.constant 33 : index
    %1092 = memref.load %arg1[%c33_247] : memref<72xf32, #tpu.memory_space<smem>>
    %1093 = vector.broadcast %1092 : f32 to vector<8x8xf32>
    %1094 = arith.mulf %1093, %958 : vector<8x8xf32>
    %1095 = arith.addf %1091, %1094 : vector<8x8xf32>
    %c34_248 = arith.constant 34 : index
    %1096 = memref.load %arg1[%c34_248] : memref<72xf32, #tpu.memory_space<smem>>
    %1097 = vector.broadcast %1096 : f32 to vector<8x8xf32>
    %1098 = arith.mulf %1097, %959 : vector<8x8xf32>
    %1099 = arith.addf %1095, %1098 : vector<8x8xf32>
    %c35_249 = arith.constant 35 : index
    %1100 = memref.load %arg1[%c35_249] : memref<72xf32, #tpu.memory_space<smem>>
    %1101 = vector.broadcast %1100 : f32 to vector<8x8xf32>
    %1102 = arith.mulf %1101, %960 : vector<8x8xf32>
    %1103 = arith.addf %1099, %1102 : vector<8x8xf32>
    %1104 = arith.addf %480, %1103 : vector<8x8xf32>
    %c63 = arith.constant 63 : index
    %1105 = memref.load %arg1[%c63] : memref<72xf32, #tpu.memory_space<smem>>
    %1106 = vector.broadcast %1105 : f32 to vector<8x8xf32>
    %1107 = arith.mulf %1106, %945 : vector<8x8xf32>
    %c64 = arith.constant 64 : index
    %1108 = memref.load %arg1[%c64] : memref<72xf32, #tpu.memory_space<smem>>
    %1109 = vector.broadcast %1108 : f32 to vector<8x8xf32>
    %1110 = arith.mulf %1109, %946 : vector<8x8xf32>
    %1111 = arith.addf %1107, %1110 : vector<8x8xf32>
    %c65 = arith.constant 65 : index
    %1112 = memref.load %arg1[%c65] : memref<72xf32, #tpu.memory_space<smem>>
    %1113 = vector.broadcast %1112 : f32 to vector<8x8xf32>
    %1114 = arith.mulf %1113, %947 : vector<8x8xf32>
    %1115 = arith.addf %1111, %1114 : vector<8x8xf32>
    %c66 = arith.constant 66 : index
    %1116 = memref.load %arg1[%c66] : memref<72xf32, #tpu.memory_space<smem>>
    %1117 = vector.broadcast %1116 : f32 to vector<8x8xf32>
    %1118 = arith.mulf %1117, %949 : vector<8x8xf32>
    %1119 = arith.addf %1115, %1118 : vector<8x8xf32>
    %c67 = arith.constant 67 : index
    %1120 = memref.load %arg1[%c67] : memref<72xf32, #tpu.memory_space<smem>>
    %1121 = vector.broadcast %1120 : f32 to vector<8x8xf32>
    %1122 = arith.mulf %1121, %950 : vector<8x8xf32>
    %1123 = arith.addf %1119, %1122 : vector<8x8xf32>
    %c68 = arith.constant 68 : index
    %1124 = memref.load %arg1[%c68] : memref<72xf32, #tpu.memory_space<smem>>
    %1125 = vector.broadcast %1124 : f32 to vector<8x8xf32>
    %1126 = arith.mulf %1125, %951 : vector<8x8xf32>
    %1127 = arith.addf %1123, %1126 : vector<8x8xf32>
    %c69 = arith.constant 69 : index
    %1128 = memref.load %arg1[%c69] : memref<72xf32, #tpu.memory_space<smem>>
    %1129 = vector.broadcast %1128 : f32 to vector<8x8xf32>
    %1130 = arith.mulf %1129, %953 : vector<8x8xf32>
    %1131 = arith.addf %1127, %1130 : vector<8x8xf32>
    %c70 = arith.constant 70 : index
    %1132 = memref.load %arg1[%c70] : memref<72xf32, #tpu.memory_space<smem>>
    %1133 = vector.broadcast %1132 : f32 to vector<8x8xf32>
    %1134 = arith.mulf %1133, %954 : vector<8x8xf32>
    %1135 = arith.addf %1131, %1134 : vector<8x8xf32>
    %c71 = arith.constant 71 : index
    %1136 = memref.load %arg1[%c71] : memref<72xf32, #tpu.memory_space<smem>>
    %1137 = vector.broadcast %1136 : f32 to vector<8x8xf32>
    %1138 = arith.mulf %1137, %955 : vector<8x8xf32>
    %1139 = arith.addf %1135, %1138 : vector<8x8xf32>
    %1140 = arith.addf %515, %1139 : vector<8x8xf32>
    %c63_250 = arith.constant 63 : index
    %1141 = memref.load %arg1[%c63_250] : memref<72xf32, #tpu.memory_space<smem>>
    %1142 = vector.broadcast %1141 : f32 to vector<8x8xf32>
    %1143 = arith.mulf %1142, %946 : vector<8x8xf32>
    %c64_251 = arith.constant 64 : index
    %1144 = memref.load %arg1[%c64_251] : memref<72xf32, #tpu.memory_space<smem>>
    %1145 = vector.broadcast %1144 : f32 to vector<8x8xf32>
    %1146 = arith.mulf %1145, %947 : vector<8x8xf32>
    %1147 = arith.addf %1143, %1146 : vector<8x8xf32>
    %c65_252 = arith.constant 65 : index
    %1148 = memref.load %arg1[%c65_252] : memref<72xf32, #tpu.memory_space<smem>>
    %1149 = vector.broadcast %1148 : f32 to vector<8x8xf32>
    %1150 = arith.mulf %1149, %948 : vector<8x8xf32>
    %1151 = arith.addf %1147, %1150 : vector<8x8xf32>
    %c66_253 = arith.constant 66 : index
    %1152 = memref.load %arg1[%c66_253] : memref<72xf32, #tpu.memory_space<smem>>
    %1153 = vector.broadcast %1152 : f32 to vector<8x8xf32>
    %1154 = arith.mulf %1153, %950 : vector<8x8xf32>
    %1155 = arith.addf %1151, %1154 : vector<8x8xf32>
    %c67_254 = arith.constant 67 : index
    %1156 = memref.load %arg1[%c67_254] : memref<72xf32, #tpu.memory_space<smem>>
    %1157 = vector.broadcast %1156 : f32 to vector<8x8xf32>
    %1158 = arith.mulf %1157, %951 : vector<8x8xf32>
    %1159 = arith.addf %1155, %1158 : vector<8x8xf32>
    %c68_255 = arith.constant 68 : index
    %1160 = memref.load %arg1[%c68_255] : memref<72xf32, #tpu.memory_space<smem>>
    %1161 = vector.broadcast %1160 : f32 to vector<8x8xf32>
    %1162 = arith.mulf %1161, %952 : vector<8x8xf32>
    %1163 = arith.addf %1159, %1162 : vector<8x8xf32>
    %c69_256 = arith.constant 69 : index
    %1164 = memref.load %arg1[%c69_256] : memref<72xf32, #tpu.memory_space<smem>>
    %1165 = vector.broadcast %1164 : f32 to vector<8x8xf32>
    %1166 = arith.mulf %1165, %954 : vector<8x8xf32>
    %1167 = arith.addf %1163, %1166 : vector<8x8xf32>
    %c70_257 = arith.constant 70 : index
    %1168 = memref.load %arg1[%c70_257] : memref<72xf32, #tpu.memory_space<smem>>
    %1169 = vector.broadcast %1168 : f32 to vector<8x8xf32>
    %1170 = arith.mulf %1169, %955 : vector<8x8xf32>
    %1171 = arith.addf %1167, %1170 : vector<8x8xf32>
    %c71_258 = arith.constant 71 : index
    %1172 = memref.load %arg1[%c71_258] : memref<72xf32, #tpu.memory_space<smem>>
    %1173 = vector.broadcast %1172 : f32 to vector<8x8xf32>
    %1174 = arith.mulf %1173, %956 : vector<8x8xf32>
    %1175 = arith.addf %1171, %1174 : vector<8x8xf32>
    %1176 = arith.addf %550, %1175 : vector<8x8xf32>
    %c63_259 = arith.constant 63 : index
    %1177 = memref.load %arg1[%c63_259] : memref<72xf32, #tpu.memory_space<smem>>
    %1178 = vector.broadcast %1177 : f32 to vector<8x8xf32>
    %1179 = arith.mulf %1178, %949 : vector<8x8xf32>
    %c64_260 = arith.constant 64 : index
    %1180 = memref.load %arg1[%c64_260] : memref<72xf32, #tpu.memory_space<smem>>
    %1181 = vector.broadcast %1180 : f32 to vector<8x8xf32>
    %1182 = arith.mulf %1181, %950 : vector<8x8xf32>
    %1183 = arith.addf %1179, %1182 : vector<8x8xf32>
    %c65_261 = arith.constant 65 : index
    %1184 = memref.load %arg1[%c65_261] : memref<72xf32, #tpu.memory_space<smem>>
    %1185 = vector.broadcast %1184 : f32 to vector<8x8xf32>
    %1186 = arith.mulf %1185, %951 : vector<8x8xf32>
    %1187 = arith.addf %1183, %1186 : vector<8x8xf32>
    %c66_262 = arith.constant 66 : index
    %1188 = memref.load %arg1[%c66_262] : memref<72xf32, #tpu.memory_space<smem>>
    %1189 = vector.broadcast %1188 : f32 to vector<8x8xf32>
    %1190 = arith.mulf %1189, %953 : vector<8x8xf32>
    %1191 = arith.addf %1187, %1190 : vector<8x8xf32>
    %c67_263 = arith.constant 67 : index
    %1192 = memref.load %arg1[%c67_263] : memref<72xf32, #tpu.memory_space<smem>>
    %1193 = vector.broadcast %1192 : f32 to vector<8x8xf32>
    %1194 = arith.mulf %1193, %954 : vector<8x8xf32>
    %1195 = arith.addf %1191, %1194 : vector<8x8xf32>
    %c68_264 = arith.constant 68 : index
    %1196 = memref.load %arg1[%c68_264] : memref<72xf32, #tpu.memory_space<smem>>
    %1197 = vector.broadcast %1196 : f32 to vector<8x8xf32>
    %1198 = arith.mulf %1197, %955 : vector<8x8xf32>
    %1199 = arith.addf %1195, %1198 : vector<8x8xf32>
    %c69_265 = arith.constant 69 : index
    %1200 = memref.load %arg1[%c69_265] : memref<72xf32, #tpu.memory_space<smem>>
    %1201 = vector.broadcast %1200 : f32 to vector<8x8xf32>
    %1202 = arith.mulf %1201, %957 : vector<8x8xf32>
    %1203 = arith.addf %1199, %1202 : vector<8x8xf32>
    %c70_266 = arith.constant 70 : index
    %1204 = memref.load %arg1[%c70_266] : memref<72xf32, #tpu.memory_space<smem>>
    %1205 = vector.broadcast %1204 : f32 to vector<8x8xf32>
    %1206 = arith.mulf %1205, %958 : vector<8x8xf32>
    %1207 = arith.addf %1203, %1206 : vector<8x8xf32>
    %c71_267 = arith.constant 71 : index
    %1208 = memref.load %arg1[%c71_267] : memref<72xf32, #tpu.memory_space<smem>>
    %1209 = vector.broadcast %1208 : f32 to vector<8x8xf32>
    %1210 = arith.mulf %1209, %959 : vector<8x8xf32>
    %1211 = arith.addf %1207, %1210 : vector<8x8xf32>
    %1212 = arith.addf %585, %1211 : vector<8x8xf32>
    %c63_268 = arith.constant 63 : index
    %1213 = memref.load %arg1[%c63_268] : memref<72xf32, #tpu.memory_space<smem>>
    %1214 = vector.broadcast %1213 : f32 to vector<8x8xf32>
    %1215 = arith.mulf %1214, %950 : vector<8x8xf32>
    %c64_269 = arith.constant 64 : index
    %1216 = memref.load %arg1[%c64_269] : memref<72xf32, #tpu.memory_space<smem>>
    %1217 = vector.broadcast %1216 : f32 to vector<8x8xf32>
    %1218 = arith.mulf %1217, %951 : vector<8x8xf32>
    %1219 = arith.addf %1215, %1218 : vector<8x8xf32>
    %c65_270 = arith.constant 65 : index
    %1220 = memref.load %arg1[%c65_270] : memref<72xf32, #tpu.memory_space<smem>>
    %1221 = vector.broadcast %1220 : f32 to vector<8x8xf32>
    %1222 = arith.mulf %1221, %952 : vector<8x8xf32>
    %1223 = arith.addf %1219, %1222 : vector<8x8xf32>
    %c66_271 = arith.constant 66 : index
    %1224 = memref.load %arg1[%c66_271] : memref<72xf32, #tpu.memory_space<smem>>
    %1225 = vector.broadcast %1224 : f32 to vector<8x8xf32>
    %1226 = arith.mulf %1225, %954 : vector<8x8xf32>
    %1227 = arith.addf %1223, %1226 : vector<8x8xf32>
    %c67_272 = arith.constant 67 : index
    %1228 = memref.load %arg1[%c67_272] : memref<72xf32, #tpu.memory_space<smem>>
    %1229 = vector.broadcast %1228 : f32 to vector<8x8xf32>
    %1230 = arith.mulf %1229, %955 : vector<8x8xf32>
    %1231 = arith.addf %1227, %1230 : vector<8x8xf32>
    %c68_273 = arith.constant 68 : index
    %1232 = memref.load %arg1[%c68_273] : memref<72xf32, #tpu.memory_space<smem>>
    %1233 = vector.broadcast %1232 : f32 to vector<8x8xf32>
    %1234 = arith.mulf %1233, %956 : vector<8x8xf32>
    %1235 = arith.addf %1231, %1234 : vector<8x8xf32>
    %c69_274 = arith.constant 69 : index
    %1236 = memref.load %arg1[%c69_274] : memref<72xf32, #tpu.memory_space<smem>>
    %1237 = vector.broadcast %1236 : f32 to vector<8x8xf32>
    %1238 = arith.mulf %1237, %958 : vector<8x8xf32>
    %1239 = arith.addf %1235, %1238 : vector<8x8xf32>
    %c70_275 = arith.constant 70 : index
    %1240 = memref.load %arg1[%c70_275] : memref<72xf32, #tpu.memory_space<smem>>
    %1241 = vector.broadcast %1240 : f32 to vector<8x8xf32>
    %1242 = arith.mulf %1241, %959 : vector<8x8xf32>
    %1243 = arith.addf %1239, %1242 : vector<8x8xf32>
    %c71_276 = arith.constant 71 : index
    %1244 = memref.load %arg1[%c71_276] : memref<72xf32, #tpu.memory_space<smem>>
    %1245 = vector.broadcast %1244 : f32 to vector<8x8xf32>
    %1246 = arith.mulf %1245, %960 : vector<8x8xf32>
    %1247 = arith.addf %1243, %1246 : vector<8x8xf32>
    %1248 = arith.addf %620, %1247 : vector<8x8xf32>
    %1249 = arith.addf %682, %996 : vector<8x8xf32>
    %c0_277 = arith.constant 0 : index
    %c0_278 = arith.constant 0 : index
    %c0_279 = arith.constant 0 : index
    %c0_280 = arith.constant 0 : index
    %1250 = vector.load %arg5[%c0_277, %c0_278, %c0_279, %c0_280] : memref<1x8x8x8xf32, #tpu.memory_space<vmem>>, vector<1x1x8x8xf32>
    %1251 = vector.shape_cast %1250 : vector<1x1x8x8xf32> to vector<8x8xf32>
    %1252 = vector.shape_cast %1249 : vector<8x8xf32> to vector<1x1x8x8xf32>
    tpu.vector_store %arg5[%c0_277, %c0_278, %c0_279, %c0_280], %1252 {strides = array<i32>} : memref<1x8x8x8xf32, #tpu.memory_space<vmem>>, vector<1x1x8x8xf32>,
    %1253 = arith.addf %718, %1032 : vector<8x8xf32>
    %c0_281 = arith.constant 0 : index
    %c1_282 = arith.constant 1 : index
    %c0_283 = arith.constant 0 : index
    %c0_284 = arith.constant 0 : index
    %1254 = vector.load %arg5[%c0_281, %c1_282, %c0_283, %c0_284] : memref<1x8x8x8xf32, #tpu.memory_space<vmem>>, vector<1x1x8x8xf32>
    %1255 = vector.shape_cast %1254 : vector<1x1x8x8xf32> to vector<8x8xf32>
    %1256 = vector.shape_cast %1253 : vector<8x8xf32> to vector<1x1x8x8xf32>
    tpu.vector_store %arg5[%c0_281, %c1_282, %c0_283, %c0_284], %1256 {strides = array<i32>} : memref<1x8x8x8xf32, #tpu.memory_space<vmem>>, vector<1x1x8x8xf32>,
    %1257 = arith.addf %754, %1068 : vector<8x8xf32>
    %c0_285 = arith.constant 0 : index
    %c2_286 = arith.constant 2 : index
    %c0_287 = arith.constant 0 : index
    %c0_288 = arith.constant 0 : index
    %1258 = vector.load %arg5[%c0_285, %c2_286, %c0_287, %c0_288] : memref<1x8x8x8xf32, #tpu.memory_space<vmem>>, vector<1x1x8x8xf32>
    %1259 = vector.shape_cast %1258 : vector<1x1x8x8xf32> to vector<8x8xf32>
    %1260 = vector.shape_cast %1257 : vector<8x8xf32> to vector<1x1x8x8xf32>
    tpu.vector_store %arg5[%c0_285, %c2_286, %c0_287, %c0_288], %1260 {strides = array<i32>} : memref<1x8x8x8xf32, #tpu.memory_space<vmem>>, vector<1x1x8x8xf32>,
    %1261 = arith.addf %790, %1104 : vector<8x8xf32>
    %c0_289 = arith.constant 0 : index
    %c3_290 = arith.constant 3 : index
    %c0_291 = arith.constant 0 : index
    %c0_292 = arith.constant 0 : index
    %1262 = vector.load %arg5[%c0_289, %c3_290, %c0_291, %c0_292] : memref<1x8x8x8xf32, #tpu.memory_space<vmem>>, vector<1x1x8x8xf32>
    %1263 = vector.shape_cast %1262 : vector<1x1x8x8xf32> to vector<8x8xf32>
    %1264 = vector.shape_cast %1261 : vector<8x8xf32> to vector<1x1x8x8xf32>
    tpu.vector_store %arg5[%c0_289, %c3_290, %c0_291, %c0_292], %1264 {strides = array<i32>} : memref<1x8x8x8xf32, #tpu.memory_space<vmem>>, vector<1x1x8x8xf32>,
    %1265 = arith.addf %826, %1140 : vector<8x8xf32>
    %c0_293 = arith.constant 0 : index
    %c4_294 = arith.constant 4 : index
    %c0_295 = arith.constant 0 : index
    %c0_296 = arith.constant 0 : index
    %1266 = vector.load %arg5[%c0_293, %c4_294, %c0_295, %c0_296] : memref<1x8x8x8xf32, #tpu.memory_space<vmem>>, vector<1x1x8x8xf32>
    %1267 = vector.shape_cast %1266 : vector<1x1x8x8xf32> to vector<8x8xf32>
    %1268 = vector.shape_cast %1265 : vector<8x8xf32> to vector<1x1x8x8xf32>
    tpu.vector_store %arg5[%c0_293, %c4_294, %c0_295, %c0_296], %1268 {strides = array<i32>} : memref<1x8x8x8xf32, #tpu.memory_space<vmem>>, vector<1x1x8x8xf32>,
    %1269 = arith.addf %862, %1176 : vector<8x8xf32>
    %c0_297 = arith.constant 0 : index
    %c5_298 = arith.constant 5 : index
    %c0_299 = arith.constant 0 : index
    %c0_300 = arith.constant 0 : index
    %1270 = vector.load %arg5[%c0_297, %c5_298, %c0_299, %c0_300] : memref<1x8x8x8xf32, #tpu.memory_space<vmem>>, vector<1x1x8x8xf32>
    %1271 = vector.shape_cast %1270 : vector<1x1x8x8xf32> to vector<8x8xf32>
    %1272 = vector.shape_cast %1269 : vector<8x8xf32> to vector<1x1x8x8xf32>
    tpu.vector_store %arg5[%c0_297, %c5_298, %c0_299, %c0_300], %1272 {strides = array<i32>} : memref<1x8x8x8xf32, #tpu.memory_space<vmem>>, vector<1x1x8x8xf32>,
    %1273 = arith.addf %898, %1212 : vector<8x8xf32>
    %c0_301 = arith.constant 0 : index
    %c6_302 = arith.constant 6 : index
    %c0_303 = arith.constant 0 : index
    %c0_304 = arith.constant 0 : index
    %1274 = vector.load %arg5[%c0_301, %c6_302, %c0_303, %c0_304] : memref<1x8x8x8xf32, #tpu.memory_space<vmem>>, vector<1x1x8x8xf32>
    %1275 = vector.shape_cast %1274 : vector<1x1x8x8xf32> to vector<8x8xf32>
    %1276 = vector.shape_cast %1273 : vector<8x8xf32> to vector<1x1x8x8xf32>
    tpu.vector_store %arg5[%c0_301, %c6_302, %c0_303, %c0_304], %1276 {strides = array<i32>} : memref<1x8x8x8xf32, #tpu.memory_space<vmem>>, vector<1x1x8x8xf32>,
    %1277 = arith.addf %934, %1248 : vector<8x8xf32>
    %c0_305 = arith.constant 0 : index
    %c7_306 = arith.constant 7 : index
    %c0_307 = arith.constant 0 : index
    %c0_308 = arith.constant 0 : index
    %1278 = vector.load %arg5[%c0_305, %c7_306, %c0_307, %c0_308] : memref<1x8x8x8xf32, #tpu.memory_space<vmem>>, vector<1x1x8x8xf32>
    %1279 = vector.shape_cast %1278 : vector<1x1x8x8xf32> to vector<8x8xf32>
    %1280 = vector.shape_cast %1277 : vector<8x8xf32> to vector<1x1x8x8xf32>
    tpu.vector_store %arg5[%c0_305, %c7_306, %c0_307, %c0_308], %1280 {strides = array<i32>} : memref<1x8x8x8xf32, #tpu.memory_space<vmem>>, vector<1x1x8x8xf32>,
    return
  }
  func.func @transform_0(%arg0: i32, %arg1: memref<72xf32, #tpu.memory_space<smem>>) -> (i32, i32) {
    %c0_i32 = arith.constant 0 : i32
    %c0_i32_0 = arith.constant 0 : i32
    %c0_i32_1 = arith.constant 0 : i32
    return %c0_i32, %c0_i32_0 : i32, i32
  }
  func.func @transform_1(%arg0: i32, %arg1: memref<72xf32, #tpu.memory_space<smem>>) -> (i32, i32, i32) {
    %c0_i32 = arith.constant 0 : i32
    %c0_i32_0 = arith.constant 0 : i32
    %c0_i32_1 = arith.constant 0 : i32
    %c0_i32_2 = arith.constant 0 : i32
    return %c0_i32, %c0_i32_0, %c0_i32_1 : i32, i32, i32
  }
  func.func @transform_2(%arg0: i32, %arg1: memref<72xf32, #tpu.memory_space<smem>>) -> (i32, i32, i32, i32) {
    %c0_i32 = arith.constant 0 : i32
    %c0_i32_0 = arith.constant 0 : i32
    %c0_i32_1 = arith.constant 0 : i32
    %c0_i32_2 = arith.constant 0 : i32
    return %arg0, %c0_i32, %c0_i32_0, %c0_i32_1 : i32, i32, i32, i32
  }
  func.func @transform_3(%arg0: i32, %arg1: memref<72xf32, #tpu.memory_space<smem>>) -> (i32, i32, i32, i32) {
    %c0_i32 = arith.constant 0 : i32
    %c0_i32_0 = arith.constant 0 : i32
    %c0_i32_1 = arith.constant 0 : i32
    %c0_i32_2 = arith.constant 0 : i32
    return %arg0, %c0_i32, %c0_i32_0, %c0_i32_1 : i32, i32, i32, i32
  }
}

</mosaic_0001>

<llo_original>
// kernel: tpu_custom_call.1
$region0: #{tpu_custom_call.1}
  #allocation0 [shape = 'u32[]', space=smem, size = 0x4, offset = 0x4, fixed_abs, tag = 'smem constant byte address 0x4 - core index']
  #allocation1 [shape = 'u32[144,128]{1,0:T(1,128)}', space=vmem, size = 0x12000, scoped, tag = 'internal scratch']
  #allocation2 [shape = 's32[1]{0}', space=sflag, size = 0x4, scoped, tag = 'scoped memory for tpu_custom_call.1']
  #allocation3 [shape = 'u8[512]{0}', space=smem, size = 0x200, scoped, tag = 'prefetched SMEM operand 0']
  %s0 = inlined_call_operand.vmem [shape: f32[72], index: 0, kind: input, shape index: {}]
  %s1 = inlined_call_operand.vmem [shape: f32[32,16], index: 1, kind: input, shape index: {}]
  %s2 = inlined_call_operand.vmem [shape: f32[4,16,8], index: 2, kind: input, shape index: {}]
  %s3 = inlined_call_operand.vmem [shape: f32[2,4,16,16], index: 3, kind: input, shape index: {}]
  %s4 = inlined_call_operand.hbm [shape: f32[2,8,8,8], index: 4, kind: output, shape index: {}]
  %s5 = sld [smem:[#allocation0]]
  $region45: #{tpu_custom_call.1} parent=0
    _
  %s7 = ssub.s32 1, %s5
  %s8 = scalar_select 0, %s7, %s5
  %s9 = sshll.u32 %s0, 4
  %s10 = int_to_ptr.vmem [resolvable:$true] %s9
  %12 = dma.vmem_to_smem %s10, 16, [#allocation3], [#allocation2]
  %13 = dma.done [#allocation2], 16
  %14 = sfence
  $region1: #{tpu_custom_call.1} parent=0
    #allocation4 [shape = 'u8[65536]{0}', space=vmem, size = 0x10000, scoped, tag = 'output window, operand 0']
    #allocation5 [shape = 's32[2]{0}', space=sflag, size = 0x8, scoped, tag = 'scoped memory for tpu_custom_call.1']
    %15 = vsyncpa [#allocation5], 0
    %s16 = scalar_lea.sflag [#allocation5], 1
    %17 = vsyncpa %s16, 0
    loop: start=0, step=1, limit=4
    $region2: #{tpu_custom_call.1} parent=1 // loop_pre_header
      _
    $region3: #{tpu_custom_call.1} parent=1 // loop_header
      %s19 = sphi 0, %s23
      %p20 = scmp.ge.s32.totalorder %s19, 4
      %s27 = sphi 0, %s27
      %s29 = sphi 0, %s27
      %s30 = sphi 0, %s29
      %s44 = sphi 0, %s30
      %s48 = sphi 0, %s48
      %s50 = sphi 0, %s48
      %s51 = sphi 0, %s50
      %s65 = sphi 0, %s51
      %s71 = sphi 0, %s73
      %s74 = sphi 0, %s71
      %s75 = sphi 0, %s74
      %s91 = sphi 0, %s75
      %s97 = sphi 0, %s99
      %s100 = sphi 0, %s97
      %s101 = sphi 0, %s100
      %s117 = sphi 0, %s101
    $region4: #{tpu_custom_call.1} parent=1 // loop_header_branch
      %22 = sbr.rel (%p20) target = $region8
    $region5: #{tpu_custom_call.1} parent=1 // loop_body
      %s24 = ssub.s32 %s19, 1
      %s25 = ssub.s32 %s19, 2
      %s26 = sadd.s32 %s19, 1
      %s28 = sadd.s32 %s27, 1
      %p31 = scmp.eq.s32.totalorder %s19, 1
      %p32 = scmp.ne.s32.totalorder %s27, %s29
      %p33 = scmp.eq.s32.totalorder %s19, 0
      %p34 = por %p32, %p33
      %p35 = scmp.ne.s32.totalorder %s27, %s29
      %p36 = scmp.eq.s32.totalorder %s24, 1
      %p37 = por %p35, %p36
      %p38 = scmp.ne.s32.totalorder %s29, %s30
      %p39 = scmp.eq.s32.totalorder %s24, 0
      %p40 = por %p38, %p39
      %p41 = scmp.ne.s32.totalorder %s29, %s30
      %p42 = scmp.eq.s32.totalorder %s25, 1
      %p43 = por %p41, %p42
      %p45 = scmp.ne.s32.totalorder %s30, %s44
      %p46 = scmp.eq.s32.totalorder %s25, 0
      %p47 = por %p45, %p46
      %s49 = sadd.s32 %s48, 1
      %p52 = scmp.eq.s32.totalorder %s19, 1
      %p53 = scmp.ne.s32.totalorder %s48, %s50
      %p54 = scmp.eq.s32.totalorder %s19, 0
      %p55 = por %p53, %p54
      %p56 = scmp.ne.s32.totalorder %s48, %s50
      %p57 = scmp.eq.s32.totalorder %s24, 1
      %p58 = por %p56, %p57
      %p59 = scmp.ne.s32.totalorder %s50, %s51
      %p60 = scmp.eq.s32.totalorder %s24, 0
      %p61 = por %p59, %p60
      %p62 = scmp.ne.s32.totalorder %s50, %s51
      %p63 = scmp.eq.s32.totalorder %s25, 1
      %p64 = por %p62, %p63
      %p66 = scmp.ne.s32.totalorder %s51, %s65
      %p67 = scmp.eq.s32.totalorder %s25, 0
      %p68 = por %p66, %p67
      %s69 = ssub.s32 %s19, %s26
      %p70 = scmp.eq.s32.totalorder %s69, 0
      %s72 = sadd.s32 %s71, 1
      %s73 = scalar_select %p70, %s71, %s72
      %p76 = pneg %p70
      %p77 = scmp.eq.s32.totalorder %s19, 1
      %p78 = por %p76, %p77
      %p79 = scmp.ne.s32.totalorder %s71, %s74
      %p80 = scmp.eq.s32.totalorder %s19, 0
      %p81 = por %p79, %p80
      %p82 = scmp.ne.s32.totalorder %s71, %s74
      %p83 = scmp.eq.s32.totalorder %s24, 1
      %p84 = por %p82, %p83
      %p85 = scmp.ne.s32.totalorder %s74, %s75
      %p86 = scmp.eq.s32.totalorder %s24, 0
      %p87 = por %p85, %p86
      %p88 = scmp.ne.s32.totalorder %s74, %s75
      %p89 = scmp.eq.s32.totalorder %s25, 1
      %p90 = por %p88, %p89
      %p92 = scmp.ne.s32.totalorder %s75, %s91
      %p93 = scmp.eq.s32.totalorder %s25, 0
      %p94 = por %p92, %p93
      %s95 = ssub.s32 %s19, %s26
      %p96 = scmp.eq.s32.totalorder %s95, 0
      %s98 = sadd.s32 %s97, 1
      %s99 = scalar_select %p96, %s97, %s98
      %p102 = pneg %p96
      %p103 = scmp.eq.s32.totalorder %s19, 1
      %p104 = por %p102, %p103
      %p105 = scmp.ne.s32.totalorder %s97, %s100
      %p106 = scmp.eq.s32.totalorder %s19, 0
      %p107 = por %p105, %p106
      %p108 = scmp.ne.s32.totalorder %s97, %s100
      %p109 = scmp.eq.s32.totalorder %s24, 1
      %p110 = por %p108, %p109
      %p111 = scmp.ne.s32.totalorder %s100, %s101
      %p112 = scmp.eq.s32.totalorder %s24, 0
      %p113 = por %p111, %p112
      %p114 = scmp.ne.s32.totalorder %s100, %s101
      %p115 = scmp.eq.s32.totalorder %s25, 1
      %p116 = por %p114, %p115
      %p118 = scmp.ne.s32.totalorder %s101, %s117
      %p119 = scmp.eq.s32.totalorder %s25, 0
      %p120 = por %p118, %p119
      %p121 = scmp.le.s32.totalorder 1, %s19
      %p122 = scmp.lt.s32.totalorder %s19, 3
      %p123 = pnand %p121, %p122
      %p124 = pneg %p123
      // Predicated region
      $region9: #{tpu_custom_call.1} parent=5 // pred_check
        _
      $region10: #{tpu_custom_call.1} parent=5 // pred_check_branch
        %126 = sbr.rel (%p123) target = $region12
      $region11: #{tpu_custom_call.1} parent=5 // pred_region
        %s127 = ssub.s32 %s19, 1
        // Predicated region
        $region13: #{tpu_custom_call.1} parent=11 // pred_check
          %p128 = pneg %p40
        $region14: #{tpu_custom_call.1} parent=11 // pred_check_branch
          %130 = sbr.rel (%p128) target = $region16
        $region15: #{tpu_custom_call.1} parent=11 // pred_region
          _
        $region16: #{tpu_custom_call.1} parent=11 // pred_fallthru
          _
        // Predicated region
        $region17: #{tpu_custom_call.1} parent=11 // pred_check
          %p131 = pneg %p61
        $region18: #{tpu_custom_call.1} parent=11 // pred_check_branch
          %133 = sbr.rel (%p131) target = $region20
        $region19: #{tpu_custom_call.1} parent=11 // pred_region
          _
        $region20: #{tpu_custom_call.1} parent=11 // pred_fallthru
          _
      $region12: #{tpu_custom_call.1} parent=5 // pred_fallthru
        _
      %p134 = scmp.lt.s32.totalorder %s19, 2
      // Predicated region
      $region21: #{tpu_custom_call.1} parent=5 // pred_check
        %p135 = pneg %p134
      $region22: #{tpu_custom_call.1} parent=5 // pred_check_branch
        %137 = sbr.rel (%p135) target = $region24
      $region23: #{tpu_custom_call.1} parent=5 // pred_region
        // Predicated region
        $region25: #{tpu_custom_call.1} parent=23 // pred_check
          %p138 = pneg %p81
        $region26: #{tpu_custom_call.1} parent=23 // pred_check_branch
          %140 = sbr.rel (%p138) target = $region28
        $region27: #{tpu_custom_call.1} parent=23 // pred_region
          %p141 = scmp.lt.s32.totalorder %s19, 1
          %s142 = scalar_select %p141, %s19, 1
          %s143 = smul.addr %s142, 8
          %s144 = smul.addr %s143, 8
          %s145 = scalar_lea.vmem %s3, %s144
        $region28: #{tpu_custom_call.1} parent=23 // pred_fallthru
          _
      $region24: #{tpu_custom_call.1} parent=5 // pred_fallthru
        _
      %p146 = scmp.le.s32.totalorder 1, %s19
      %p147 = scmp.lt.s32.totalorder %s19, 3
      %p148 = pnand %p146, %p147
      %p149 = pneg %p148
      // Predicated region
      $region29: #{tpu_custom_call.1} parent=5 // pred_check
        _
      $region30: #{tpu_custom_call.1} parent=5 // pred_check_branch
        %151 = sbr.rel (%p148) target = $region32
      $region31: #{tpu_custom_call.1} parent=5 // pred_region
        %s152 = ssub.s32 %s19, 1
        %p153 = pneg %p40
        %p154 = pneg %p37
        %p155 = pneg %p61
        %p156 = pneg %p58
        %p157 = scmp.lt.s32.totalorder %s24, 1
        %s158 = scalar_select %p157, %s24, 1
        %s159 = smul.addr %s158, 8
        %s160 = smul.addr %s159, 8
        %s161 = scalar_lea.vmem %s3, %s160
        %p162 = pneg %p87
        %p163 = pneg %p84
        %p164 = pneg %p113
        %p165 = pneg %p110
        %s166 = sand.u32 %s100, 1
        %s167 = scalar_lea.sflag [#allocation5], %s166
        %s168 = sand.u32 %s100, 1
        %s169 = smul.addr %s168, 64
        %s170 = scalar_lea.vmem [#allocation4], %s169
        %p171 = scmp.lt.s32.totalorder %s24, 1
        %s172 = scalar_select %p171, %s24, 1
        %s173 = smul.addr %s172, 8
        %s174 = smul.addr %s173, 8
        %s175 = scalar_lea.vmem %s3, %s174
        %v176 = vld [vmem:[%s1] sm:$0xff]
        %v177 = vld [vmem:[%s1 + $0x8] sm:$0xff]
        %v178 = vld [vmem:[%s1 + $0x10] sm:$0xff]
        %v179 = vld [vmem:[%s1 + $0x18] sm:$0xff]
        %v180 = vld [vmem:[%s2] sm:$0xff]
        %v181 = vld [vmem:[%s2 + $0x8] sm:$0xff]
        %s182 = scalar_lea.vmem %s2, 16
        %v183 = vld [vmem:[%s182] sm:$0xff]
        %v184 = vld [vmem:[%s182 + $0x8] sm:$0xff]
        %s185 = scalar_lea.vmem %s2, 32
        %v186 = vld [vmem:[%s185] sm:$0xff]
        %v187 = vld [vmem:[%s185 + $0x8] sm:$0xff]
        %s188 = scalar_lea.vmem %s2, 48
        %v189 = vld [vmem:[%s188] sm:$0xff]
        %v190 = vld [vmem:[%s188 + $0x8] sm:$0xff]
        %v191 = vld [vmem:[%s175] sm:$0xff]
        %v192 = vld [vmem:[%s175 + $0x8] sm:$0xff]
        %vm193 = vcmask 130048
        %v195 = vsel %vm193, %v191, 0
        %v198 = vsel %vm193, %v192, 0
        %200 = vmatprep.subr.mxu0 0.0
        %201 = vmatpush1.msra.mxu0 %v180
        %202 = vmatprep.subr.mxu0 0.0
        %203 = vmatpush1.msra.mxu0 %v181
        %204 = vmatprep.subr.mxu0 0.0
        %205 = vmatpush1.msra.mxu0 0.0
        %206 = vmatprep.subr.mxu0 0.0
        %207 = vmatpush1.msra.mxu0 0.0
        %208 = vmatprep.subr.mxu0 0.0
        %209 = vmatpush1.msra.mxu0 0.0
        %210 = vmatprep.subr.mxu0 0.0
        %211 = vmatpush1.msra.mxu0 0.0
        %212 = vmatprep.subr.mxu0 0.0
        %213 = vmatpush1.msra.mxu0 0.0
        %214 = vmatprep.subr.mxu0 0.0
        %215 = vmatpush1.msra.mxu0 0.0
        %216 = vmatprep.subr.mxu0 0.0
        %217 = vmatpush1.msra.mxu0 0.0
        %218 = vmatprep.subr.mxu0 0.0
        %219 = vmatpush1.msra.mxu0 0.0
        %220 = vmatprep.subr.mxu0 0.0
        %221 = vmatpush1.msra.mxu0 0.0
        %222 = vmatprep.subr.mxu0 0.0
        %223 = vmatpush1.msra.mxu0 0.0
        %224 = vmatprep.subr.mxu0 0.0
        %225 = vmatpush1.msra.mxu0 0.0
        %226 = vmatprep.subr.mxu0 0.0
        %227 = vmatpush1.msra.mxu0 0.0
        %228 = vmatprep.subr.mxu0 0.0
        %229 = vmatpush1.msra.mxu0 0.0
        %230 = vmatprep.subr.mxu0 0.0
        %231 = vmatpush1.msra.mxu0 0.0
        %232 = vmatprep.subr.mxu0 0.0
        %233 = vmatpush1.msra.mxu0 0.0
        %234 = vmatprep.subr.mxu0 0.0
        %235 = vmatpush1.msra.mxu0 0.0
        %236 = vmatprep.subr.mxu0 0.0
        %237 = vmatpush1.msra.mxu0 0.0
        %238 = vmatprep.subr.mxu0 0.0
        %239 = vmatpush1.msra.mxu0 0.0
        %240 = vmatprep.subr.mxu0 0.0
        %241 = vmatpush1.msra.mxu0 0.0
        %242 = vmatprep.subr.mxu0 0.0
        %243 = vmatpush1.msra.mxu0 0.0
        %244 = vmatprep.subr.mxu0 0.0
        %245 = vmatpush1.msra.mxu0 0.0
        %246 = vmatprep.subr.mxu0 0.0
        %247 = vmatpush1.msra.mxu0 0.0
        %248 = vmatprep.subr.mxu0 0.0
        %249 = vmatpush1.msra.mxu0 0.0
        %250 = vmatprep.subr.mxu0 0.0
        %251 = vmatpush1.msra.mxu0 0.0
        %252 = vmatprep.subr.mxu0 0.0
        %253 = vmatpush1.msra.mxu0 0.0
        %254 = vmatprep.subr.mxu0 0.0
        %255 = vmatpush1.msra.mxu0 0.0
        %256 = vmatprep.subr.mxu0 0.0
        %257 = vmatpush1.msra.mxu0 0.0
        %258 = vmatprep.subr.mxu0 0.0
        %259 = vmatpush1.msra.mxu0 0.0
        %260 = vmatprep.subr.mxu0 0.0
        %261 = vmatpush1.msra.mxu0 0.0
        %262 = vmatprep.subr.mxu0 0.0
        %263 = vmatpush1.msra.mxu0 0.0
        %264 = vmatprep.mubr.f32.mxu0 0.0
        %265 = vmatmul.mubr.f32.gmra.mrb[0].mxu0 %v195
        %v266 = vpop.f32.mrb[0].mxu0
        %v267 = vadd.f32 0.0, %v266
        %v268 = vpop.f32.mrb[0].mxu0
        %269 = vmatprep.mubr.f32.mxu0 0.0
        %270 = vmatmul.mubr.f32.gmra.mrb[0].mxu0 %v198
        %v271 = vpop.f32.mrb[0].mxu0
        %v272 = vadd.f32 0.0, %v271
        %v273 = vpop.f32.mrb[0].mxu0
        %274 = vdwg.mxu0
        %v276 = vsel %vm193, %v176, 0
        %v279 = vsel %vm193, %v177, 0
        %v282 = vsel %vm193, %v178, 0
        %v285 = vsel %vm193, %v179, 0
        %287 = vmatprep.subr.mxu0 0.0
        %288 = vmatpush1.msra.mxu0 %v267
        %289 = vmatprep.subr.mxu0 0.0
        %290 = vmatpush1.msra.mxu0 %v272
        %291 = vmatprep.subr.mxu0 0.0
        %292 = vmatpush1.msra.mxu0 0.0
        %293 = vmatprep.subr.mxu0 0.0
        %294 = vmatpush1.msra.mxu0 0.0
        %295 = vmatprep.subr.mxu0 0.0
        %296 = vmatpush1.msra.mxu0 0.0
        %297 = vmatprep.subr.mxu0 0.0
        %298 = vmatpush1.msra.mxu0 0.0
        %299 = vmatprep.subr.mxu0 0.0
        %300 = vmatpush1.msra.mxu0 0.0
        %301 = vmatprep.subr.mxu0 0.0
        %302 = vmatpush1.msra.mxu0 0.0
        %303 = vmatprep.subr.mxu0 0.0
        %304 = vmatpush1.msra.mxu0 0.0
        %305 = vmatprep.subr.mxu0 0.0
        %306 = vmatpush1.msra.mxu0 0.0
        %307 = vmatprep.subr.mxu0 0.0
        %308 = vmatpush1.msra.mxu0 0.0
        %309 = vmatprep.subr.mxu0 0.0
        %310 = vmatpush1.msra.mxu0 0.0
        %311 = vmatprep.subr.mxu0 0.0
        %312 = vmatpush1.msra.mxu0 0.0
        %313 = vmatprep.subr.mxu0 0.0
        %314 = vmatpush1.msra.mxu0 0.0
        %315 = vmatprep.subr.mxu0 0.0
        %316 = vmatpush1.msra.mxu0 0.0
        %317 = vmatprep.subr.mxu0 0.0
        %318 = vmatpush1.msra.mxu0 0.0
        %319 = vmatprep.subr.mxu0 0.0
        %320 = vmatpush1.msra.mxu0 0.0
        %321 = vmatprep.subr.mxu0 0.0
        %322 = vmatpush1.msra.mxu0 0.0
        %323 = vmatprep.subr.mxu0 0.0
        %324 = vmatpush1.msra.mxu0 0.0
        %325 = vmatprep.subr.mxu0 0.0
        %326 = vmatpush1.msra.mxu0 0.0
        %327 = vmatprep.subr.mxu0 0.0
        %328 = vmatpush1.msra.mxu0 0.0
        %329 = vmatprep.subr.mxu0 0.0
        %330 = vmatpush1.msra.mxu0 0.0
        %331 = vmatprep.subr.mxu0 0.0
        %332 = vmatpush1.msra.mxu0 0.0
        %333 = vmatprep.subr.mxu0 0.0
        %334 = vmatpush1.msra.mxu0 0.0
        %335 = vmatprep.subr.mxu0 0.0
        %336 = vmatpush1.msra.mxu0 0.0
        %337 = vmatprep.subr.mxu0 0.0
        %338 = vmatpush1.msra.mxu0 0.0
        %339 = vmatprep.subr.mxu0 0.0
        %340 = vmatpush1.msra.mxu0 0.0
        %341 = vmatprep.subr.mxu0 0.0
        %342 = vmatpush1.msra.mxu0 0.0
        %343 = vmatprep.subr.mxu0 0.0
        %344 = vmatpush1.msra.mxu0 0.0
        %345 = vmatprep.subr.mxu0 0.0
        %346 = vmatpush1.msra.mxu0 0.0
        %347 = vmatprep.subr.mxu0 0.0
        %348 = vmatpush1.msra.mxu0 0.0
        %349 = vmatprep.subr.mxu0 0.0
        %350 = vmatpush1.msra.mxu0 0.0
        %351 = vmatprep.mubr.f32.mxu0 0.0
        %352 = vmatmul.mubr.f32.gmra.mrb[0].mxu0 %v276
        %v353 = vpop.f32.mrb[0].mxu0
        %v354 = vadd.f32 0.0, %v353
        %v355 = vpop.f32.mrb[0].mxu0
        %356 = vmatprep.mubr.f32.mxu0 0.0
        %357 = vmatmul.mubr.f32.gmra.mrb[0].mxu0 %v279
        %v358 = vpop.f32.mrb[0].mxu0
        %v359 = vadd.f32 0.0, %v358
        %v360 = vpop.f32.mrb[0].mxu0
        %361 = vmatprep.mubr.f32.mxu0 0.0
        %362 = vmatmul.mubr.f32.gmra.mrb[0].mxu0 %v282
        %v363 = vpop.f32.mrb[0].mxu0
        %v364 = vadd.f32 0.0, %v363
        %v365 = vpop.f32.mrb[0].mxu0
        %366 = vmatprep.mubr.f32.mxu0 0.0
        %367 = vmatmul.mubr.f32.gmra.mrb[0].mxu0 %v285
        %v368 = vpop.f32.mrb[0].mxu0
        %v369 = vadd.f32 0.0, %v368
        %v370 = vpop.f32.mrb[0].mxu0
        %371 = vdwg.mxu0
        %372 = vmatprep.subr.mxu0 0.0
        %373 = vmatpush1.msra.mxu0 %v183
        %374 = vmatprep.subr.mxu0 0.0
        %375 = vmatpush1.msra.mxu0 %v184
        %376 = vmatprep.subr.mxu0 0.0
        %377 = vmatpush1.msra.mxu0 0.0
        %378 = vmatprep.subr.mxu0 0.0
        %379 = vmatpush1.msra.mxu0 0.0
        %380 = vmatprep.subr.mxu0 0.0
        %381 = vmatpush1.msra.mxu0 0.0
        %382 = vmatprep.subr.mxu0 0.0
        %383 = vmatpush1.msra.mxu0 0.0
        %384 = vmatprep.subr.mxu0 0.0
        %385 = vmatpush1.msra.mxu0 0.0
        %386 = vmatprep.subr.mxu0 0.0
        %387 = vmatpush1.msra.mxu0 0.0
        %388 = vmatprep.subr.mxu0 0.0
        %389 = vmatpush1.msra.mxu0 0.0
        %390 = vmatprep.subr.mxu0 0.0
        %391 = vmatpush1.msra.mxu0 0.0
        %392 = vmatprep.subr.mxu0 0.0
        %393 = vmatpush1.msra.mxu0 0.0
        %394 = vmatprep.subr.mxu0 0.0
        %395 = vmatpush1.msra.mxu0 0.0
        %396 = vmatprep.subr.mxu0 0.0
        %397 = vmatpush1.msra.mxu0 0.0
        %398 = vmatprep.subr.mxu0 0.0
        %399 = vmatpush1.msra.mxu0 0.0
        %400 = vmatprep.subr.mxu0 0.0
        %401 = vmatpush1.msra.mxu0 0.0
        %402 = vmatprep.subr.mxu0 0.0
        %403 = vmatpush1.msra.mxu0 0.0
        %404 = vmatprep.subr.mxu0 0.0
        %405 = vmatpush1.msra.mxu0 0.0
        %406 = vmatprep.subr.mxu0 0.0
        %407 = vmatpush1.msra.mxu0 0.0
        %408 = vmatprep.subr.mxu0 0.0
        %409 = vmatpush1.msra.mxu0 0.0
        %410 = vmatprep.subr.mxu0 0.0
        %411 = vmatpush1.msra.mxu0 0.0
        %412 = vmatprep.subr.mxu0 0.0
        %413 = vmatpush1.msra.mxu0 0.0
        %414 = vmatprep.subr.mxu0 0.0
        %415 = vmatpush1.msra.mxu0 0.0
        %416 = vmatprep.subr.mxu0 0.0
        %417 = vmatpush1.msra.mxu0 0.0
        %418 = vmatprep.subr.mxu0 0.0
        %419 = vmatpush1.msra.mxu0 0.0
        %420 = vmatprep.subr.mxu0 0.0
        %421 = vmatpush1.msra.mxu0 0.0
        %422 = vmatprep.subr.mxu0 0.0
        %423 = vmatpush1.msra.mxu0 0.0
        %424 = vmatprep.subr.mxu0 0.0
        %425 = vmatpush1.msra.mxu0 0.0
        %426 = vmatprep.subr.mxu0 0.0
        %427 = vmatpush1.msra.mxu0 0.0
        %428 = vmatprep.subr.mxu0 0.0
        %429 = vmatpush1.msra.mxu0 0.0
        %430 = vmatprep.subr.mxu0 0.0
        %431 = vmatpush1.msra.mxu0 0.0
        %432 = vmatprep.subr.mxu0 0.0
        %433 = vmatpush1.msra.mxu0 0.0
        %434 = vmatprep.subr.mxu0 0.0
        %435 = vmatpush1.msra.mxu0 0.0
        %436 = vmatprep.mubr.f32.mxu0 0.0
        %437 = vmatmul.mubr.f32.gmra.mrb[0].mxu0 %v195
        %v438 = vpop.f32.mrb[0].mxu0
        %v439 = vadd.f32 0.0, %v438
        %v440 = vpop.f32.mrb[0].mxu0
        %441 = vmatprep.mubr.f32.mxu0 0.0
        %442 = vmatmul.mubr.f32.gmra.mrb[0].mxu0 %v198
        %v443 = vpop.f32.mrb[0].mxu0
        %v444 = vadd.f32 0.0, %v443
        %v445 = vpop.f32.mrb[0].mxu0
        %446 = vdwg.mxu0
        %447 = vmatprep.subr.mxu0 0.0
        %448 = vmatpush1.msra.mxu0 %v439
        %449 = vmatprep.subr.mxu0 0.0
        %450 = vmatpush1.msra.mxu0 %v444
        %451 = vmatprep.subr.mxu0 0.0
        %452 = vmatpush1.msra.mxu0 0.0
        %453 = vmatprep.subr.mxu0 0.0
        %454 = vmatpush1.msra.mxu0 0.0
        %455 = vmatprep.subr.mxu0 0.0
        %456 = vmatpush1.msra.mxu0 0.0
        %457 = vmatprep.subr.mxu0 0.0
        %458 = vmatpush1.msra.mxu0 0.0
        %459 = vmatprep.subr.mxu0 0.0
        %460 = vmatpush1.msra.mxu0 0.0
        %461 = vmatprep.subr.mxu0 0.0
        %462 = vmatpush1.msra.mxu0 0.0
        %463 = vmatprep.subr.mxu0 0.0
        %464 = vmatpush1.msra.mxu0 0.0
        %465 = vmatprep.subr.mxu0 0.0
        %466 = vmatpush1.msra.mxu0 0.0
        %467 = vmatprep.subr.mxu0 0.0
        %468 = vmatpush1.msra.mxu0 0.0
        %469 = vmatprep.subr.mxu0 0.0
        %470 = vmatpush1.msra.mxu0 0.0
        %471 = vmatprep.subr.mxu0 0.0
        %472 = vmatpush1.msra.mxu0 0.0
        %473 = vmatprep.subr.mxu0 0.0
        %474 = vmatpush1.msra.mxu0 0.0
        %475 = vmatprep.subr.mxu0 0.0
        %476 = vmatpush1.msra.mxu0 0.0
        %477 = vmatprep.subr.mxu0 0.0
        %478 = vmatpush1.msra.mxu0 0.0
        %479 = vmatprep.subr.mxu0 0.0
        %480 = vmatpush1.msra.mxu0 0.0
        %481 = vmatprep.subr.mxu0 0.0
        %482 = vmatpush1.msra.mxu0 0.0
        %483 = vmatprep.subr.mxu0 0.0
        %484 = vmatpush1.msra.mxu0 0.0
        %485 = vmatprep.subr.mxu0 0.0
        %486 = vmatpush1.msra.mxu0 0.0
        %487 = vmatprep.subr.mxu0 0.0
        %488 = vmatpush1.msra.mxu0 0.0
        %489 = vmatprep.subr.mxu0 0.0
        %490 = vmatpush1.msra.mxu0 0.0
        %491 = vmatprep.subr.mxu0 0.0
        %492 = vmatpush1.msra.mxu0 0.0
        %493 = vmatprep.subr.mxu0 0.0
        %494 = vmatpush1.msra.mxu0 0.0
        %495 = vmatprep.subr.mxu0 0.0
        %496 = vmatpush1.msra.mxu0 0.0
        %497 = vmatprep.subr.mxu0 0.0
        %498 = vmatpush1.msra.mxu0 0.0
        %499 = vmatprep.subr.mxu0 0.0
        %500 = vmatpush1.msra.mxu0 0.0
        %501 = vmatprep.subr.mxu0 0.0
        %502 = vmatpush1.msra.mxu0 0.0
        %503 = vmatprep.subr.mxu0 0.0
        %504 = vmatpush1.msra.mxu0 0.0
        %505 = vmatprep.subr.mxu0 0.0
        %506 = vmatpush1.msra.mxu0 0.0
        %507 = vmatprep.subr.mxu0 0.0
        %508 = vmatpush1.msra.mxu0 0.0
        %509 = vmatprep.subr.mxu0 0.0
        %510 = vmatpush1.msra.mxu0 0.0
        %511 = vmatprep.mubr.f32.mxu0 0.0
        %512 = vmatmul.mubr.f32.gmra.mrb[0].mxu0 %v276
        %v513 = vpop.f32.mrb[0].mxu0
        %v514 = vadd.f32 0.0, %v513
        %v515 = vpop.f32.mrb[0].mxu0
        %516 = vmatprep.mubr.f32.mxu0 0.0
        %517 = vmatmul.mubr.f32.gmra.mrb[0].mxu0 %v279
        %v518 = vpop.f32.mrb[0].mxu0
        %v519 = vadd.f32 0.0, %v518
        %v520 = vpop.f32.mrb[0].mxu0
        %521 = vmatprep.mubr.f32.mxu0 0.0
        %522 = vmatmul.mubr.f32.gmra.mrb[0].mxu0 %v282
        %v523 = vpop.f32.mrb[0].mxu0
        %v524 = vadd.f32 0.0, %v523
        %v525 = vpop.f32.mrb[0].mxu0
        %526 = vmatprep.mubr.f32.mxu0 0.0
        %527 = vmatmul.mubr.f32.gmra.mrb[0].mxu0 %v285
        %v528 = vpop.f32.mrb[0].mxu0
        %v529 = vadd.f32 0.0, %v528
        %v530 = vpop.f32.mrb[0].mxu0
        %531 = vdwg.mxu0
        %532 = vmatprep.subr.mxu0 0.0
        %533 = vmatpush1.msra.mxu0 %v186
        %534 = vmatprep.subr.mxu0 0.0
        %535 = vmatpush1.msra.mxu0 %v187
        %536 = vmatprep.subr.mxu0 0.0
        %537 = vmatpush1.msra.mxu0 0.0
        %538 = vmatprep.subr.mxu0 0.0
        %539 = vmatpush1.msra.mxu0 0.0
        %540 = vmatprep.subr.mxu0 0.0
        %541 = vmatpush1.msra.mxu0 0.0
        %542 = vmatprep.subr.mxu0 0.0
        %543 = vmatpush1.msra.mxu0 0.0
        %544 = vmatprep.subr.mxu0 0.0
        %545 = vmatpush1.msra.mxu0 0.0
        %546 = vmatprep.subr.mxu0 0.0
        %547 = vmatpush1.msra.mxu0 0.0
        %548 = vmatprep.subr.mxu0 0.0
        %549 = vmatpush1.msra.mxu0 0.0
        %550 = vmatprep.subr.mxu0 0.0
        %551 = vmatpush1.msra.mxu0 0.0
        %552 = vmatprep.subr.mxu0 0.0
        %553 = vmatpush1.msra.mxu0 0.0
        %554 = vmatprep.subr.mxu0 0.0
        %555 = vmatpush1.msra.mxu0 0.0
        %556 = vmatprep.subr.mxu0 0.0
        %557 = vmatpush1.msra.mxu0 0.0
        %558 = vmatprep.subr.mxu0 0.0
        %559 = vmatpush1.msra.mxu0 0.0
        %560 = vmatprep.subr.mxu0 0.0
        %561 = vmatpush1.msra.mxu0 0.0
        %562 = vmatprep.subr.mxu0 0.0
        %563 = vmatpush1.msra.mxu0 0.0
        %564 = vmatprep.subr.mxu0 0.0
        %565 = vmatpush1.msra.mxu0 0.0
        %566 = vmatprep.subr.mxu0 0.0
        %567 = vmatpush1.msra.mxu0 0.0
        %568 = vmatprep.subr.mxu0 0.0
        %569 = vmatpush1.msra.mxu0 0.0
        %570 = vmatprep.subr.mxu0 0.0
        %571 = vmatpush1.msra.mxu0 0.0
        %572 = vmatprep.subr.mxu0 0.0
        %573 = vmatpush1.msra.mxu0 0.0
        %574 = vmatprep.subr.mxu0 0.0
        %575 = vmatpush1.msra.mxu0 0.0
        %576 = vmatprep.subr.mxu0 0.0
        %577 = vmatpush1.msra.mxu0 0.0
        %578 = vmatprep.subr.mxu0 0.0
        %579 = vmatpush1.msra.mxu0 0.0
        %580 = vmatprep.subr.mxu0 0.0
        %581 = vmatpush1.msra.mxu0 0.0
        %582 = vmatprep.subr.mxu0 0.0
        %583 = vmatpush1.msra.mxu0 0.0
        %584 = vmatprep.subr.mxu0 0.0
        %585 = vmatpush1.msra.mxu0 0.0
        %586 = vmatprep.subr.mxu0 0.0
        %587 = vmatpush1.msra.mxu0 0.0
        %588 = vmatprep.subr.mxu0 0.0
        %589 = vmatpush1.msra.mxu0 0.0
        %590 = vmatprep.subr.mxu0 0.0
        %591 = vmatpush1.msra.mxu0 0.0
        %592 = vmatprep.subr.mxu0 0.0
        %593 = vmatpush1.msra.mxu0 0.0
        %594 = vmatprep.subr.mxu0 0.0
        %595 = vmatpush1.msra.mxu0 0.0
        %596 = vmatprep.mubr.f32.mxu0 0.0
        %597 = vmatmul.mubr.f32.gmra.mrb[0].mxu0 %v195
        %v598 = vpop.f32.mrb[0].mxu0
        %v599 = vadd.f32 0.0, %v598
        %v600 = vpop.f32.mrb[0].mxu0
        %601 = vmatprep.mubr.f32.mxu0 0.0
        %602 = vmatmul.mubr.f32.gmra.mrb[0].mxu0 %v198
        %v603 = vpop.f32.mrb[0].mxu0
        %v604 = vadd.f32 0.0, %v603
        %v605 = vpop.f32.mrb[0].mxu0
        %606 = vdwg.mxu0
        %607 = vmatprep.subr.mxu0 0.0
        %608 = vmatpush1.msra.mxu0 %v599
        %609 = vmatprep.subr.mxu0 0.0
        %610 = vmatpush1.msra.mxu0 %v604
        %611 = vmatprep.subr.mxu0 0.0
        %612 = vmatpush1.msra.mxu0 0.0
        %613 = vmatprep.subr.mxu0 0.0
        %614 = vmatpush1.msra.mxu0 0.0
        %615 = vmatprep.subr.mxu0 0.0
        %616 = vmatpush1.msra.mxu0 0.0
        %617 = vmatprep.subr.mxu0 0.0
        %618 = vmatpush1.msra.mxu0 0.0
        %619 = vmatprep.subr.mxu0 0.0
        %620 = vmatpush1.msra.mxu0 0.0
        %621 = vmatprep.subr.mxu0 0.0
        %622 = vmatpush1.msra.mxu0 0.0
        %623 = vmatprep.subr.mxu0 0.0
        %624 = vmatpush1.msra.mxu0 0.0
        %625 = vmatprep.subr.mxu0 0.0
        %626 = vmatpush1.msra.mxu0 0.0
        %627 = vmatprep.subr.mxu0 0.0
        %628 = vmatpush1.msra.mxu0 0.0
        %629 = vmatprep.subr.mxu0 0.0
        %630 = vmatpush1.msra.mxu0 0.0
        %631 = vmatprep.subr.mxu0 0.0
        %632 = vmatpush1.msra.mxu0 0.0
        %633 = vmatprep.subr.mxu0 0.0
        %634 = vmatpush1.msra.mxu0 0.0
        %635 = vmatprep.subr.mxu0 0.0
        %636 = vmatpush1.msra.mxu0 0.0
        %637 = vmatprep.subr.mxu0 0.0
        %638 = vmatpush1.msra.mxu0 0.0
        %639 = vmatprep.subr.mxu0 0.0
        %640 = vmatpush1.msra.mxu0 0.0
        %641 = vmatprep.subr.mxu0 0.0
        %642 = vmatpush1.msra.mxu0 0.0
        %643 = vmatprep.subr.mxu0 0.0
        %644 = vmatpush1.msra.mxu0 0.0
        %645 = vmatprep.subr.mxu0 0.0
        %646 = vmatpush1.msra.mxu0 0.0
        %647 = vmatprep.subr.mxu0 0.0
        %648 = vmatpush1.msra.mxu0 0.0
        %649 = vmatprep.subr.mxu0 0.0
        %650 = vmatpush1.msra.mxu0 0.0
        %651 = vmatprep.subr.mxu0 0.0
        %652 = vmatpush1.msra.mxu0 0.0
        %653 = vmatprep.subr.mxu0 0.0
        %654 = vmatpush1.msra.mxu0 0.0
        %655 = vmatprep.subr.mxu0 0.0
        %656 = vmatpush1.msra.mxu0 0.0
        %657 = vmatprep.subr.mxu0 0.0
        %658 = vmatpush1.msra.mxu0 0.0
        %659 = vmatprep.subr.mxu0 0.0
        %660 = vmatpush1.msra.mxu0 0.0
        %661 = vmatprep.subr.mxu0 0.0
        %662 = vmatpush1.msra.mxu0 0.0
        %663 = vmatprep.subr.mxu0 0.0
        %664 = vmatpush1.msra.mxu0 0.0
        %665 = vmatprep.subr.mxu0 0.0
        %666 = vmatpush1.msra.mxu0 0.0
        %667 = vmatprep.subr.mxu0 0.0
        %668 = vmatpush1.msra.mxu0 0.0
        %669 = vmatprep.subr.mxu0 0.0
        %670 = vmatpush1.msra.mxu0 0.0
        %671 = vmatprep.mubr.f32.mxu0 0.0
        %672 = vmatmul.mubr.f32.gmra.mrb[0].mxu0 %v276
        %v673 = vpop.f32.mrb[0].mxu0
        %v674 = vadd.f32 0.0, %v673
        %v675 = vpop.f32.mrb[0].mxu0
        %676 = vmatprep.mubr.f32.mxu0 0.0
        %677 = vmatmul.mubr.f32.gmra.mrb[0].mxu0 %v279
        %v678 = vpop.f32.mrb[0].mxu0
        %v679 = vadd.f32 0.0, %v678
        %v680 = vpop.f32.mrb[0].mxu0
        %681 = vmatprep.mubr.f32.mxu0 0.0
        %682 = vmatmul.mubr.f32.gmra.mrb[0].mxu0 %v282
        %v683 = vpop.f32.mrb[0].mxu0
        %v684 = vadd.f32 0.0, %v683
        %v685 = vpop.f32.mrb[0].mxu0
        %686 = vmatprep.mubr.f32.mxu0 0.0
        %687 = vmatmul.mubr.f32.gmra.mrb[0].mxu0 %v285
        %v688 = vpop.f32.mrb[0].mxu0
        %v689 = vadd.f32 0.0, %v688
        %v690 = vpop.f32.mrb[0].mxu0
        %691 = vdwg.mxu0
        %692 = vmatprep.subr.mxu0 0.0
        %693 = vmatpush1.msra.mxu0 %v189
        %694 = vmatprep.subr.mxu0 0.0
        %695 = vmatpush1.msra.mxu0 %v190
        %696 = vmatprep.subr.mxu0 0.0
        %697 = vmatpush1.msra.mxu0 0.0
        %698 = vmatprep.subr.mxu0 0.0
        %699 = vmatpush1.msra.mxu0 0.0
        %700 = vmatprep.subr.mxu0 0.0
        %701 = vmatpush1.msra.mxu0 0.0
        %702 = vmatprep.subr.mxu0 0.0
        %703 = vmatpush1.msra.mxu0 0.0
        %704 = vmatprep.subr.mxu0 0.0
        %705 = vmatpush1.msra.mxu0 0.0
        %706 = vmatprep.subr.mxu0 0.0
        %707 = vmatpush1.msra.mxu0 0.0
        %708 = vmatprep.subr.mxu0 0.0
        %709 = vmatpush1.msra.mxu0 0.0
        %710 = vmatprep.subr.mxu0 0.0
        %711 = vmatpush1.msra.mxu0 0.0
        %712 = vmatprep.subr.mxu0 0.0
        %713 = vmatpush1.msra.mxu0 0.0
        %714 = vmatprep.subr.mxu0 0.0
        %715 = vmatpush1.msra.mxu0 0.0
        %716 = vmatprep.subr.mxu0 0.0
        %717 = vmatpush1.msra.mxu0 0.0
        %718 = vmatprep.subr.mxu0 0.0
        %719 = vmatpush1.msra.mxu0 0.0
        %720 = vmatprep.subr.mxu0 0.0
        %721 = vmatpush1.msra.mxu0 0.0
        %722 = vmatprep.subr.mxu0 0.0
        %723 = vmatpush1.msra.mxu0 0.0
        %724 = vmatprep.subr.mxu0 0.0
        %725 = vmatpush1.msra.mxu0 0.0
        %726 = vmatprep.subr.mxu0 0.0
        %727 = vmatpush1.msra.mxu0 0.0
        %728 = vmatprep.subr.mxu0 0.0
        %729 = vmatpush1.msra.mxu0 0.0
        %730 = vmatprep.subr.mxu0 0.0
        %731 = vmatpush1.msra.mxu0 0.0
        %732 = vmatprep.subr.mxu0 0.0
        %733 = vmatpush1.msra.mxu0 0.0
        %734 = vmatprep.subr.mxu0 0.0
        %735 = vmatpush1.msra.mxu0 0.0
        %736 = vmatprep.subr.mxu0 0.0
        %737 = vmatpush1.msra.mxu0 0.0
        %738 = vmatprep.subr.mxu0 0.0
        %739 = vmatpush1.msra.mxu0 0.0
        %740 = vmatprep.subr.mxu0 0.0
        %741 = vmatpush1.msra.mxu0 0.0
        %742 = vmatprep.subr.mxu0 0.0
        %743 = vmatpush1.msra.mxu0 0.0
        %744 = vmatprep.subr.mxu0 0.0
        %745 = vmatpush1.msra.mxu0 0.0
        %746 = vmatprep.subr.mxu0 0.0
        %747 = vmatpush1.msra.mxu0 0.0
        %748 = vmatprep.subr.mxu0 0.0
        %749 = vmatpush1.msra.mxu0 0.0
        %750 = vmatprep.subr.mxu0 0.0
        %751 = vmatpush1.msra.mxu0 0.0
        %752 = vmatprep.subr.mxu0 0.0
        %753 = vmatpush1.msra.mxu0 0.0
        %754 = vmatprep.subr.mxu0 0.0
        %755 = vmatpush1.msra.mxu0 0.0
        %756 = vmatprep.mubr.f32.mxu0 0.0
        %757 = vmatmul.mubr.f32.gmra.mrb[0].mxu0 %v195
        %v758 = vpop.f32.mrb[0].mxu0
        %v759 = vadd.f32 0.0, %v758
        %v760 = vpop.f32.mrb[0].mxu0
        %761 = vmatprep.mubr.f32.mxu0 0.0
        %762 = vmatmul.mubr.f32.gmra.mrb[0].mxu0 %v198
        %v763 = vpop.f32.mrb[0].mxu0
        %v764 = vadd.f32 0.0, %v763
        %v765 = vpop.f32.mrb[0].mxu0
        %766 = vdwg.mxu0
        %767 = vmatprep.subr.mxu0 0.0
        %768 = vmatpush1.msra.mxu0 %v759
        %769 = vmatprep.subr.mxu0 0.0
        %770 = vmatpush1.msra.mxu0 %v764
        %771 = vmatprep.subr.mxu0 0.0
        %772 = vmatpush1.msra.mxu0 0.0
        %773 = vmatprep.subr.mxu0 0.0
        %774 = vmatpush1.msra.mxu0 0.0
        %775 = vmatprep.subr.mxu0 0.0
        %776 = vmatpush1.msra.mxu0 0.0
        %777 = vmatprep.subr.mxu0 0.0
        %778 = vmatpush1.msra.mxu0 0.0
        %779 = vmatprep.subr.mxu0 0.0
        %780 = vmatpush1.msra.mxu0 0.0
        %781 = vmatprep.subr.mxu0 0.0
        %782 = vmatpush1.msra.mxu0 0.0
        %783 = vmatprep.subr.mxu0 0.0
        %784 = vmatpush1.msra.mxu0 0.0
        %785 = vmatprep.subr.mxu0 0.0
        %786 = vmatpush1.msra.mxu0 0.0
        %787 = vmatprep.subr.mxu0 0.0
        %788 = vmatpush1.msra.mxu0 0.0
        %789 = vmatprep.subr.mxu0 0.0
        %790 = vmatpush1.msra.mxu0 0.0
        %791 = vmatprep.subr.mxu0 0.0
        %792 = vmatpush1.msra.mxu0 0.0
        %793 = vmatprep.subr.mxu0 0.0
        %794 = vmatpush1.msra.mxu0 0.0
        %795 = vmatprep.subr.mxu0 0.0
        %796 = vmatpush1.msra.mxu0 0.0
        %797 = vmatprep.subr.mxu0 0.0
        %798 = vmatpush1.msra.mxu0 0.0
        %799 = vmatprep.subr.mxu0 0.0
        %800 = vmatpush1.msra.mxu0 0.0
        %801 = vmatprep.subr.mxu0 0.0
        %802 = vmatpush1.msra.mxu0 0.0
        %803 = vmatprep.subr.mxu0 0.0
        %804 = vmatpush1.msra.mxu0 0.0
        %805 = vmatprep.subr.mxu0 0.0
        %806 = vmatpush1.msra.mxu0 0.0
        %807 = vmatprep.subr.mxu0 0.0
        %808 = vmatpush1.msra.mxu0 0.0
        %809 = vmatprep.subr.mxu0 0.0
        %810 = vmatpush1.msra.mxu0 0.0
        %811 = vmatprep.subr.mxu0 0.0
        %812 = vmatpush1.msra.mxu0 0.0
        %813 = vmatprep.subr.mxu0 0.0
        %814 = vmatpush1.msra.mxu0 0.0
        %815 = vmatprep.subr.mxu0 0.0
        %816 = vmatpush1.msra.mxu0 0.0
        %817 = vmatprep.subr.mxu0 0.0
        %818 = vmatpush1.msra.mxu0 0.0
        %819 = vmatprep.subr.mxu0 0.0
        %820 = vmatpush1.msra.mxu0 0.0
        %821 = vmatprep.subr.mxu0 0.0
        %822 = vmatpush1.msra.mxu0 0.0
        %823 = vmatprep.subr.mxu0 0.0
        %824 = vmatpush1.msra.mxu0 0.0
        %825 = vmatprep.subr.mxu0 0.0
        %826 = vmatpush1.msra.mxu0 0.0
        %827 = vmatprep.subr.mxu0 0.0
        %828 = vmatpush1.msra.mxu0 0.0
        %829 = vmatprep.subr.mxu0 0.0
        %830 = vmatpush1.msra.mxu0 0.0
        %831 = vmatprep.mubr.f32.mxu0 0.0
        %832 = vmatmul.mubr.f32.gmra.mrb[0].mxu0 %v276
        %v833 = vpop.f32.mrb[0].mxu0
        %v834 = vadd.f32 0.0, %v833
        %v835 = vpop.f32.mrb[0].mxu0
        %836 = vmatprep.mubr.f32.mxu0 0.0
        %837 = vmatmul.mubr.f32.gmra.mrb[0].mxu0 %v279
        %v838 = vpop.f32.mrb[0].mxu0
        %v839 = vadd.f32 0.0, %v838
        %v840 = vpop.f32.mrb[0].mxu0
        %841 = vmatprep.mubr.f32.mxu0 0.0
        %842 = vmatmul.mubr.f32.gmra.mrb[0].mxu0 %v282
        %v843 = vpop.f32.mrb[0].mxu0
        %v844 = vadd.f32 0.0, %v843
        %v845 = vpop.f32.mrb[0].mxu0
        %846 = vmatprep.mubr.f32.mxu0 0.0
        %847 = vmatmul.mubr.f32.gmra.mrb[0].mxu0 %v285
        %v848 = vpop.f32.mrb[0].mxu0
        %v849 = vadd.f32 0.0, %v848
        %v850 = vpop.f32.mrb[0].mxu0
        %851 = vdwg.mxu0
        %s852 = sld [smem:[#allocation3]]
        %v853 = vstv %s852
        %v854 = vmul.f32 %v853, %v354
        %s855 = sld [smem:[#allocation3 + $0x1]]
        %v856 = vstv %s855
        %v857 = vmul.f32 %v856, %v514
        %v858 = vadd.f32 %v854, %v857
        %s859 = sld [smem:[#allocation3 + $0x2]]
        %v860 = vstv %s859
        %v861 = vmul.f32 %v860, %v674
        %v862 = vadd.f32 %v858, %v861
        %s863 = sld [smem:[#allocation3 + $0x3]]
        %v864 = vstv %s863
        %v865 = vmul.f32 %v864, %v359
        %v866 = vadd.f32 %v862, %v865
        %s867 = sld [smem:[#allocation3 + $0x4]]
        %v868 = vstv %s867
        %v869 = vmul.f32 %v868, %v519
        %v870 = vadd.f32 %v866, %v869
        %s871 = sld [smem:[#allocation3 + $0x5]]
        %v872 = vstv %s871
        %v873 = vmul.f32 %v872, %v679
        %v874 = vadd.f32 %v870, %v873
        %s875 = sld [smem:[#allocation3 + $0x6]]
        %v876 = vstv %s875
        %v877 = vmul.f32 %v876, %v364
        %v878 = vadd.f32 %v874, %v877
        %s879 = sld [smem:[#allocation3 + $0x7]]
        %v880 = vstv %s879
        %v881 = vmul.f32 %v880, %v524
        %v882 = vadd.f32 %v878, %v881
        %s883 = sld [smem:[#allocation3 + $0x8]]
        %v884 = vstv %s883
        %v885 = vmul.f32 %v884, %v684
        %v886 = vadd.f32 %v882, %v885
        %v887 = vmul.f32 %v853, %v514
        %v888 = vmul.f32 %v856, %v674
        %v889 = vadd.f32 %v887, %v888
        %v890 = vmul.f32 %v860, %v834
        %v891 = vadd.f32 %v889, %v890
        %v892 = vmul.f32 %v864, %v519
        %v893 = vadd.f32 %v891, %v892
        %v894 = vmul.f32 %v868, %v679
        %v895 = vadd.f32 %v893, %v894
        %v896 = vmul.f32 %v872, %v839
        %v897 = vadd.f32 %v895, %v896
        %v898 = vmul.f32 %v876, %v524
        %v899 = vadd.f32 %v897, %v898
        %v900 = vmul.f32 %v880, %v684
        %v901 = vadd.f32 %v899, %v900
        %v902 = vmul.f32 %v884, %v844
        %v903 = vadd.f32 %v901, %v902
        %v904 = vmul.f32 %v853, %v359
        %v905 = vmul.f32 %v856, %v519
        %v906 = vadd.f32 %v904, %v905
        %v907 = vmul.f32 %v860, %v679
        %v908 = vadd.f32 %v906, %v907
        %v909 = vmul.f32 %v864, %v364
        %v910 = vadd.f32 %v908, %v909
        %v911 = vmul.f32 %v868, %v524
        %v912 = vadd.f32 %v910, %v911
        %v913 = vmul.f32 %v872, %v684
        %v914 = vadd.f32 %v912, %v913
        %v915 = vmul.f32 %v876, %v369
        %v916 = vadd.f32 %v914, %v915
        %v917 = vmul.f32 %v880, %v529
        %v918 = vadd.f32 %v916, %v917
        %v919 = vmul.f32 %v884, %v689
        %v920 = vadd.f32 %v918, %v919
        %v921 = vmul.f32 %v853, %v519
        %v922 = vmul.f32 %v856, %v679
        %v923 = vadd.f32 %v921, %v922
        %v924 = vmul.f32 %v860, %v839
        %v925 = vadd.f32 %v923, %v924
        %v926 = vmul.f32 %v864, %v524
        %v927 = vadd.f32 %v925, %v926
        %v928 = vmul.f32 %v868, %v684
        %v929 = vadd.f32 %v927, %v928
        %v930 = vmul.f32 %v872, %v844
        %v931 = vadd.f32 %v929, %v930
        %v932 = vmul.f32 %v876, %v529
        %v933 = vadd.f32 %v931, %v932
        %v934 = vmul.f32 %v880, %v689
        %v935 = vadd.f32 %v933, %v934
        %v936 = vmul.f32 %v884, %v849
        %v937 = vadd.f32 %v935, %v936
        %s938 = sld [smem:[#allocation3 + $0x24]]
        %v939 = vstv %s938
        %v940 = vmul.f32 %v939, %v354
        %s941 = sld [smem:[#allocation3 + $0x25]]
        %v942 = vstv %s941
        %v943 = vmul.f32 %v942, %v514
        %v944 = vadd.f32 %v940, %v943
        %s945 = sld [smem:[#allocation3 + $0x26]]
        %v946 = vstv %s945
        %v947 = vmul.f32 %v946, %v674
        %v948 = vadd.f32 %v944, %v947
        %s949 = sld [smem:[#allocation3 + $0x27]]
        %v950 = vstv %s949
        %v951 = vmul.f32 %v950, %v359
        %v952 = vadd.f32 %v948, %v951
        %s953 = sld [smem:[#allocation3 + $0x28]]
        %v954 = vstv %s953
        %v955 = vmul.f32 %v954, %v519
        %v956 = vadd.f32 %v952, %v955
        %s957 = sld [smem:[#allocation3 + $0x29]]
        %v958 = vstv %s957
        %v959 = vmul.f32 %v958, %v679
        %v960 = vadd.f32 %v956, %v959
        %s961 = sld [smem:[#allocation3 + $0x2a]]
        %v962 = vstv %s961
        %v963 = vmul.f32 %v962, %v364
        %v964 = vadd.f32 %v960, %v963
        %s965 = sld [smem:[#allocation3 + $0x2b]]
        %v966 = vstv %s965
        %v967 = vmul.f32 %v966, %v524
        %v968 = vadd.f32 %v964, %v967
        %s969 = sld [smem:[#allocation3 + $0x2c]]
        %v970 = vstv %s969
        %v971 = vmul.f32 %v970, %v684
        %v972 = vadd.f32 %v968, %v971
        %v973 = vmul.f32 %v939, %v514
        %v974 = vmul.f32 %v942, %v674
        %v975 = vadd.f32 %v973, %v974
        %v976 = vmul.f32 %v946, %v834
        %v977 = vadd.f32 %v975, %v976
        %v978 = vmul.f32 %v950, %v519
        %v979 = vadd.f32 %v977, %v978
        %v980 = vmul.f32 %v954, %v679
        %v981 = vadd.f32 %v979, %v980
        %v982 = vmul.f32 %v958, %v839
        %v983 = vadd.f32 %v981, %v982
        %v984 = vmul.f32 %v962, %v524
        %v985 = vadd.f32 %v983, %v984
        %v986 = vmul.f32 %v966, %v684
        %v987 = vadd.f32 %v985, %v986
        %v988 = vmul.f32 %v970, %v844
        %v989 = vadd.f32 %v987, %v988
        %v990 = vmul.f32 %v939, %v359
        %v991 = vmul.f32 %v942, %v519
        %v992 = vadd.f32 %v990, %v991
        %v993 = vmul.f32 %v946, %v679
        %v994 = vadd.f32 %v992, %v993
        %v995 = vmul.f32 %v950, %v364
        %v996 = vadd.f32 %v994, %v995
        %v997 = vmul.f32 %v954, %v524
        %v998 = vadd.f32 %v996, %v997
        %v999 = vmul.f32 %v958, %v684
        %v1000 = vadd.f32 %v998, %v999
        %v1001 = vmul.f32 %v962, %v369
        %v1002 = vadd.f32 %v1000, %v1001
        %v1003 = vmul.f32 %v966, %v529
        %v1004 = vadd.f32 %v1002, %v1003
        %v1005 = vmul.f32 %v970, %v689
        %v1006 = vadd.f32 %v1004, %v1005
        %v1007 = vmul.f32 %v939, %v519
        %v1008 = vmul.f32 %v942, %v679
        %v1009 = vadd.f32 %v1007, %v1008
        %v1010 = vmul.f32 %v946, %v839
        %v1011 = vadd.f32 %v1009, %v1010
        %v1012 = vmul.f32 %v950, %v524
        %v1013 = vadd.f32 %v1011, %v1012
        %v1014 = vmul.f32 %v954, %v684
        %v1015 = vadd.f32 %v1013, %v1014
        %v1016 = vmul.f32 %v958, %v844
        %v1017 = vadd.f32 %v1015, %v1016
        %v1018 = vmul.f32 %v962, %v529
        %v1019 = vadd.f32 %v1017, %v1018
        %v1020 = vmul.f32 %v966, %v689
        %v1021 = vadd.f32 %v1019, %v1020
        %v1022 = vmul.f32 %v970, %v849
        %v1023 = vadd.f32 %v1021, %v1022
        %s1024 = scalar_lea.vmem %s175, 16
        %v1025 = vld [vmem:[%s1024] sm:$0xff]
        %v1026 = vld [vmem:[%s1024 + $0x8] sm:$0xff]
        %v1028 = vsel %vm193, %v1025, 0
        %v1031 = vsel %vm193, %v1026, 0
        %1033 = vmatprep.subr.mxu0 0.0
        %1034 = vmatpush1.msra.mxu0 %v180
        %1035 = vmatprep.subr.mxu0 0.0
        %1036 = vmatpush1.msra.mxu0 %v181
        %1037 = vmatprep.subr.mxu0 0.0
        %1038 = vmatpush1.msra.mxu0 0.0
        %1039 = vmatprep.subr.mxu0 0.0
        %1040 = vmatpush1.msra.mxu0 0.0
        %1041 = vmatprep.subr.mxu0 0.0
        %1042 = vmatpush1.msra.mxu0 0.0
        %1043 = vmatprep.subr.mxu0 0.0
        %1044 = vmatpush1.msra.mxu0 0.0
        %1045 = vmatprep.subr.mxu0 0.0
        %1046 = vmatpush1.msra.mxu0 0.0
        %1047 = vmatprep.subr.mxu0 0.0
        %1048 = vmatpush1.msra.mxu0 0.0
        %1049 = vmatprep.subr.mxu0 0.0
        %1050 = vmatpush1.msra.mxu0 0.0
        %1051 = vmatprep.subr.mxu0 0.0
        %1052 = vmatpush1.msra.mxu0 0.0
        %1053 = vmatprep.subr.mxu0 0.0
        %1054 = vmatpush1.msra.mxu0 0.0
        %1055 = vmatprep.subr.mxu0 0.0
        %1056 = vmatpush1.msra.mxu0 0.0
        %1057 = vmatprep.subr.mxu0 0.0
        %1058 = vmatpush1.msra.mxu0 0.0
        %1059 = vmatprep.subr.mxu0 0.0
        %1060 = vmatpush1.msra.mxu0 0.0
        %1061 = vmatprep.subr.mxu0 0.0
        %1062 = vmatpush1.msra.mxu0 0.0
        %1063 = vmatprep.subr.mxu0 0.0
        %1064 = vmatpush1.msra.mxu0 0.0
        %1065 = vmatprep.subr.mxu0 0.0
        %1066 = vmatpush1.msra.mxu0 0.0
        %1067 = vmatprep.subr.mxu0 0.0
        %1068 = vmatpush1.msra.mxu0 0.0
        %1069 = vmatprep.subr.mxu0 0.0
        %1070 = vmatpush1.msra.mxu0 0.0
        %1071 = vmatprep.subr.mxu0 0.0
        %1072 = vmatpush1.msra.mxu0 0.0
        %1073 = vmatprep.subr.mxu0 0.0
        %1074 = vmatpush1.msra.mxu0 0.0
        %1075 = vmatprep.subr.mxu0 0.0
        %1076 = vmatpush1.msra.mxu0 0.0
        %1077 = vmatprep.subr.mxu0 0.0
        %1078 = vmatpush1.msra.mxu0 0.0
        %1079 = vmatprep.subr.mxu0 0.0
        %1080 = vmatpush1.msra.mxu0 0.0
        %1081 = vmatprep.subr.mxu0 0.0
        %1082 = vmatpush1.msra.mxu0 0.0
        %1083 = vmatprep.subr.mxu0 0.0
        %1084 = vmatpush1.msra.mxu0 0.0
        %1085 = vmatprep.subr.mxu0 0.0
        %1086 = vmatpush1.msra.mxu0 0.0
        %1087 = vmatprep.subr.mxu0 0.0
        %1088 = vmatpush1.msra.mxu0 0.0
        %1089 = vmatprep.subr.mxu0 0.0
        %1090 = vmatpush1.msra.mxu0 0.0
        %1091 = vmatprep.subr.mxu0 0.0
        %1092 = vmatpush1.msra.mxu0 0.0
        %1093 = vmatprep.subr.mxu0 0.0
        %1094 = vmatpush1.msra.mxu0 0.0
        %1095 = vmatprep.subr.mxu0 0.0
        %1096 = vmatpush1.msra.mxu0 0.0
        %1097 = vmatprep.mubr.f32.mxu0 0.0
        %1098 = vmatmul.mubr.f32.gmra.mrb[0].mxu0 %v1028
        %v1099 = vpop.f32.mrb[0].mxu0
        %v1100 = vadd.f32 0.0, %v1099
        %v1101 = vpop.f32.mrb[0].mxu0
        %1102 = vmatprep.mubr.f32.mxu0 0.0
        %1103 = vmatmul.mubr.f32.gmra.mrb[0].mxu0 %v1031
        %v1104 = vpop.f32.mrb[0].mxu0
        %v1105 = vadd.f32 0.0, %v1104
        %v1106 = vpop.f32.mrb[0].mxu0
        %1107 = vdwg.mxu0
        %1108 = vmatprep.subr.mxu0 0.0
        %1109 = vmatpush1.msra.mxu0 %v1100
        %1110 = vmatprep.subr.mxu0 0.0
        %1111 = vmatpush1.msra.mxu0 %v1105
        %1112 = vmatprep.subr.mxu0 0.0
        %1113 = vmatpush1.msra.mxu0 0.0
        %1114 = vmatprep.subr.mxu0 0.0
        %1115 = vmatpush1.msra.mxu0 0.0
        %1116 = vmatprep.subr.mxu0 0.0
        %1117 = vmatpush1.msra.mxu0 0.0
        %1118 = vmatprep.subr.mxu0 0.0
        %1119 = vmatpush1.msra.mxu0 0.0
        %1120 = vmatprep.subr.mxu0 0.0
        %1121 = vmatpush1.msra.mxu0 0.0
        %1122 = vmatprep.subr.mxu0 0.0
        %1123 = vmatpush1.msra.mxu0 0.0
        %1124 = vmatprep.subr.mxu0 0.0
        %1125 = vmatpush1.msra.mxu0 0.0
        %1126 = vmatprep.subr.mxu0 0.0
        %1127 = vmatpush1.msra.mxu0 0.0
        %1128 = vmatprep.subr.mxu0 0.0
        %1129 = vmatpush1.msra.mxu0 0.0
        %1130 = vmatprep.subr.mxu0 0.0
        %1131 = vmatpush1.msra.mxu0 0.0
        %1132 = vmatprep.subr.mxu0 0.0
        %1133 = vmatpush1.msra.mxu0 0.0
        %1134 = vmatprep.subr.mxu0 0.0
        %1135 = vmatpush1.msra.mxu0 0.0
        %1136 = vmatprep.subr.mxu0 0.0
        %1137 = vmatpush1.msra.mxu0 0.0
        %1138 = vmatprep.subr.mxu0 0.0
        %1139 = vmatpush1.msra.mxu0 0.0
        %1140 = vmatprep.subr.mxu0 0.0
        %1141 = vmatpush1.msra.mxu0 0.0
        %1142 = vmatprep.subr.mxu0 0.0
        %1143 = vmatpush1.msra.mxu0 0.0
        %1144 = vmatprep.subr.mxu0 0.0
        %1145 = vmatpush1.msra.mxu0 0.0
        %1146 = vmatprep.subr.mxu0 0.0
        %1147 = vmatpush1.msra.mxu0 0.0
        %1148 = vmatprep.subr.mxu0 0.0
        %1149 = vmatpush1.msra.mxu0 0.0
        %1150 = vmatprep.subr.mxu0 0.0
        %1151 = vmatpush1.msra.mxu0 0.0
        %1152 = vmatprep.subr.mxu0 0.0
        %1153 = vmatpush1.msra.mxu0 0.0
        %1154 = vmatprep.subr.mxu0 0.0
        %1155 = vmatpush1.msra.mxu0 0.0
        %1156 = vmatprep.subr.mxu0 0.0
        %1157 = vmatpush1.msra.mxu0 0.0
        %1158 = vmatprep.subr.mxu0 0.0
        %1159 = vmatpush1.msra.mxu0 0.0
        %1160 = vmatprep.subr.mxu0 0.0
        %1161 = vmatpush1.msra.mxu0 0.0
        %1162 = vmatprep.subr.mxu0 0.0
        %1163 = vmatpush1.msra.mxu0 0.0
        %1164 = vmatprep.subr.mxu0 0.0
        %1165 = vmatpush1.msra.mxu0 0.0
        %1166 = vmatprep.subr.mxu0 0.0
        %1167 = vmatpush1.msra.mxu0 0.0
        %1168 = vmatprep.subr.mxu0 0.0
        %1169 = vmatpush1.msra.mxu0 0.0
        %1170 = vmatprep.subr.mxu0 0.0
        %1171 = vmatpush1.msra.mxu0 0.0
        %1172 = vmatprep.mubr.f32.mxu0 0.0
        %1173 = vmatmul.mubr.f32.gmra.mrb[0].mxu0 %v276
        %v1174 = vpop.f32.mrb[0].mxu0
        %v1175 = vadd.f32 0.0, %v1174
        %v1176 = vpop.f32.mrb[0].mxu0
        %1177 = vmatprep.mubr.f32.mxu0 0.0
        %1178 = vmatmul.mubr.f32.gmra.mrb[0].mxu0 %v279
        %v1179 = vpop.f32.mrb[0].mxu0
        %v1180 = vadd.f32 0.0, %v1179
        %v1181 = vpop.f32.mrb[0].mxu0
        %1182 = vmatprep.mubr.f32.mxu0 0.0
        %1183 = vmatmul.mubr.f32.gmra.mrb[0].mxu0 %v282
        %v1184 = vpop.f32.mrb[0].mxu0
        %v1185 = vadd.f32 0.0, %v1184
        %v1186 = vpop.f32.mrb[0].mxu0
        %1187 = vmatprep.mubr.f32.mxu0 0.0
        %1188 = vmatmul.mubr.f32.gmra.mrb[0].mxu0 %v285
        %v1189 = vpop.f32.mrb[0].mxu0
        %v1190 = vadd.f32 0.0, %v1189
        %v1191 = vpop.f32.mrb[0].mxu0
        %1192 = vdwg.mxu0
        %1193 = vmatprep.subr.mxu0 0.0
        %1194 = vmatpush1.msra.mxu0 %v183
        %1195 = vmatprep.subr.mxu0 0.0
        %1196 = vmatpush1.msra.mxu0 %v184
        %1197 = vmatprep.subr.mxu0 0.0
        %1198 = vmatpush1.msra.mxu0 0.0
        %1199 = vmatprep.subr.mxu0 0.0
        %1200 = vmatpush1.msra.mxu0 0.0
        %1201 = vmatprep.subr.mxu0 0.0
        %1202 = vmatpush1.msra.mxu0 0.0
        %1203 = vmatprep.subr.mxu0 0.0
        %1204 = vmatpush1.msra.mxu0 0.0
        %1205 = vmatprep.subr.mxu0 0.0
        %1206 = vmatpush1.msra.mxu0 0.0
        %1207 = vmatprep.subr.mxu0 0.0
        %1208 = vmatpush1.msra.mxu0 0.0
        %1209 = vmatprep.subr.mxu0 0.0
        %1210 = vmatpush1.msra.mxu0 0.0
        %1211 = vmatprep.subr.mxu0 0.0
        %1212 = vmatpush1.msra.mxu0 0.0
        %1213 = vmatprep.subr.mxu0 0.0
        %1214 = vmatpush1.msra.mxu0 0.0
        %1215 = vmatprep.subr.mxu0 0.0
        %1216 = vmatpush1.msra.mxu0 0.0
        %1217 = vmatprep.subr.mxu0 0.0
        %1218 = vmatpush1.msra.mxu0 0.0
        %1219 = vmatprep.subr.mxu0 0.0
        %1220 = vmatpush1.msra.mxu0 0.0
        %1221 = vmatprep.subr.mxu0 0.0
        %1222 = vmatpush1.msra.mxu0 0.0
        %1223 = vmatprep.subr.mxu0 0.0
        %1224 = vmatpush1.msra.mxu0 0.0
        %1225 = vmatprep.subr.mxu0 0.0
        %1226 = vmatpush1.msra.mxu0 0.0
        %1227 = vmatprep.subr.mxu0 0.0
        %1228 = vmatpush1.msra.mxu0 0.0
        %1229 = vmatprep.subr.mxu0 0.0
        %1230 = vmatpush1.msra.mxu0 0.0
        %1231 = vmatprep.subr.mxu0 0.0
        %1232 = vmatpush1.msra.mxu0 0.0
        %1233 = vmatprep.subr.mxu0 0.0
        %1234 = vmatpush1.msra.mxu0 0.0
        %1235 = vmatprep.subr.mxu0 0.0
        %1236 = vmatpush1.msra.mxu0 0.0
        %1237 = vmatprep.subr.mxu0 0.0
        %1238 = vmatpush1.msra.mxu0 0.0
        %1239 = vmatprep.subr.mxu0 0.0
        %1240 = vmatpush1.msra.mxu0 0.0
        %1241 = vmatprep.subr.mxu0 0.0
        %1242 = vmatpush1.msra.mxu0 0.0
        %1243 = vmatprep.subr.mxu0 0.0
        %1244 = vmatpush1.msra.mxu0 0.0
        %1245 = vmatprep.subr.mxu0 0.0
        %1246 = vmatpush1.msra.mxu0 0.0
        %1247 = vmatprep.subr.mxu0 0.0
        %1248 = vmatpush1.msra.mxu0 0.0
        %1249 = vmatprep.subr.mxu0 0.0
        %1250 = vmatpush1.msra.mxu0 0.0
        %1251 = vmatprep.subr.mxu0 0.0
        %1252 = vmatpush1.msra.mxu0 0.0
        %1253 = vmatprep.subr.mxu0 0.0
        %1254 = vmatpush1.msra.mxu0 0.0
        %1255 = vmatprep.subr.mxu0 0.0
        %1256 = vmatpush1.msra.mxu0 0.0
        %1257 = vmatprep.mubr.f32.mxu0 0.0
        %1258 = vmatmul.mubr.f32.gmra.mrb[0].mxu0 %v1028
        %v1259 = vpop.f32.mrb[0].mxu0
        %v1260 = vadd.f32 0.0, %v1259
        %v1261 = vpop.f32.mrb[0].mxu0
        %1262 = vmatprep.mubr.f32.mxu0 0.0
        %1263 = vmatmul.mubr.f32.gmra.mrb[0].mxu0 %v1031
        %v1264 = vpop.f32.mrb[0].mxu0
        %v1265 = vadd.f32 0.0, %v1264
        %v1266 = vpop.f32.mrb[0].mxu0
        %1267 = vdwg.mxu0
        %1268 = vmatprep.subr.mxu0 0.0
        %1269 = vmatpush1.msra.mxu0 %v1260
        %1270 = vmatprep.subr.mxu0 0.0
        %1271 = vmatpush1.msra.mxu0 %v1265
        %1272 = vmatprep.subr.mxu0 0.0
        %1273 = vmatpush1.msra.mxu0 0.0
        %1274 = vmatprep.subr.mxu0 0.0
        %1275 = vmatpush1.msra.mxu0 0.0
        %1276 = vmatprep.subr.mxu0 0.0
        %1277 = vmatpush1.msra.mxu0 0.0
        %1278 = vmatprep.subr.mxu0 0.0
        %1279 = vmatpush1.msra.mxu0 0.0
        %1280 = vmatprep.subr.mxu0 0.0
        %1281 = vmatpush1.msra.mxu0 0.0
        %1282 = vmatprep.subr.mxu0 0.0
        %1283 = vmatpush1.msra.mxu0 0.0
        %1284 = vmatprep.subr.mxu0 0.0
        %1285 = vmatpush1.msra.mxu0 0.0
        %1286 = vmatprep.subr.mxu0 0.0
        %1287 = vmatpush1.msra.mxu0 0.0
        %1288 = vmatprep.subr.mxu0 0.0
        %1289 = vmatpush1.msra.mxu0 0.0
        %1290 = vmatprep.subr.mxu0 0.0
        %1291 = vmatpush1.msra.mxu0 0.0
        %1292 = vmatprep.subr.mxu0 0.0
        %1293 = vmatpush1.msra.mxu0 0.0
        %1294 = vmatprep.subr.mxu0 0.0
        %1295 = vmatpush1.msra.mxu0 0.0
        %1296 = vmatprep.subr.mxu0 0.0
        %1297 = vmatpush1.msra.mxu0 0.0
        %1298 = vmatprep.subr.mxu0 0.0
        %1299 = vmatpush1.msra.mxu0 0.0
        %1300 = vmatprep.subr.mxu0 0.0
        %1301 = vmatpush1.msra.mxu0 0.0
        %1302 = vmatprep.subr.mxu0 0.0
        %1303 = vmatpush1.msra.mxu0 0.0
        %1304 = vmatprep.subr.mxu0 0.0
        %1305 = vmatpush1.msra.mxu0 0.0
        %1306 = vmatprep.subr.mxu0 0.0
        %1307 = vmatpush1.msra.mxu0 0.0
        %1308 = vmatprep.subr.mxu0 0.0
        %1309 = vmatpush1.msra.mxu0 0.0
        %1310 = vmatprep.subr.mxu0 0.0
        %1311 = vmatpush1.msra.mxu0 0.0
        %1312 = vmatprep.subr.mxu0 0.0
        %1313 = vmatpush1.msra.mxu0 0.0
        %1314 = vmatprep.subr.mxu0 0.0
        %1315 = vmatpush1.msra.mxu0 0.0
        %1316 = vmatprep.subr.mxu0 0.0
        %1317 = vmatpush1.msra.mxu0 0.0
        %1318 = vmatprep.subr.mxu0 0.0
        %1319 = vmatpush1.msra.mxu0 0.0
        %1320 = vmatprep.subr.mxu0 0.0
        %1321 = vmatpush1.msra.mxu0 0.0
        %1322 = vmatprep.subr.mxu0 0.0
        %1323 = vmatpush1.msra.mxu0 0.0
        %1324 = vmatprep.subr.mxu0 0.0
        %1325 = vmatpush1.msra.mxu0 0.0
        %1326 = vmatprep.subr.mxu0 0.0
        %1327 = vmatpush1.msra.mxu0 0.0
        %1328 = vmatprep.subr.mxu0 0.0
        %1329 = vmatpush1.msra.mxu0 0.0
        %1330 = vmatprep.subr.mxu0 0.0
        %1331 = vmatpush1.msra.mxu0 0.0
        %1332 = vmatprep.mubr.f32.mxu0 0.0
        %1333 = vmatmul.mubr.f32.gmra.mrb[0].mxu0 %v276
        %v1334 = vpop.f32.mrb[0].mxu0
        %v1335 = vadd.f32 0.0, %v1334
        %v1336 = vpop.f32.mrb[0].mxu0
        %1337 = vmatprep.mubr.f32.mxu0 0.0
        %1338 = vmatmul.mubr.f32.gmra.mrb[0].mxu0 %v279
        %v1339 = vpop.f32.mrb[0].mxu0
        %v1340 = vadd.f32 0.0, %v1339
        %v1341 = vpop.f32.mrb[0].mxu0
        %1342 = vmatprep.mubr.f32.mxu0 0.0
        %1343 = vmatmul.mubr.f32.gmra.mrb[0].mxu0 %v282
        %v1344 = vpop.f32.mrb[0].mxu0
        %v1345 = vadd.f32 0.0, %v1344
        %v1346 = vpop.f32.mrb[0].mxu0
        %1347 = vmatprep.mubr.f32.mxu0 0.0
        %1348 = vmatmul.mubr.f32.gmra.mrb[0].mxu0 %v285
        %v1349 = vpop.f32.mrb[0].mxu0
        %v1350 = vadd.f32 0.0, %v1349
        %v1351 = vpop.f32.mrb[0].mxu0
        %1352 = vdwg.mxu0
        %1353 = vmatprep.subr.mxu0 0.0
        %1354 = vmatpush1.msra.mxu0 %v186
        %1355 = vmatprep.subr.mxu0 0.0
        %1356 = vmatpush1.msra.mxu0 %v187
        %1357 = vmatprep.subr.mxu0 0.0
        %1358 = vmatpush1.msra.mxu0 0.0
        %1359 = vmatprep.subr.mxu0 0.0
        %1360 = vmatpush1.msra.mxu0 0.0
        %1361 = vmatprep.subr.mxu0 0.0
        %1362 = vmatpush1.msra.mxu0 0.0
        %1363 = vmatprep.subr.mxu0 0.0
        %1364 = vmatpush1.msra.mxu0 0.0
        %1365 = vmatprep.subr.mxu0 0.0
        %1366 = vmatpush1.msra.mxu0 0.0
        %1367 = vmatprep.subr.mxu0 0.0
        %1368 = vmatpush1.msra.mxu0 0.0
        %1369 = vmatprep.subr.mxu0 0.0
        %1370 = vmatpush1.msra.mxu0 0.0
        %1371 = vmatprep.subr.mxu0 0.0
        %1372 = vmatpush1.msra.mxu0 0.0
        %1373 = vmatprep.subr.mxu0 0.0
        %1374 = vmatpush1.msra.mxu0 0.0
        %1375 = vmatprep.subr.mxu0 0.0
        %1376 = vmatpush1.msra.mxu0 0.0
        %1377 = vmatprep.subr.mxu0 0.0
        %1378 = vmatpush1.msra.mxu0 0.0
        %1379 = vmatprep.subr.mxu0 0.0
        %1380 = vmatpush1.msra.mxu0 0.0
        %1381 = vmatprep.subr.mxu0 0.0
        %1382 = vmatpush1.msra.mxu0 0.0
        %1383 = vmatprep.subr.mxu0 0.0
        %1384 = vmatpush1.msra.mxu0 0.0
        %1385 = vmatprep.subr.mxu0 0.0
        %1386 = vmatpush1.msra.mxu0 0.0
        %1387 = vmatprep.subr.mxu0 0.0
        %1388 = vmatpush1.msra.mxu0 0.0
        %1389 = vmatprep.subr.mxu0 0.0
        %1390 = vmatpush1.msra.mxu0 0.0
        %1391 = vmatprep.subr.mxu0 0.0
        %1392 = vmatpush1.msra.mxu0 0.0
        %1393 = vmatprep.subr.mxu0 0.0
        %1394 = vmatpush1.msra.mxu0 0.0
        %1395 = vmatprep.subr.mxu0 0.0
        %1396 = vmatpush1.msra.mxu0 0.0
        %1397 = vmatprep.subr.mxu0 0.0
        %1398 = vmatpush1.msra.mxu0 0.0
        %1399 = vmatprep.subr.mxu0 0.0
        %1400 = vmatpush1.msra.mxu0 0.0
        %1401 = vmatprep.subr.mxu0 0.0
        %1402 = vmatpush1.msra.mxu0 0.0
        %1403 = vmatprep.subr.mxu0 0.0
        %1404 = vmatpush1.msra.mxu0 0.0
        %1405 = vmatprep.subr.mxu0 0.0
        %1406 = vmatpush1.msra.mxu0 0.0
        %1407 = vmatprep.subr.mxu0 0.0
        %1408 = vmatpush1.msra.mxu0 0.0
        %1409 = vmatprep.subr.mxu0 0.0
        %1410 = vmatpush1.msra.mxu0 0.0
        %1411 = vmatprep.subr.mxu0 0.0
        %1412 = vmatpush1.msra.mxu0 0.0
        %1413 = vmatprep.subr.mxu0 0.0
        %1414 = vmatpush1.msra.mxu0 0.0
        %1415 = vmatprep.subr.mxu0 0.0
        %1416 = vmatpush1.msra.mxu0 0.0
        %1417 = vmatprep.mubr.f32.mxu0 0.0
        %1418 = vmatmul.mubr.f32.gmra.mrb[0].mxu0 %v1028
        %v1419 = vpop.f32.mrb[0].mxu0
        %v1420 = vadd.f32 0.0, %v1419
        %v1421 = vpop.f32.mrb[0].mxu0
        %1422 = vmatprep.mubr.f32.mxu0 0.0
        %1423 = vmatmul.mubr.f32.gmra.mrb[0].mxu0 %v1031
        %v1424 = vpop.f32.mrb[0].mxu0
        %v1425 = vadd.f32 0.0, %v1424
        %v1426 = vpop.f32.mrb[0].mxu0
        %1427 = vdwg.mxu0
        %1428 = vmatprep.subr.mxu0 0.0
        %1429 = vmatpush1.msra.mxu0 %v1420
        %1430 = vmatprep.subr.mxu0 0.0
        %1431 = vmatpush1.msra.mxu0 %v1425
        %1432 = vmatprep.subr.mxu0 0.0
        %1433 = vmatpush1.msra.mxu0 0.0
        %1434 = vmatprep.subr.mxu0 0.0
        %1435 = vmatpush1.msra.mxu0 0.0
        %1436 = vmatprep.subr.mxu0 0.0
        %1437 = vmatpush1.msra.mxu0 0.0
        %1438 = vmatprep.subr.mxu0 0.0
        %1439 = vmatpush1.msra.mxu0 0.0
        %1440 = vmatprep.subr.mxu0 0.0
        %1441 = vmatpush1.msra.mxu0 0.0
        %1442 = vmatprep.subr.mxu0 0.0
        %1443 = vmatpush1.msra.mxu0 0.0
        %1444 = vmatprep.subr.mxu0 0.0
        %1445 = vmatpush1.msra.mxu0 0.0
        %1446 = vmatprep.subr.mxu0 0.0
        %1447 = vmatpush1.msra.mxu0 0.0
        %1448 = vmatprep.subr.mxu0 0.0
        %1449 = vmatpush1.msra.mxu0 0.0
        %1450 = vmatprep.subr.mxu0 0.0
        %1451 = vmatpush1.msra.mxu0 0.0
        %1452 = vmatprep.subr.mxu0 0.0
        %1453 = vmatpush1.msra.mxu0 0.0
        %1454 = vmatprep.subr.mxu0 0.0
        %1455 = vmatpush1.msra.mxu0 0.0
        %1456 = vmatprep.subr.mxu0 0.0
        %1457 = vmatpush1.msra.mxu0 0.0
        %1458 = vmatprep.subr.mxu0 0.0
        %1459 = vmatpush1.msra.mxu0 0.0
        %1460 = vmatprep.subr.mxu0 0.0
        %1461 = vmatpush1.msra.mxu0 0.0
        %1462 = vmatprep.subr.mxu0 0.0
        %1463 = vmatpush1.msra.mxu0 0.0
        %1464 = vmatprep.subr.mxu0 0.0
        %1465 = vmatpush1.msra.mxu0 0.0
        %1466 = vmatprep.subr.mxu0 0.0
        %1467 = vmatpush1.msra.mxu0 0.0
        %1468 = vmatprep.subr.mxu0 0.0
        %1469 = vmatpush1.msra.mxu0 0.0
        %1470 = vmatprep.subr.mxu0 0.0
        %1471 = vmatpush1.msra.mxu0 0.0
        %1472 = vmatprep.subr.mxu0 0.0
        %1473 = vmatpush1.msra.mxu0 0.0
        %1474 = vmatprep.subr.mxu0 0.0
        %1475 = vmatpush1.msra.mxu0 0.0
        %1476 = vmatprep.subr.mxu0 0.0
        %1477 = vmatpush1.msra.mxu0 0.0
        %1478 = vmatprep.subr.mxu0 0.0
        %1479 = vmatpush1.msra.mxu0 0.0
        %1480 = vmatprep.subr.mxu0 0.0
        %1481 = vmatpush1.msra.mxu0 0.0
        %1482 = vmatprep.subr.mxu0 0.0
        %1483 = vmatpush1.msra.mxu0 0.0
        %1484 = vmatprep.subr.mxu0 0.0
        %1485 = vmatpush1.msra.mxu0 0.0
        %1486 = vmatprep.subr.mxu0 0.0
        %1487 = vmatpush1.msra.mxu0 0.0
        %1488 = vmatprep.subr.mxu0 0.0
        %1489 = vmatpush1.msra.mxu0 0.0
        %1490 = vmatprep.subr.mxu0 0.0
        %1491 = vmatpush1.msra.mxu0 0.0
        %1492 = vmatprep.mubr.f32.mxu0 0.0
        %1493 = vmatmul.mubr.f32.gmra.mrb[0].mxu0 %v276
        %v1494 = vpop.f32.mrb[0].mxu0
        %v1495 = vadd.f32 0.0, %v1494
        %v1496 = vpop.f32.mrb[0].mxu0
        %1497 = vmatprep.mubr.f32.mxu0 0.0
        %1498 = vmatmul.mubr.f32.gmra.mrb[0].mxu0 %v279
        %v1499 = vpop.f32.mrb[0].mxu0
        %v1500 = vadd.f32 0.0, %v1499
        %v1501 = vpop.f32.mrb[0].mxu0
        %1502 = vmatprep.mubr.f32.mxu0 0.0
        %1503 = vmatmul.mubr.f32.gmra.mrb[0].mxu0 %v282
        %v1504 = vpop.f32.mrb[0].mxu0
        %v1505 = vadd.f32 0.0, %v1504
        %v1506 = vpop.f32.mrb[0].mxu0
        %1507 = vmatprep.mubr.f32.mxu0 0.0
        %1508 = vmatmul.mubr.f32.gmra.mrb[0].mxu0 %v285
        %v1509 = vpop.f32.mrb[0].mxu0
        %v1510 = vadd.f32 0.0, %v1509
        %v1511 = vpop.f32.mrb[0].mxu0
        %1512 = vdwg.mxu0
        %1513 = vmatprep.subr.mxu0 0.0
        %1514 = vmatpush1.msra.mxu0 %v189
        %1515 = vmatprep.subr.mxu0 0.0
        %1516 = vmatpush1.msra.mxu0 %v190
        %1517 = vmatprep.subr.mxu0 0.0
        %1518 = vmatpush1.msra.mxu0 0.0
        %1519 = vmatprep.subr.mxu0 0.0
        %1520 = vmatpush1.msra.mxu0 0.0
        %1521 = vmatprep.subr.mxu0 0.0
        %1522 = vmatpush1.msra.mxu0 0.0
        %1523 = vmatprep.subr.mxu0 0.0
        %1524 = vmatpush1.msra.mxu0 0.0
        %1525 = vmatprep.subr.mxu0 0.0
        %1526 = vmatpush1.msra.mxu0 0.0
        %1527 = vmatprep.subr.mxu0 0.0
        %1528 = vmatpush1.msra.mxu0 0.0
        %1529 = vmatprep.subr.mxu0 0.0
        %1530 = vmatpush1.msra.mxu0 0.0
        %1531 = vmatprep.subr.mxu0 0.0
        %1532 = vmatpush1.msra.mxu0 0.0
        %1533 = vmatprep.subr.mxu0 0.0
        %1534 = vmatpush1.msra.mxu0 0.0
        %1535 = vmatprep.subr.mxu0 0.0
        %1536 = vmatpush1.msra.mxu0 0.0
        %1537 = vmatprep.subr.mxu0 0.0
        %1538 = vmatpush1.msra.mxu0 0.0
        %1539 = vmatprep.subr.mxu0 0.0
        %1540 = vmatpush1.msra.mxu0 0.0
        %1541 = vmatprep.subr.mxu0 0.0
        %1542 = vmatpush1.msra.mxu0 0.0
        %1543 = vmatprep.subr.mxu0 0.0
        %1544 = vmatpush1.msra.mxu0 0.0
        %1545 = vmatprep.subr.mxu0 0.0
        %1546 = vmatpush1.msra.mxu0 0.0
        %1547 = vmatprep.subr.mxu0 0.0
        %1548 = vmatpush1.msra.mxu0 0.0
        %1549 = vmatprep.subr.mxu0 0.0
        %1550 = vmatpush1.msra.mxu0 0.0
        %1551 = vmatprep.subr.mxu0 0.0
        %1552 = vmatpush1.msra.mxu0 0.0
        %1553 = vmatprep.subr.mxu0 0.0
        %1554 = vmatpush1.msra.mxu0 0.0
        %1555 = vmatprep.subr.mxu0 0.0
        %1556 = vmatpush1.msra.mxu0 0.0
        %1557 = vmatprep.subr.mxu0 0.0
        %1558 = vmatpush1.msra.mxu0 0.0
        %1559 = vmatprep.subr.mxu0 0.0
        %1560 = vmatpush1.msra.mxu0 0.0
        %1561 = vmatprep.subr.mxu0 0.0
        %1562 = vmatpush1.msra.mxu0 0.0
        %1563 = vmatprep.subr.mxu0 0.0
        %1564 = vmatpush1.msra.mxu0 0.0
        %1565 = vmatprep.subr.mxu0 0.0
        %1566 = vmatpush1.msra.mxu0 0.0
        %1567 = vmatprep.subr.mxu0 0.0
        %1568 = vmatpush1.msra.mxu0 0.0
        %1569 = vmatprep.subr.mxu0 0.0
        %1570 = vmatpush1.msra.mxu0 0.0
        %1571 = vmatprep.subr.mxu0 0.0
        %1572 = vmatpush1.msra.mxu0 0.0
        %1573 = vmatprep.subr.mxu0 0.0
        %1574 = vmatpush1.msra.mxu0 0.0
        %1575 = vmatprep.subr.mxu0 0.0
        %1576 = vmatpush1.msra.mxu0 0.0
        %1577 = vmatprep.mubr.f32.mxu0 0.0
        %1578 = vmatmul.mubr.f32.gmra.mrb[0].mxu0 %v1028
        %v1579 = vpop.f32.mrb[0].mxu0
        %v1580 = vadd.f32 0.0, %v1579
        %v1581 = vpop.f32.mrb[0].mxu0
        %1582 = vmatprep.mubr.f32.mxu0 0.0
        %1583 = vmatmul.mubr.f32.gmra.mrb[0].mxu0 %v1031
        %v1584 = vpop.f32.mrb[0].mxu0
        %v1585 = vadd.f32 0.0, %v1584
        %v1586 = vpop.f32.mrb[0].mxu0
        %1587 = vdwg.mxu0
        %1588 = vmatprep.subr.mxu0 0.0
        %1589 = vmatpush1.msra.mxu0 %v1580
        %1590 = vmatprep.subr.mxu0 0.0
        %1591 = vmatpush1.msra.mxu0 %v1585
        %1592 = vmatprep.subr.mxu0 0.0
        %1593 = vmatpush1.msra.mxu0 0.0
        %1594 = vmatprep.subr.mxu0 0.0
        %1595 = vmatpush1.msra.mxu0 0.0
        %1596 = vmatprep.subr.mxu0 0.0
        %1597 = vmatpush1.msra.mxu0 0.0
        %1598 = vmatprep.subr.mxu0 0.0
        %1599 = vmatpush1.msra.mxu0 0.0
        %1600 = vmatprep.subr.mxu0 0.0
        %1601 = vmatpush1.msra.mxu0 0.0
        %1602 = vmatprep.subr.mxu0 0.0
        %1603 = vmatpush1.msra.mxu0 0.0
        %1604 = vmatprep.subr.mxu0 0.0
        %1605 = vmatpush1.msra.mxu0 0.0
        %1606 = vmatprep.subr.mxu0 0.0
        %1607 = vmatpush1.msra.mxu0 0.0
        %1608 = vmatprep.subr.mxu0 0.0
        %1609 = vmatpush1.msra.mxu0 0.0
        %1610 = vmatprep.subr.mxu0 0.0
        %1611 = vmatpush1.msra.mxu0 0.0
        %1612 = vmatprep.subr.mxu0 0.0
        %1613 = vmatpush1.msra.mxu0 0.0
        %1614 = vmatprep.subr.mxu0 0.0
        %1615 = vmatpush1.msra.mxu0 0.0
        %1616 = vmatprep.subr.mxu0 0.0
        %1617 = vmatpush1.msra.mxu0 0.0
        %1618 = vmatprep.subr.mxu0 0.0
        %1619 = vmatpush1.msra.mxu0 0.0
        %1620 = vmatprep.subr.mxu0 0.0
        %1621 = vmatpush1.msra.mxu0 0.0
        %1622 = vmatprep.subr.mxu0 0.0
        %1623 = vmatpush1.msra.mxu0 0.0
        %1624 = vmatprep.subr.mxu0 0.0
        %1625 = vmatpush1.msra.mxu0 0.0
        %1626 = vmatprep.subr.mxu0 0.0
        %1627 = vmatpush1.msra.mxu0 0.0
        %1628 = vmatprep.subr.mxu0 0.0
        %1629 = vmatpush1.msra.mxu0 0.0
        %1630 = vmatprep.subr.mxu0 0.0
        %1631 = vmatpush1.msra.mxu0 0.0
        %1632 = vmatprep.subr.mxu0 0.0
        %1633 = vmatpush1.msra.mxu0 0.0
        %1634 = vmatprep.subr.mxu0 0.0
        %1635 = vmatpush1.msra.mxu0 0.0
        %1636 = vmatprep.subr.mxu0 0.0
        %1637 = vmatpush1.msra.mxu0 0.0
        %1638 = vmatprep.subr.mxu0 0.0
        %1639 = vmatpush1.msra.mxu0 0.0
        %1640 = vmatprep.subr.mxu0 0.0
        %1641 = vmatpush1.msra.mxu0 0.0
        %1642 = vmatprep.subr.mxu0 0.0
        %1643 = vmatpush1.msra.mxu0 0.0
        %1644 = vmatprep.subr.mxu0 0.0
        %1645 = vmatpush1.msra.mxu0 0.0
        %1646 = vmatprep.subr.mxu0 0.0
        %1647 = vmatpush1.msra.mxu0 0.0
        %1648 = vmatprep.subr.mxu0 0.0
        %1649 = vmatpush1.msra.mxu0 0.0
        %1650 = vmatprep.subr.mxu0 0.0
        %1651 = vmatpush1.msra.mxu0 0.0
        %1652 = vmatprep.mubr.f32.mxu0 0.0
        %1653 = vmatmul.mubr.f32.gmra.mrb[0].mxu0 %v276
        %v1654 = vpop.f32.mrb[0].mxu0
        %v1655 = vadd.f32 0.0, %v1654
        %v1656 = vpop.f32.mrb[0].mxu0
        %1657 = vmatprep.mubr.f32.mxu0 0.0
        %1658 = vmatmul.mubr.f32.gmra.mrb[0].mxu0 %v279
        %v1659 = vpop.f32.mrb[0].mxu0
        %v1660 = vadd.f32 0.0, %v1659
        %v1661 = vpop.f32.mrb[0].mxu0
        %1662 = vmatprep.mubr.f32.mxu0 0.0
        %1663 = vmatmul.mubr.f32.gmra.mrb[0].mxu0 %v282
        %v1664 = vpop.f32.mrb[0].mxu0
        %v1665 = vadd.f32 0.0, %v1664
        %v1666 = vpop.f32.mrb[0].mxu0
        %1667 = vmatprep.mubr.f32.mxu0 0.0
        %1668 = vmatmul.mubr.f32.gmra.mrb[0].mxu0 %v285
        %v1669 = vpop.f32.mrb[0].mxu0
        %v1670 = vadd.f32 0.0, %v1669
        %v1671 = vpop.f32.mrb[0].mxu0
        %1672 = vdwg.mxu0
        %s1673 = sld [smem:[#allocation3 + $0x9]]
        %v1674 = vstv %s1673
        %v1675 = vmul.f32 %v1674, %v1175
        %s1676 = sld [smem:[#allocation3 + $0xa]]
        %v1677 = vstv %s1676
        %v1678 = vmul.f32 %v1677, %v1335
        %v1679 = vadd.f32 %v1675, %v1678
        %s1680 = sld [smem:[#allocation3 + $0xb]]
        %v1681 = vstv %s1680
        %v1682 = vmul.f32 %v1681, %v1495
        %v1683 = vadd.f32 %v1679, %v1682
        %s1684 = sld [smem:[#allocation3 + $0xc]]
        %v1685 = vstv %s1684
        %v1686 = vmul.f32 %v1685, %v1180
        %v1687 = vadd.f32 %v1683, %v1686
        %s1688 = sld [smem:[#allocation3 + $0xd]]
        %v1689 = vstv %s1688
        %v1690 = vmul.f32 %v1689, %v1340
        %v1691 = vadd.f32 %v1687, %v1690
        %s1692 = sld [smem:[#allocation3 + $0xe]]
        %v1693 = vstv %s1692
        %v1694 = vmul.f32 %v1693, %v1500
        %v1695 = vadd.f32 %v1691, %v1694
        %s1696 = sld [smem:[#allocation3 + $0xf]]
        %v1697 = vstv %s1696
        %v1698 = vmul.f32 %v1697, %v1185
        %v1699 = vadd.f32 %v1695, %v1698
        %s1700 = sld [smem:[#allocation3 + $0x10]]
        %v1701 = vstv %s1700
        %v1702 = vmul.f32 %v1701, %v1345
        %v1703 = vadd.f32 %v1699, %v1702
        %s1704 = sld [smem:[#allocation3 + $0x11]]
        %v1705 = vstv %s1704
        %v1706 = vmul.f32 %v1705, %v1505
        %v1707 = vadd.f32 %v1703, %v1706
        %v1708 = vmul.f32 %v1674, %v1335
        %v1709 = vmul.f32 %v1677, %v1495
        %v1710 = vadd.f32 %v1708, %v1709
        %v1711 = vmul.f32 %v1681, %v1655
        %v1712 = vadd.f32 %v1710, %v1711
        %v1713 = vmul.f32 %v1685, %v1340
        %v1714 = vadd.f32 %v1712, %v1713
        %v1715 = vmul.f32 %v1689, %v1500
        %v1716 = vadd.f32 %v1714, %v1715
        %v1717 = vmul.f32 %v1693, %v1660
        %v1718 = vadd.f32 %v1716, %v1717
        %v1719 = vmul.f32 %v1697, %v1345
        %v1720 = vadd.f32 %v1718, %v1719
        %v1721 = vmul.f32 %v1701, %v1505
        %v1722 = vadd.f32 %v1720, %v1721
        %v1723 = vmul.f32 %v1705, %v1665
        %v1724 = vadd.f32 %v1722, %v1723
        %v1725 = vmul.f32 %v1674, %v1180
        %v1726 = vmul.f32 %v1677, %v1340
        %v1727 = vadd.f32 %v1725, %v1726
        %v1728 = vmul.f32 %v1681, %v1500
        %v1729 = vadd.f32 %v1727, %v1728
        %v1730 = vmul.f32 %v1685, %v1185
        %v1731 = vadd.f32 %v1729, %v1730
        %v1732 = vmul.f32 %v1689, %v1345
        %v1733 = vadd.f32 %v1731, %v1732
        %v1734 = vmul.f32 %v1693, %v1505
        %v1735 = vadd.f32 %v1733, %v1734
        %v1736 = vmul.f32 %v1697, %v1190
        %v1737 = vadd.f32 %v1735, %v1736
        %v1738 = vmul.f32 %v1701, %v1350
        %v1739 = vadd.f32 %v1737, %v1738
        %v1740 = vmul.f32 %v1705, %v1510
        %v1741 = vadd.f32 %v1739, %v1740
        %v1742 = vmul.f32 %v1674, %v1340
        %v1743 = vmul.f32 %v1677, %v1500
        %v1744 = vadd.f32 %v1742, %v1743
        %v1745 = vmul.f32 %v1681, %v1660
        %v1746 = vadd.f32 %v1744, %v1745
        %v1747 = vmul.f32 %v1685, %v1345
        %v1748 = vadd.f32 %v1746, %v1747
        %v1749 = vmul.f32 %v1689, %v1505
        %v1750 = vadd.f32 %v1748, %v1749
        %v1751 = vmul.f32 %v1693, %v1665
        %v1752 = vadd.f32 %v1750, %v1751
        %v1753 = vmul.f32 %v1697, %v1350
        %v1754 = vadd.f32 %v1752, %v1753
        %v1755 = vmul.f32 %v1701, %v1510
        %v1756 = vadd.f32 %v1754, %v1755
        %v1757 = vmul.f32 %v1705, %v1670
        %v1758 = vadd.f32 %v1756, %v1757
        %s1759 = sld [smem:[#allocation3 + $0x2d]]
        %v1760 = vstv %s1759
        %v1761 = vmul.f32 %v1760, %v1175
        %s1762 = sld [smem:[#allocation3 + $0x2e]]
        %v1763 = vstv %s1762
        %v1764 = vmul.f32 %v1763, %v1335
        %v1765 = vadd.f32 %v1761, %v1764
        %s1766 = sld [smem:[#allocation3 + $0x2f]]
        %v1767 = vstv %s1766
        %v1768 = vmul.f32 %v1767, %v1495
        %v1769 = vadd.f32 %v1765, %v1768
        %s1770 = sld [smem:[#allocation3 + $0x30]]
        %v1771 = vstv %s1770
        %v1772 = vmul.f32 %v1771, %v1180
        %v1773 = vadd.f32 %v1769, %v1772
        %s1774 = sld [smem:[#allocation3 + $0x31]]
        %v1775 = vstv %s1774
        %v1776 = vmul.f32 %v1775, %v1340
        %v1777 = vadd.f32 %v1773, %v1776
        %s1778 = sld [smem:[#allocation3 + $0x32]]
        %v1779 = vstv %s1778
        %v1780 = vmul.f32 %v1779, %v1500
        %v1781 = vadd.f32 %v1777, %v1780
        %s1782 = sld [smem:[#allocation3 + $0x33]]
        %v1783 = vstv %s1782
        %v1784 = vmul.f32 %v1783, %v1185
        %v1785 = vadd.f32 %v1781, %v1784
        %s1786 = sld [smem:[#allocation3 + $0x34]]
        %v1787 = vstv %s1786
        %v1788 = vmul.f32 %v1787, %v1345
        %v1789 = vadd.f32 %v1785, %v1788
        %s1790 = sld [smem:[#allocation3 + $0x35]]
        %v1791 = vstv %s1790
        %v1792 = vmul.f32 %v1791, %v1505
        %v1793 = vadd.f32 %v1789, %v1792
        %v1794 = vmul.f32 %v1760, %v1335
        %v1795 = vmul.f32 %v1763, %v1495
        %v1796 = vadd.f32 %v1794, %v1795
        %v1797 = vmul.f32 %v1767, %v1655
        %v1798 = vadd.f32 %v1796, %v1797
        %v1799 = vmul.f32 %v1771, %v1340
        %v1800 = vadd.f32 %v1798, %v1799
        %v1801 = vmul.f32 %v1775, %v1500
        %v1802 = vadd.f32 %v1800, %v1801
        %v1803 = vmul.f32 %v1779, %v1660
        %v1804 = vadd.f32 %v1802, %v1803
        %v1805 = vmul.f32 %v1783, %v1345
        %v1806 = vadd.f32 %v1804, %v1805
        %v1807 = vmul.f32 %v1787, %v1505
        %v1808 = vadd.f32 %v1806, %v1807
        %v1809 = vmul.f32 %v1791, %v1665
        %v1810 = vadd.f32 %v1808, %v1809
        %v1811 = vmul.f32 %v1760, %v1180
        %v1812 = vmul.f32 %v1763, %v1340
        %v1813 = vadd.f32 %v1811, %v1812
        %v1814 = vmul.f32 %v1767, %v1500
        %v1815 = vadd.f32 %v1813, %v1814
        %v1816 = vmul.f32 %v1771, %v1185
        %v1817 = vadd.f32 %v1815, %v1816
        %v1818 = vmul.f32 %v1775, %v1345
        %v1819 = vadd.f32 %v1817, %v1818
        %v1820 = vmul.f32 %v1779, %v1505
        %v1821 = vadd.f32 %v1819, %v1820
        %v1822 = vmul.f32 %v1783, %v1190
        %v1823 = vadd.f32 %v1821, %v1822
        %v1824 = vmul.f32 %v1787, %v1350
        %v1825 = vadd.f32 %v1823, %v1824
        %v1826 = vmul.f32 %v1791, %v1510
        %v1827 = vadd.f32 %v1825, %v1826
        %v1828 = vmul.f32 %v1760, %v1340
        %v1829 = vmul.f32 %v1763, %v1500
        %v1830 = vadd.f32 %v1828, %v1829
        %v1831 = vmul.f32 %v1767, %v1660
        %v1832 = vadd.f32 %v1830, %v1831
        %v1833 = vmul.f32 %v1771, %v1345
        %v1834 = vadd.f32 %v1832, %v1833
        %v1835 = vmul.f32 %v1775, %v1505
        %v1836 = vadd.f32 %v1834, %v1835
        %v1837 = vmul.f32 %v1779, %v1665
        %v1838 = vadd.f32 %v1836, %v1837
        %v1839 = vmul.f32 %v1783, %v1350
        %v1840 = vadd.f32 %v1838, %v1839
        %v1841 = vmul.f32 %v1787, %v1510
        %v1842 = vadd.f32 %v1840, %v1841
        %v1843 = vmul.f32 %v1791, %v1670
        %v1844 = vadd.f32 %v1842, %v1843
        %s1845 = scalar_lea.vmem %s175, 32
        %v1846 = vld [vmem:[%s1845] sm:$0xff]
        %v1847 = vld [vmem:[%s1845 + $0x8] sm:$0xff]
        %v1849 = vsel %vm193, %v1846, 0
        %v1852 = vsel %vm193, %v1847, 0
        %1854 = vmatprep.subr.mxu0 0.0
        %1855 = vmatpush1.msra.mxu0 %v180
        %1856 = vmatprep.subr.mxu0 0.0
        %1857 = vmatpush1.msra.mxu0 %v181
        %1858 = vmatprep.subr.mxu0 0.0
        %1859 = vmatpush1.msra.mxu0 0.0
        %1860 = vmatprep.subr.mxu0 0.0
        %1861 = vmatpush1.msra.mxu0 0.0
        %1862 = vmatprep.subr.mxu0 0.0
        %1863 = vmatpush1.msra.mxu0 0.0
        %1864 = vmatprep.subr.mxu0 0.0
        %1865 = vmatpush1.msra.mxu0 0.0
        %1866 = vmatprep.subr.mxu0 0.0
        %1867 = vmatpush1.msra.mxu0 0.0
        %1868 = vmatprep.subr.mxu0 0.0
        %1869 = vmatpush1.msra.mxu0 0.0
        %1870 = vmatprep.subr.mxu0 0.0
        %1871 = vmatpush1.msra.mxu0 0.0
        %1872 = vmatprep.subr.mxu0 0.0
        %1873 = vmatpush1.msra.mxu0 0.0
        %1874 = vmatprep.subr.mxu0 0.0
        %1875 = vmatpush1.msra.mxu0 0.0
        %1876 = vmatprep.subr.mxu0 0.0
        %1877 = vmatpush1.msra.mxu0 0.0
        %1878 = vmatprep.subr.mxu0 0.0
        %1879 = vmatpush1.msra.mxu0 0.0
        %1880 = vmatprep.subr.mxu0 0.0
        %1881 = vmatpush1.msra.mxu0 0.0
        %1882 = vmatprep.subr.mxu0 0.0
        %1883 = vmatpush1.msra.mxu0 0.0
        %1884 = vmatprep.subr.mxu0 0.0
        %1885 = vmatpush1.msra.mxu0 0.0
        %1886 = vmatprep.subr.mxu0 0.0
        %1887 = vmatpush1.msra.mxu0 0.0
        %1888 = vmatprep.subr.mxu0 0.0
        %1889 = vmatpush1.msra.mxu0 0.0
        %1890 = vmatprep.subr.mxu0 0.0
        %1891 = vmatpush1.msra.mxu0 0.0
        %1892 = vmatprep.subr.mxu0 0.0
        %1893 = vmatpush1.msra.mxu0 0.0
        %1894 = vmatprep.subr.mxu0 0.0
        %1895 = vmatpush1.msra.mxu0 0.0
        %1896 = vmatprep.subr.mxu0 0.0
        %1897 = vmatpush1.msra.mxu0 0.0
        %1898 = vmatprep.subr.mxu0 0.0
        %1899 = vmatpush1.msra.mxu0 0.0
        %1900 = vmatprep.subr.mxu0 0.0
        %1901 = vmatpush1.msra.mxu0 0.0
        %1902 = vmatprep.subr.mxu0 0.0
        %1903 = vmatpush1.msra.mxu0 0.0
        %1904 = vmatprep.subr.mxu0 0.0
        %1905 = vmatpush1.msra.mxu0 0.0
        %1906 = vmatprep.subr.mxu0 0.0
        %1907 = vmatpush1.msra.mxu0 0.0
        %1908 = vmatprep.subr.mxu0 0.0
        %1909 = vmatpush1.msra.mxu0 0.0
        %1910 = vmatprep.subr.mxu0 0.0
        %1911 = vmatpush1.msra.mxu0 0.0
        %1912 = vmatprep.subr.mxu0 0.0
        %1913 = vmatpush1.msra.mxu0 0.0
        %1914 = vmatprep.subr.mxu0 0.0
        %1915 = vmatpush1.msra.mxu0 0.0
        %1916 = vmatprep.subr.mxu0 0.0
        %1917 = vmatpush1.msra.mxu0 0.0
        %1918 = vmatprep.mubr.f32.mxu0 0.0
        %1919 = vmatmul.mubr.f32.gmra.mrb[0].mxu0 %v1849
        %v1920 = vpop.f32.mrb[0].mxu0
        %v1921 = vadd.f32 0.0, %v1920
        %v1922 = vpop.f32.mrb[0].mxu0
        %1923 = vmatprep.mubr.f32.mxu0 0.0
        %1924 = vmatmul.mubr.f32.gmra.mrb[0].mxu0 %v1852
        %v1925 = vpop.f32.mrb[0].mxu0
        %v1926 = vadd.f32 0.0, %v1925
        %v1927 = vpop.f32.mrb[0].mxu0
        %1928 = vdwg.mxu0
        %1929 = vmatprep.subr.mxu0 0.0
        %1930 = vmatpush1.msra.mxu0 %v1921
        %1931 = vmatprep.subr.mxu0 0.0
        %1932 = vmatpush1.msra.mxu0 %v1926
        %1933 = vmatprep.subr.mxu0 0.0
        %1934 = vmatpush1.msra.mxu0 0.0
        %1935 = vmatprep.subr.mxu0 0.0
        %1936 = vmatpush1.msra.mxu0 0.0
        %1937 = vmatprep.subr.mxu0 0.0
        %1938 = vmatpush1.msra.mxu0 0.0
        %1939 = vmatprep.subr.mxu0 0.0
        %1940 = vmatpush1.msra.mxu0 0.0
        %1941 = vmatprep.subr.mxu0 0.0
        %1942 = vmatpush1.msra.mxu0 0.0
        %1943 = vmatprep.subr.mxu0 0.0
        %1944 = vmatpush1.msra.mxu0 0.0
        %1945 = vmatprep.subr.mxu0 0.0
        %1946 = vmatpush1.msra.mxu0 0.0
        %1947 = vmatprep.subr.mxu0 0.0
        %1948 = vmatpush1.msra.mxu0 0.0
        %1949 = vmatprep.subr.mxu0 0.0
        %1950 = vmatpush1.msra.mxu0 0.0
        %1951 = vmatprep.subr.mxu0 0.0
        %1952 = vmatpush1.msra.mxu0 0.0
        %1953 = vmatprep.subr.mxu0 0.0
        %1954 = vmatpush1.msra.mxu0 0.0
        %1955 = vmatprep.subr.mxu0 0.0
        %1956 = vmatpush1.msra.mxu0 0.0
        %1957 = vmatprep.subr.mxu0 0.0
        %1958 = vmatpush1.msra.mxu0 0.0
        %1959 = vmatprep.subr.mxu0 0.0
        %1960 = vmatpush1.msra.mxu0 0.0
        %1961 = vmatprep.subr.mxu0 0.0
        %1962 = vmatpush1.msra.mxu0 0.0
        %1963 = vmatprep.subr.mxu0 0.0
        %1964 = vmatpush1.msra.mxu0 0.0
        %1965 = vmatprep.subr.mxu0 0.0
        %1966 = vmatpush1.msra.mxu0 0.0
        %1967 = vmatprep.subr.mxu0 0.0
        %1968 = vmatpush1.msra.mxu0 0.0
        %1969 = vmatprep.subr.mxu0 0.0
        %1970 = vmatpush1.msra.mxu0 0.0
        %1971 = vmatprep.subr.mxu0 0.0
        %1972 = vmatpush1.msra.mxu0 0.0
        %1973 = vmatprep.subr.mxu0 0.0
        %1974 = vmatpush1.msra.mxu0 0.0
        %1975 = vmatprep.subr.mxu0 0.0
        %1976 = vmatpush1.msra.mxu0 0.0
        %1977 = vmatprep.subr.mxu0 0.0
        %1978 = vmatpush1.msra.mxu0 0.0
        %1979 = vmatprep.subr.mxu0 0.0
        %1980 = vmatpush1.msra.mxu0 0.0
        %1981 = vmatprep.subr.mxu0 0.0
        %1982 = vmatpush1.msra.mxu0 0.0
        %1983 = vmatprep.subr.mxu0 0.0
        %1984 = vmatpush1.msra.mxu0 0.0
        %1985 = vmatprep.subr.mxu0 0.0
        %1986 = vmatpush1.msra.mxu0 0.0
        %1987 = vmatprep.subr.mxu0 0.0
        %1988 = vmatpush1.msra.mxu0 0.0
        %1989 = vmatprep.subr.mxu0 0.0
        %1990 = vmatpush1.msra.mxu0 0.0
        %1991 = vmatprep.subr.mxu0 0.0
        %1992 = vmatpush1.msra.mxu0 0.0
        %1993 = vmatprep.mubr.f32.mxu0 0.0
        %1994 = vmatmul.mubr.f32.gmra.mrb[0].mxu0 %v276
        %v1995 = vpop.f32.mrb[0].mxu0
        %v1996 = vadd.f32 0.0, %v1995
        %v1997 = vpop.f32.mrb[0].mxu0
        %1998 = vmatprep.mubr.f32.mxu0 0.0
        %1999 = vmatmul.mubr.f32.gmra.mrb[0].mxu0 %v279
        %v2000 = vpop.f32.mrb[0].mxu0
        %v2001 = vadd.f32 0.0, %v2000
        %v2002 = vpop.f32.mrb[0].mxu0
        %2003 = vmatprep.mubr.f32.mxu0 0.0
        %2004 = vmatmul.mubr.f32.gmra.mrb[0].mxu0 %v282
        %v2005 = vpop.f32.mrb[0].mxu0
        %v2006 = vadd.f32 0.0, %v2005
        %v2007 = vpop.f32.mrb[0].mxu0
        %2008 = vmatprep.mubr.f32.mxu0 0.0
        %2009 = vmatmul.mubr.f32.gmra.mrb[0].mxu0 %v285
        %v2010 = vpop.f32.mrb[0].mxu0
        %v2011 = vadd.f32 0.0, %v2010
        %v2012 = vpop.f32.mrb[0].mxu0
        %2013 = vdwg.mxu0
        %2014 = vmatprep.subr.mxu0 0.0
        %2015 = vmatpush1.msra.mxu0 %v183
        %2016 = vmatprep.subr.mxu0 0.0
        %2017 = vmatpush1.msra.mxu0 %v184
        %2018 = vmatprep.subr.mxu0 0.0
        %2019 = vmatpush1.msra.mxu0 0.0
        %2020 = vmatprep.subr.mxu0 0.0
        %2021 = vmatpush1.msra.mxu0 0.0
        %2022 = vmatprep.subr.mxu0 0.0
        %2023 = vmatpush1.msra.mxu0 0.0
        %2024 = vmatprep.subr.mxu0 0.0
        %2025 = vmatpush1.msra.mxu0 0.0
        %2026 = vmatprep.subr.mxu0 0.0
        %2027 = vmatpush1.msra.mxu0 0.0
        %2028 = vmatprep.subr.mxu0 0.0
        %2029 = vmatpush1.msra.mxu0 0.0
        %2030 = vmatprep.subr.mxu0 0.0
        %2031 = vmatpush1.msra.mxu0 0.0
        %2032 = vmatprep.subr.mxu0 0.0
        %2033 = vmatpush1.msra.mxu0 0.0
        %2034 = vmatprep.subr.mxu0 0.0
        %2035 = vmatpush1.msra.mxu0 0.0
        %2036 = vmatprep.subr.mxu0 0.0
        %2037 = vmatpush1.msra.mxu0 0.0
        %2038 = vmatprep.subr.mxu0 0.0
        %2039 = vmatpush1.msra.mxu0 0.0
        %2040 = vmatprep.subr.mxu0 0.0
        %2041 = vmatpush1.msra.mxu0 0.0
        %2042 = vmatprep.subr.mxu0 0.0
        %2043 = vmatpush1.msra.mxu0 0.0
        %2044 = vmatprep.subr.mxu0 0.0
        %2045 = vmatpush1.msra.mxu0 0.0
        %2046 = vmatprep.subr.mxu0 0.0
        %2047 = vmatpush1.msra.mxu0 0.0
        %2048 = vmatprep.subr.mxu0 0.0
        %2049 = vmatpush1.msra.mxu0 0.0
        %2050 = vmatprep.subr.mxu0 0.0
        %2051 = vmatpush1.msra.mxu0 0.0
        %2052 = vmatprep.subr.mxu0 0.0
        %2053 = vmatpush1.msra.mxu0 0.0
        %2054 = vmatprep.subr.mxu0 0.0
        %2055 = vmatpush1.msra.mxu0 0.0
        %2056 = vmatprep.subr.mxu0 0.0
        %2057 = vmatpush1.msra.mxu0 0.0
        %2058 = vmatprep.subr.mxu0 0.0
        %2059 = vmatpush1.msra.mxu0 0.0
        %2060 = vmatprep.subr.mxu0 0.0
        %2061 = vmatpush1.msra.mxu0 0.0
        %2062 = vmatprep.subr.mxu0 0.0
        %2063 = vmatpush1.msra.mxu0 0.0
        %2064 = vmatprep.subr.mxu0 0.0
        %2065 = vmatpush1.msra.mxu0 0.0
        %2066 = vmatprep.subr.mxu0 0.0
        %2067 = vmatpush1.msra.mxu0 0.0
        %2068 = vmatprep.subr.mxu0 0.0
        %2069 = vmatpush1.msra.mxu0 0.0
        %2070 = vmatprep.subr.mxu0 0.0
        %2071 = vmatpush1.msra.mxu0 0.0
        %2072 = vmatprep.subr.mxu0 0.0
        %2073 = vmatpush1.msra.mxu0 0.0
        %2074 = vmatprep.subr.mxu0 0.0
        %2075 = vmatpush1.msra.mxu0 0.0
        %2076 = vmatprep.subr.mxu0 0.0
        %2077 = vmatpush1.msra.mxu0 0.0
        %2078 = vmatprep.mubr.f32.mxu0 0.0
        %2079 = vmatmul.mubr.f32.gmra.mrb[0].mxu0 %v1849
        %v2080 = vpop.f32.mrb[0].mxu0
        %v2081 = vadd.f32 0.0, %v2080
        %v2082 = vpop.f32.mrb[0].mxu0
        %2083 = vmatprep.mubr.f32.mxu0 0.0
        %2084 = vmatmul.mubr.f32.gmra.mrb[0].mxu0 %v1852
        %v2085 = vpop.f32.mrb[0].mxu0
        %v2086 = vadd.f32 0.0, %v2085
        %v2087 = vpop.f32.mrb[0].mxu0
        %2088 = vdwg.mxu0
        %2089 = vmatprep.subr.mxu0 0.0
        %2090 = vmatpush1.msra.mxu0 %v2081
        %2091 = vmatprep.subr.mxu0 0.0
        %2092 = vmatpush1.msra.mxu0 %v2086
        %2093 = vmatprep.subr.mxu0 0.0
        %2094 = vmatpush1.msra.mxu0 0.0
        %2095 = vmatprep.subr.mxu0 0.0
        %2096 = vmatpush1.msra.mxu0 0.0
        %2097 = vmatprep.subr.mxu0 0.0
        %2098 = vmatpush1.msra.mxu0 0.0
        %2099 = vmatprep.subr.mxu0 0.0
        %2100 = vmatpush1.msra.mxu0 0.0
        %2101 = vmatprep.subr.mxu0 0.0
        %2102 = vmatpush1.msra.mxu0 0.0
        %2103 = vmatprep.subr.mxu0 0.0
        %2104 = vmatpush1.msra.mxu0 0.0
        %2105 = vmatprep.subr.mxu0 0.0
        %2106 = vmatpush1.msra.mxu0 0.0
        %2107 = vmatprep.subr.mxu0 0.0
        %2108 = vmatpush1.msra.mxu0 0.0
        %2109 = vmatprep.subr.mxu0 0.0
        %2110 = vmatpush1.msra.mxu0 0.0
        %2111 = vmatprep.subr.mxu0 0.0
        %2112 = vmatpush1.msra.mxu0 0.0
        %2113 = vmatprep.subr.mxu0 0.0
        %2114 = vmatpush1.msra.mxu0 0.0
        %2115 = vmatprep.subr.mxu0 0.0
        %2116 = vmatpush1.msra.mxu0 0.0
        %2117 = vmatprep.subr.mxu0 0.0
        %2118 = vmatpush1.msra.mxu0 0.0
        %2119 = vmatprep.subr.mxu0 0.0
        %2120 = vmatpush1.msra.mxu0 0.0
        %2121 = vmatprep.subr.mxu0 0.0
        %2122 = vmatpush1.msra.mxu0 0.0
        %2123 = vmatprep.subr.mxu0 0.0
        %2124 = vmatpush1.msra.mxu0 0.0
        %2125 = vmatprep.subr.mxu0 0.0
        %2126 = vmatpush1.msra.mxu0 0.0
        %2127 = vmatprep.subr.mxu0 0.0
        %2128 = vmatpush1.msra.mxu0 0.0
        %2129 = vmatprep.subr.mxu0 0.0
        %2130 = vmatpush1.msra.mxu0 0.0
        %2131 = vmatprep.subr.mxu0 0.0
        %2132 = vmatpush1.msra.mxu0 0.0
        %2133 = vmatprep.subr.mxu0 0.0
        %2134 = vmatpush1.msra.mxu0 0.0
        %2135 = vmatprep.subr.mxu0 0.0
        %2136 = vmatpush1.msra.mxu0 0.0
        %2137 = vmatprep.subr.mxu0 0.0
        %2138 = vmatpush1.msra.mxu0 0.0
        %2139 = vmatprep.subr.mxu0 0.0
        %2140 = vmatpush1.msra.mxu0 0.0
        %2141 = vmatprep.subr.mxu0 0.0
        %2142 = vmatpush1.msra.mxu0 0.0
        %2143 = vmatprep.subr.mxu0 0.0
        %2144 = vmatpush1.msra.mxu0 0.0
        %2145 = vmatprep.subr.mxu0 0.0
        %2146 = vmatpush1.msra.mxu0 0.0
        %2147 = vmatprep.subr.mxu0 0.0
        %2148 = vmatpush1.msra.mxu0 0.0
        %2149 = vmatprep.subr.mxu0 0.0
        %2150 = vmatpush1.msra.mxu0 0.0
        %2151 = vmatprep.subr.mxu0 0.0
        %2152 = vmatpush1.msra.mxu0 0.0
        %2153 = vmatprep.mubr.f32.mxu0 0.0
        %2154 = vmatmul.mubr.f32.gmra.mrb[0].mxu0 %v276
        %v2155 = vpop.f32.mrb[0].mxu0
        %v2156 = vadd.f32 0.0, %v2155
        %v2157 = vpop.f32.mrb[0].mxu0
        %2158 = vmatprep.mubr.f32.mxu0 0.0
        %2159 = vmatmul.mubr.f32.gmra.mrb[0].mxu0 %v279
        %v2160 = vpop.f32.mrb[0].mxu0
        %v2161 = vadd.f32 0.0, %v2160
        %v2162 = vpop.f32.mrb[0].mxu0
        %2163 = vmatprep.mubr.f32.mxu0 0.0
        %2164 = vmatmul.mubr.f32.gmra.mrb[0].mxu0 %v282
        %v2165 = vpop.f32.mrb[0].mxu0
        %v2166 = vadd.f32 0.0, %v2165
        %v2167 = vpop.f32.mrb[0].mxu0
        %2168 = vmatprep.mubr.f32.mxu0 0.0
        %2169 = vmatmul.mubr.f32.gmra.mrb[0].mxu0 %v285
        %v2170 = vpop.f32.mrb[0].mxu0
        %v2171 = vadd.f32 0.0, %v2170
        %v2172 = vpop.f32.mrb[0].mxu0
        %2173 = vdwg.mxu0
        %2174 = vmatprep.subr.mxu0 0.0
        %2175 = vmatpush1.msra.mxu0 %v186
        %2176 = vmatprep.subr.mxu0 0.0
        %2177 = vmatpush1.msra.mxu0 %v187
        %2178 = vmatprep.subr.mxu0 0.0
        %2179 = vmatpush1.msra.mxu0 0.0
        %2180 = vmatprep.subr.mxu0 0.0
        %2181 = vmatpush1.msra.mxu0 0.0
        %2182 = vmatprep.subr.mxu0 0.0
        %2183 = vmatpush1.msra.mxu0 0.0
        %2184 = vmatprep.subr.mxu0 0.0
        %2185 = vmatpush1.msra.mxu0 0.0
        %2186 = vmatprep.subr.mxu0 0.0
        %2187 = vmatpush1.msra.mxu0 0.0
        %2188 = vmatprep.subr.mxu0 0.0
        %2189 = vmatpush1.msra.mxu0 0.0
        %2190 = vmatprep.subr.mxu0 0.0
        %2191 = vmatpush1.msra.mxu0 0.0
        %2192 = vmatprep.subr.mxu0 0.0
        %2193 = vmatpush1.msra.mxu0 0.0
        %2194 = vmatprep.subr.mxu0 0.0
        %2195 = vmatpush1.msra.mxu0 0.0
        %2196 = vmatprep.subr.mxu0 0.0
        %2197 = vmatpush1.msra.mxu0 0.0
        %2198 = vmatprep.subr.mxu0 0.0
        %2199 = vmatpush1.msra.mxu0 0.0
        %2200 = vmatprep.subr.mxu0 0.0
        %2201 = vmatpush1.msra.mxu0 0.0
        %2202 = vmatprep.subr.mxu0 0.0
        %2203 = vmatpush1.msra.mxu0 0.0
        %2204 = vmatprep.subr.mxu0 0.0
        %2205 = vmatpush1.msra.mxu0 0.0
        %2206 = vmatprep.subr.mxu0 0.0
        %2207 = vmatpush1.msra.mxu0 0.0
        %2208 = vmatprep.subr.mxu0 0.0
        %2209 = vmatpush1.msra.mxu0 0.0
        %2210 = vmatprep.subr.mxu0 0.0
        %2211 = vmatpush1.msra.mxu0 0.0
        %2212 = vmatprep.subr.mxu0 0.0
        %2213 = vmatpush1.msra.mxu0 0.0
        %2214 = vmatprep.subr.mxu0 0.0
        %2215 = vmatpush1.msra.mxu0 0.0
        %2216 = vmatprep.subr.mxu0 0.0
        %2217 = vmatpush1.msra.mxu0 0.0
        %2218 = vmatprep.subr.mxu0 0.0
        %2219 = vmatpush1.msra.mxu0 0.0
        %2220 = vmatprep.subr.mxu0 0.0
        %2221 = vmatpush1.msra.mxu0 0.0
        %2222 = vmatprep.subr.mxu0 0.0
        %2223 = vmatpush1.msra.mxu0 0.0
        %2224 = vmatprep.subr.mxu0 0.0
        %2225 = vmatpush1.msra.mxu0 0.0
        %2226 = vmatprep.subr.mxu0 0.0
        %2227 = vmatpush1.msra.mxu0 0.0
        %2228 = vmatprep.subr.mxu0 0.0
        %2229 = vmatpush1.msra.mxu0 0.0
        %2230 = vmatprep.subr.mxu0 0.0
        %2231 = vmatpush1.msra.mxu0 0.0
        %2232 = vmatprep.subr.mxu0 0.0
        %2233 = vmatpush1.msra.mxu0 0.0
        %2234 = vmatprep.subr.mxu0 0.0
        %2235 = vmatpush1.msra.mxu0 0.0
        %2236 = vmatprep.subr.mxu0 0.0
        %2237 = vmatpush1.msra.mxu0 0.0
        %2238 = vmatprep.mubr.f32.mxu0 0.0
        %2239 = vmatmul.mubr.f32.gmra.mrb[0].mxu0 %v1849
        %v2240 = vpop.f32.mrb[0].mxu0
        %v2241 = vadd.f32 0.0, %v2240
        %v2242 = vpop.f32.mrb[0].mxu0
        %2243 = vmatprep.mubr.f32.mxu0 0.0
        %2244 = vmatmul.mubr.f32.gmra.mrb[0].mxu0 %v1852
        %v2245 = vpop.f32.mrb[0].mxu0
        %v2246 = vadd.f32 0.0, %v2245
        %v2247 = vpop.f32.mrb[0].mxu0
        %2248 = vdwg.mxu0
        %2249 = vmatprep.subr.mxu0 0.0
        %2250 = vmatpush1.msra.mxu0 %v2241
        %2251 = vmatprep.subr.mxu0 0.0
        %2252 = vmatpush1.msra.mxu0 %v2246
        %2253 = vmatprep.subr.mxu0 0.0
        %2254 = vmatpush1.msra.mxu0 0.0
        %2255 = vmatprep.subr.mxu0 0.0
        %2256 = vmatpush1.msra.mxu0 0.0
        %2257 = vmatprep.subr.mxu0 0.0
        %2258 = vmatpush1.msra.mxu0 0.0
        %2259 = vmatprep.subr.mxu0 0.0
        %2260 = vmatpush1.msra.mxu0 0.0
        %2261 = vmatprep.subr.mxu0 0.0
        %2262 = vmatpush1.msra.mxu0 0.0
        %2263 = vmatprep.subr.mxu0 0.0
        %2264 = vmatpush1.msra.mxu0 0.0
        %2265 = vmatprep.subr.mxu0 0.0
        %2266 = vmatpush1.msra.mxu0 0.0
        %2267 = vmatprep.subr.mxu0 0.0
        %2268 = vmatpush1.msra.mxu0 0.0
        %2269 = vmatprep.subr.mxu0 0.0
        %2270 = vmatpush1.msra.mxu0 0.0
        %2271 = vmatprep.subr.mxu0 0.0
        %2272 = vmatpush1.msra.mxu0 0.0
        %2273 = vmatprep.subr.mxu0 0.0
        %2274 = vmatpush1.msra.mxu0 0.0
        %2275 = vmatprep.subr.mxu0 0.0
        %2276 = vmatpush1.msra.mxu0 0.0
        %2277 = vmatprep.subr.mxu0 0.0
        %2278 = vmatpush1.msra.mxu0 0.0
        %2279 = vmatprep.subr.mxu0 0.0
        %2280 = vmatpush1.msra.mxu0 0.0
        %2281 = vmatprep.subr.mxu0 0.0
        %2282 = vmatpush1.msra.mxu0 0.0
        %2283 = vmatprep.subr.mxu0 0.0
        %2284 = vmatpush1.msra.mxu0 0.0
        %2285 = vmatprep.subr.mxu0 0.0
        %2286 = vmatpush1.msra.mxu0 0.0
        %2287 = vmatprep.subr.mxu0 0.0
        %2288 = vmatpush1.msra.mxu0 0.0
        %2289 = vmatprep.subr.mxu0 0.0
        %2290 = vmatpush1.msra.mxu0 0.0
        %2291 = vmatprep.subr.mxu0 0.0
        %2292 = vmatpush1.msra.mxu0 0.0
        %2293 = vmatprep.subr.mxu0 0.0
        %2294 = vmatpush1.msra.mxu0 0.0
        %2295 = vmatprep.subr.mxu0 0.0
        %2296 = vmatpush1.msra.mxu0 0.0
        %2297 = vmatprep.subr.mxu0 0.0
        %2298 = vmatpush1.msra.mxu0 0.0
        %2299 = vmatprep.subr.mxu0 0.0
        %2300 = vmatpush1.msra.mxu0 0.0
        %2301 = vmatprep.subr.mxu0 0.0
        %2302 = vmatpush1.msra.mxu0 0.0
        %2303 = vmatprep.subr.mxu0 0.0
        %2304 = vmatpush1.msra.mxu0 0.0
        %2305 = vmatprep.subr.mxu0 0.0
        %2306 = vmatpush1.msra.mxu0 0.0
        %2307 = vmatprep.subr.mxu0 0.0
        %2308 = vmatpush1.msra.mxu0 0.0
        %2309 = vmatprep.subr.mxu0 0.0
        %2310 = vmatpush1.msra.mxu0 0.0
        %2311 = vmatprep.subr.mxu0 0.0
        %2312 = vmatpush1.msra.mxu0 0.0
        %2313 = vmatprep.mubr.f32.mxu0 0.0
        %2314 = vmatmul.mubr.f32.gmra.mrb[0].mxu0 %v276
        %v2315 = vpop.f32.mrb[0].mxu0
        %v2316 = vadd.f32 0.0, %v2315
        %v2317 = vpop.f32.mrb[0].mxu0
        %2318 = vmatprep.mubr.f32.mxu0 0.0
        %2319 = vmatmul.mubr.f32.gmra.mrb[0].mxu0 %v279
        %v2320 = vpop.f32.mrb[0].mxu0
        %v2321 = vadd.f32 0.0, %v2320
        %v2322 = vpop.f32.mrb[0].mxu0
        %2323 = vmatprep.mubr.f32.mxu0 0.0
        %2324 = vmatmul.mubr.f32.gmra.mrb[0].mxu0 %v282
        %v2325 = vpop.f32.mrb[0].mxu0
        %v2326 = vadd.f32 0.0, %v2325
        %v2327 = vpop.f32.mrb[0].mxu0
        %2328 = vmatprep.mubr.f32.mxu0 0.0
        %2329 = vmatmul.mubr.f32.gmra.mrb[0].mxu0 %v285
        %v2330 = vpop.f32.mrb[0].mxu0
        %v2331 = vadd.f32 0.0, %v2330
        %v2332 = vpop.f32.mrb[0].mxu0
        %2333 = vdwg.mxu0
        %2334 = vmatprep.subr.mxu0 0.0
        %2335 = vmatpush1.msra.mxu0 %v189
        %2336 = vmatprep.subr.mxu0 0.0
        %2337 = vmatpush1.msra.mxu0 %v190
        %2338 = vmatprep.subr.mxu0 0.0
        %2339 = vmatpush1.msra.mxu0 0.0
        %2340 = vmatprep.subr.mxu0 0.0
        %2341 = vmatpush1.msra.mxu0 0.0
        %2342 = vmatprep.subr.mxu0 0.0
        %2343 = vmatpush1.msra.mxu0 0.0
        %2344 = vmatprep.subr.mxu0 0.0
        %2345 = vmatpush1.msra.mxu0 0.0
        %2346 = vmatprep.subr.mxu0 0.0
        %2347 = vmatpush1.msra.mxu0 0.0
        %2348 = vmatprep.subr.mxu0 0.0
        %2349 = vmatpush1.msra.mxu0 0.0
        %2350 = vmatprep.subr.mxu0 0.0
        %2351 = vmatpush1.msra.mxu0 0.0
        %2352 = vmatprep.subr.mxu0 0.0
        %2353 = vmatpush1.msra.mxu0 0.0
        %2354 = vmatprep.subr.mxu0 0.0
        %2355 = vmatpush1.msra.mxu0 0.0
        %2356 = vmatprep.subr.mxu0 0.0
        %2357 = vmatpush1.msra.mxu0 0.0
        %2358 = vmatprep.subr.mxu0 0.0
        %2359 = vmatpush1.msra.mxu0 0.0
        %2360 = vmatprep.subr.mxu0 0.0
        %2361 = vmatpush1.msra.mxu0 0.0
        %2362 = vmatprep.subr.mxu0 0.0
        %2363 = vmatpush1.msra.mxu0 0.0
        %2364 = vmatprep.subr.mxu0 0.0
        %2365 = vmatpush1.msra.mxu0 0.0
        %2366 = vmatprep.subr.mxu0 0.0
        %2367 = vmatpush1.msra.mxu0 0.0
        %2368 = vmatprep.subr.mxu0 0.0
        %2369 = vmatpush1.msra.mxu0 0.0
        %2370 = vmatprep.subr.mxu0 0.0
        %2371 = vmatpush1.msra.mxu0 0.0
        %2372 = vmatprep.subr.mxu0 0.0
        %2373 = vmatpush1.msra.mxu0 0.0
        %2374 = vmatprep.subr.mxu0 0.0
        %2375 = vmatpush1.msra.mxu0 0.0
        %2376 = vmatprep.subr.mxu0 0.0
        %2377 = vmatpush1.msra.mxu0 0.0
        %2378 = vmatprep.subr.mxu0 0.0
        %2379 = vmatpush1.msra.mxu0 0.0
        %2380 = vmatprep.subr.mxu0 0.0
        %2381 = vmatpush1.msra.mxu0 0.0
        %2382 = vmatprep.subr.mxu0 0.0
        %2383 = vmatpush1.msra.mxu0 0.0
        %2384 = vmatprep.subr.mxu0 0.0
        %2385 = vmatpush1.msra.mxu0 0.0
        %2386 = vmatprep.subr.mxu0 0.0
        %2387 = vmatpush1.msra.mxu0 0.0
        %2388 = vmatprep.subr.mxu0 0.0
        %2389 = vmatpush1.msra.mxu0 0.0
        %2390 = vmatprep.subr.mxu0 0.0
        %2391 = vmatpush1.msra.mxu0 0.0
        %2392 = vmatprep.subr.mxu0 0.0
        %2393 = vmatpush1.msra.mxu0 0.0
        %2394 = vmatprep.subr.mxu0 0.0
        %2395 = vmatpush1.msra.mxu0 0.0
        %2396 = vmatprep.subr.mxu0 0.0
        %2397 = vmatpush1.msra.mxu0 0.0
        %2398 = vmatprep.mubr.f32.mxu0 0.0
        %2399 = vmatmul.mubr.f32.gmra.mrb[0].mxu0 %v1849
        %v2400 = vpop.f32.mrb[0].mxu0
        %v2401 = vadd.f32 0.0, %v2400
        %v2402 = vpop.f32.mrb[0].mxu0
        %2403 = vmatprep.mubr.f32.mxu0 0.0
        %2404 = vmatmul.mubr.f32.gmra.mrb[0].mxu0 %v1852
        %v2405 = vpop.f32.mrb[0].mxu0
        %v2406 = vadd.f32 0.0, %v2405
        %v2407 = vpop.f32.mrb[0].mxu0
        %2408 = vdwg.mxu0
        %2409 = vmatprep.subr.mxu0 0.0
        %2410 = vmatpush1.msra.mxu0 %v2401
        %2411 = vmatprep.subr.mxu0 0.0
        %2412 = vmatpush1.msra.mxu0 %v2406
        %2413 = vmatprep.subr.mxu0 0.0
        %2414 = vmatpush1.msra.mxu0 0.0
        %2415 = vmatprep.subr.mxu0 0.0
        %2416 = vmatpush1.msra.mxu0 0.0
        %2417 = vmatprep.subr.mxu0 0.0
        %2418 = vmatpush1.msra.mxu0 0.0
        %2419 = vmatprep.subr.mxu0 0.0
        %2420 = vmatpush1.msra.mxu0 0.0
        %2421 = vmatprep.subr.mxu0 0.0
        %2422 = vmatpush1.msra.mxu0 0.0
        %2423 = vmatprep.subr.mxu0 0.0
        %2424 = vmatpush1.msra.mxu0 0.0
        %2425 = vmatprep.subr.mxu0 0.0
        %2426 = vmatpush1.msra.mxu0 0.0
        %2427 = vmatprep.subr.mxu0 0.0
        %2428 = vmatpush1.msra.mxu0 0.0
        %2429 = vmatprep.subr.mxu0 0.0
        %2430 = vmatpush1.msra.mxu0 0.0
        %2431 = vmatprep.subr.mxu0 0.0
        %2432 = vmatpush1.msra.mxu0 0.0
        %2433 = vmatprep.subr.mxu0 0.0
        %2434 = vmatpush1.msra.mxu0 0.0
        %2435 = vmatprep.subr.mxu0 0.0
        %2436 = vmatpush1.msra.mxu0 0.0
        %2437 = vmatprep.subr.mxu0 0.0
        %2438 = vmatpush1.msra.mxu0 0.0
        %2439 = vmatprep.subr.mxu0 0.0
        %2440 = vmatpush1.msra.mxu0 0.0
        %2441 = vmatprep.subr.mxu0 0.0
        %2442 = vmatpush1.msra.mxu0 0.0
        %2443 = vmatprep.subr.mxu0 0.0
        %2444 = vmatpush1.msra.mxu0 0.0
        %2445 = vmatprep.subr.mxu0 0.0
        %2446 = vmatpush1.msra.mxu0 0.0
        %2447 = vmatprep.subr.mxu0 0.0
        %2448 = vmatpush1.msra.mxu0 0.0
        %2449 = vmatprep.subr.mxu0 0.0
        %2450 = vmatpush1.msra.mxu0 0.0
        %2451 = vmatprep.subr.mxu0 0.0
        %2452 = vmatpush1.msra.mxu0 0.0
        %2453 = vmatprep.subr.mxu0 0.0
        %2454 = vmatpush1.msra.mxu0 0.0
        %2455 = vmatprep.subr.mxu0 0.0
        %2456 = vmatpush1.msra.mxu0 0.0
        %2457 = vmatprep.subr.mxu0 0.0
        %2458 = vmatpush1.msra.mxu0 0.0
        %2459 = vmatprep.subr.mxu0 0.0
        %2460 = vmatpush1.msra.mxu0 0.0
        %2461 = vmatprep.subr.mxu0 0.0
        %2462 = vmatpush1.msra.mxu0 0.0
        %2463 = vmatprep.subr.mxu0 0.0
        %2464 = vmatpush1.msra.mxu0 0.0
        %2465 = vmatprep.subr.mxu0 0.0
        %2466 = vmatpush1.msra.mxu0 0.0
        %2467 = vmatprep.subr.mxu0 0.0
        %2468 = vmatpush1.msra.mxu0 0.0
        %2469 = vmatprep.subr.mxu0 0.0
        %2470 = vmatpush1.msra.mxu0 0.0
        %2471 = vmatprep.subr.mxu0 0.0
        %2472 = vmatpush1.msra.mxu0 0.0
        %2473 = vmatprep.mubr.f32.mxu0 0.0
        %2474 = vmatmul.mubr.f32.gmra.mrb[0].mxu0 %v276
        %v2475 = vpop.f32.mrb[0].mxu0
        %v2476 = vadd.f32 0.0, %v2475
        %v2477 = vpop.f32.mrb[0].mxu0
        %2478 = vmatprep.mubr.f32.mxu0 0.0
        %2479 = vmatmul.mubr.f32.gmra.mrb[0].mxu0 %v279
        %v2480 = vpop.f32.mrb[0].mxu0
        %v2481 = vadd.f32 0.0, %v2480
        %v2482 = vpop.f32.mrb[0].mxu0
        %2483 = vmatprep.mubr.f32.mxu0 0.0
        %2484 = vmatmul.mubr.f32.gmra.mrb[0].mxu0 %v282
        %v2485 = vpop.f32.mrb[0].mxu0
        %v2486 = vadd.f32 0.0, %v2485
        %v2487 = vpop.f32.mrb[0].mxu0
        %2488 = vmatprep.mubr.f32.mxu0 0.0
        %2489 = vmatmul.mubr.f32.gmra.mrb[0].mxu0 %v285
        %v2490 = vpop.f32.mrb[0].mxu0
        %v2491 = vadd.f32 0.0, %v2490
        %v2492 = vpop.f32.mrb[0].mxu0
        %2493 = vdwg.mxu0
        %s2494 = sld [smem:[#allocation3 + $0x12]]
        %v2495 = vstv %s2494
        %v2496 = vmul.f32 %v2495, %v1996
        %s2497 = sld [smem:[#allocation3 + $0x13]]
        %v2498 = vstv %s2497
        %v2499 = vmul.f32 %v2498, %v2156
        %v2500 = vadd.f32 %v2496, %v2499
        %s2501 = sld [smem:[#allocation3 + $0x14]]
        %v2502 = vstv %s2501
        %v2503 = vmul.f32 %v2502, %v2316
        %v2504 = vadd.f32 %v2500, %v2503
        %s2505 = sld [smem:[#allocation3 + $0x15]]
        %v2506 = vstv %s2505
        %v2507 = vmul.f32 %v2506, %v2001
        %v2508 = vadd.f32 %v2504, %v2507
        %s2509 = sld [smem:[#allocation3 + $0x16]]
        %v2510 = vstv %s2509
        %v2511 = vmul.f32 %v2510, %v2161
        %v2512 = vadd.f32 %v2508, %v2511
        %s2513 = sld [smem:[#allocation3 + $0x17]]
        %v2514 = vstv %s2513
        %v2515 = vmul.f32 %v2514, %v2321
        %v2516 = vadd.f32 %v2512, %v2515
        %s2517 = sld [smem:[#allocation3 + $0x18]]
        %v2518 = vstv %s2517
        %v2519 = vmul.f32 %v2518, %v2006
        %v2520 = vadd.f32 %v2516, %v2519
        %s2521 = sld [smem:[#allocation3 + $0x19]]
        %v2522 = vstv %s2521
        %v2523 = vmul.f32 %v2522, %v2166
        %v2524 = vadd.f32 %v2520, %v2523
        %s2525 = sld [smem:[#allocation3 + $0x1a]]
        %v2526 = vstv %s2525
        %v2527 = vmul.f32 %v2526, %v2326
        %v2528 = vadd.f32 %v2524, %v2527
        %v2529 = vadd.f32 %v886, %v2528
        %v2530 = vmul.f32 %v2495, %v2156
        %v2531 = vmul.f32 %v2498, %v2316
        %v2532 = vadd.f32 %v2530, %v2531
        %v2533 = vmul.f32 %v2502, %v2476
        %v2534 = vadd.f32 %v2532, %v2533
        %v2535 = vmul.f32 %v2506, %v2161
        %v2536 = vadd.f32 %v2534, %v2535
        %v2537 = vmul.f32 %v2510, %v2321
        %v2538 = vadd.f32 %v2536, %v2537
        %v2539 = vmul.f32 %v2514, %v2481
        %v2540 = vadd.f32 %v2538, %v2539
        %v2541 = vmul.f32 %v2518, %v2166
        %v2542 = vadd.f32 %v2540, %v2541
        %v2543 = vmul.f32 %v2522, %v2326
        %v2544 = vadd.f32 %v2542, %v2543
        %v2545 = vmul.f32 %v2526, %v2486
        %v2546 = vadd.f32 %v2544, %v2545
        %v2547 = vadd.f32 %v903, %v2546
        %v2548 = vmul.f32 %v2495, %v2001
        %v2549 = vmul.f32 %v2498, %v2161
        %v2550 = vadd.f32 %v2548, %v2549
        %v2551 = vmul.f32 %v2502, %v2321
        %v2552 = vadd.f32 %v2550, %v2551
        %v2553 = vmul.f32 %v2506, %v2006
        %v2554 = vadd.f32 %v2552, %v2553
        %v2555 = vmul.f32 %v2510, %v2166
        %v2556 = vadd.f32 %v2554, %v2555
        %v2557 = vmul.f32 %v2514, %v2326
        %v2558 = vadd.f32 %v2556, %v2557
        %v2559 = vmul.f32 %v2518, %v2011
        %v2560 = vadd.f32 %v2558, %v2559
        %v2561 = vmul.f32 %v2522, %v2171
        %v2562 = vadd.f32 %v2560, %v2561
        %v2563 = vmul.f32 %v2526, %v2331
        %v2564 = vadd.f32 %v2562, %v2563
        %v2565 = vadd.f32 %v920, %v2564
        %v2566 = vmul.f32 %v2495, %v2161
        %v2567 = vmul.f32 %v2498, %v2321
        %v2568 = vadd.f32 %v2566, %v2567
        %v2569 = vmul.f32 %v2502, %v2481
        %v2570 = vadd.f32 %v2568, %v2569
        %v2571 = vmul.f32 %v2506, %v2166
        %v2572 = vadd.f32 %v2570, %v2571
        %v2573 = vmul.f32 %v2510, %v2326
        %v2574 = vadd.f32 %v2572, %v2573
        %v2575 = vmul.f32 %v2514, %v2486
        %v2576 = vadd.f32 %v2574, %v2575
        %v2577 = vmul.f32 %v2518, %v2171
        %v2578 = vadd.f32 %v2576, %v2577
        %v2579 = vmul.f32 %v2522, %v2331
        %v2580 = vadd.f32 %v2578, %v2579
        %v2581 = vmul.f32 %v2526, %v2491
        %v2582 = vadd.f32 %v2580, %v2581
        %v2583 = vadd.f32 %v937, %v2582
        %s2584 = sld [smem:[#allocation3 + $0x36]]
        %v2585 = vstv %s2584
        %v2586 = vmul.f32 %v2585, %v1996
        %s2587 = sld [smem:[#allocation3 + $0x37]]
        %v2588 = vstv %s2587
        %v2589 = vmul.f32 %v2588, %v2156
        %v2590 = vadd.f32 %v2586, %v2589
        %s2591 = sld [smem:[#allocation3 + $0x38]]
        %v2592 = vstv %s2591
        %v2593 = vmul.f32 %v2592, %v2316
        %v2594 = vadd.f32 %v2590, %v2593
        %s2595 = sld [smem:[#allocation3 + $0x39]]
        %v2596 = vstv %s2595
        %v2597 = vmul.f32 %v2596, %v2001
        %v2598 = vadd.f32 %v2594, %v2597
        %s2599 = sld [smem:[#allocation3 + $0x3a]]
        %v2600 = vstv %s2599
        %v2601 = vmul.f32 %v2600, %v2161
        %v2602 = vadd.f32 %v2598, %v2601
        %s2603 = sld [smem:[#allocation3 + $0x3b]]
        %v2604 = vstv %s2603
        %v2605 = vmul.f32 %v2604, %v2321
        %v2606 = vadd.f32 %v2602, %v2605
        %s2607 = sld [smem:[#allocation3 + $0x3c]]
        %v2608 = vstv %s2607
        %v2609 = vmul.f32 %v2608, %v2006
        %v2610 = vadd.f32 %v2606, %v2609
        %s2611 = sld [smem:[#allocation3 + $0x3d]]
        %v2612 = vstv %s2611
        %v2613 = vmul.f32 %v2612, %v2166
        %v2614 = vadd.f32 %v2610, %v2613
        %s2615 = sld [smem:[#allocation3 + $0x3e]]
        %v2616 = vstv %s2615
        %v2617 = vmul.f32 %v2616, %v2326
        %v2618 = vadd.f32 %v2614, %v2617
        %v2619 = vadd.f32 %v972, %v2618
        %v2620 = vmul.f32 %v2585, %v2156
        %v2621 = vmul.f32 %v2588, %v2316
        %v2622 = vadd.f32 %v2620, %v2621
        %v2623 = vmul.f32 %v2592, %v2476
        %v2624 = vadd.f32 %v2622, %v2623
        %v2625 = vmul.f32 %v2596, %v2161
        %v2626 = vadd.f32 %v2624, %v2625
        %v2627 = vmul.f32 %v2600, %v2321
        %v2628 = vadd.f32 %v2626, %v2627
        %v2629 = vmul.f32 %v2604, %v2481
        %v2630 = vadd.f32 %v2628, %v2629
        %v2631 = vmul.f32 %v2608, %v2166
        %v2632 = vadd.f32 %v2630, %v2631
        %v2633 = vmul.f32 %v2612, %v2326
        %v2634 = vadd.f32 %v2632, %v2633
        %v2635 = vmul.f32 %v2616, %v2486
        %v2636 = vadd.f32 %v2634, %v2635
        %v2637 = vadd.f32 %v989, %v2636
        %v2638 = vmul.f32 %v2585, %v2001
        %v2639 = vmul.f32 %v2588, %v2161
        %v2640 = vadd.f32 %v2638, %v2639
        %v2641 = vmul.f32 %v2592, %v2321
        %v2642 = vadd.f32 %v2640, %v2641
        %v2643 = vmul.f32 %v2596, %v2006
        %v2644 = vadd.f32 %v2642, %v2643
        %v2645 = vmul.f32 %v2600, %v2166
        %v2646 = vadd.f32 %v2644, %v2645
        %v2647 = vmul.f32 %v2604, %v2326
        %v2648 = vadd.f32 %v2646, %v2647
        %v2649 = vmul.f32 %v2608, %v2011
        %v2650 = vadd.f32 %v2648, %v2649
        %v2651 = vmul.f32 %v2612, %v2171
        %v2652 = vadd.f32 %v2650, %v2651
        %v2653 = vmul.f32 %v2616, %v2331
        %v2654 = vadd.f32 %v2652, %v2653
        %v2655 = vadd.f32 %v1006, %v2654
        %v2656 = vmul.f32 %v2585, %v2161
        %v2657 = vmul.f32 %v2588, %v2321
        %v2658 = vadd.f32 %v2656, %v2657
        %v2659 = vmul.f32 %v2592, %v2481
        %v2660 = vadd.f32 %v2658, %v2659
        %v2661 = vmul.f32 %v2596, %v2166
        %v2662 = vadd.f32 %v2660, %v2661
        %v2663 = vmul.f32 %v2600, %v2326
        %v2664 = vadd.f32 %v2662, %v2663
        %v2665 = vmul.f32 %v2604, %v2486
        %v2666 = vadd.f32 %v2664, %v2665
        %v2667 = vmul.f32 %v2608, %v2171
        %v2668 = vadd.f32 %v2666, %v2667
        %v2669 = vmul.f32 %v2612, %v2331
        %v2670 = vadd.f32 %v2668, %v2669
        %v2671 = vmul.f32 %v2616, %v2491
        %v2672 = vadd.f32 %v2670, %v2671
        %v2673 = vadd.f32 %v1023, %v2672
        %s2674 = scalar_lea.vmem %s175, 48
        %v2675 = vld [vmem:[%s2674] sm:$0xff]
        %v2676 = vld [vmem:[%s2674 + $0x8] sm:$0xff]
        %v2678 = vsel %vm193, %v2675, 0
        %v2681 = vsel %vm193, %v2676, 0
        %2683 = vmatprep.subr.mxu0 0.0
        %2684 = vmatpush1.msra.mxu0 %v180
        %2685 = vmatprep.subr.mxu0 0.0
        %2686 = vmatpush1.msra.mxu0 %v181
        %2687 = vmatprep.subr.mxu0 0.0
        %2688 = vmatpush1.msra.mxu0 0.0
        %2689 = vmatprep.subr.mxu0 0.0
        %2690 = vmatpush1.msra.mxu0 0.0
        %2691 = vmatprep.subr.mxu0 0.0
        %2692 = vmatpush1.msra.mxu0 0.0
        %2693 = vmatprep.subr.mxu0 0.0
        %2694 = vmatpush1.msra.mxu0 0.0
        %2695 = vmatprep.subr.mxu0 0.0
        %2696 = vmatpush1.msra.mxu0 0.0
        %2697 = vmatprep.subr.mxu0 0.0
        %2698 = vmatpush1.msra.mxu0 0.0
        %2699 = vmatprep.subr.mxu0 0.0
        %2700 = vmatpush1.msra.mxu0 0.0
        %2701 = vmatprep.subr.mxu0 0.0
        %2702 = vmatpush1.msra.mxu0 0.0
        %2703 = vmatprep.subr.mxu0 0.0
        %2704 = vmatpush1.msra.mxu0 0.0
        %2705 = vmatprep.subr.mxu0 0.0
        %2706 = vmatpush1.msra.mxu0 0.0
        %2707 = vmatprep.subr.mxu0 0.0
        %2708 = vmatpush1.msra.mxu0 0.0
        %2709 = vmatprep.subr.mxu0 0.0
        %2710 = vmatpush1.msra.mxu0 0.0
        %2711 = vmatprep.subr.mxu0 0.0
        %2712 = vmatpush1.msra.mxu0 0.0
        %2713 = vmatprep.subr.mxu0 0.0
        %2714 = vmatpush1.msra.mxu0 0.0
        %2715 = vmatprep.subr.mxu0 0.0
        %2716 = vmatpush1.msra.mxu0 0.0
        %2717 = vmatprep.subr.mxu0 0.0
        %2718 = vmatpush1.msra.mxu0 0.0
        %2719 = vmatprep.subr.mxu0 0.0
        %2720 = vmatpush1.msra.mxu0 0.0
        %2721 = vmatprep.subr.mxu0 0.0
        %2722 = vmatpush1.msra.mxu0 0.0
        %2723 = vmatprep.subr.mxu0 0.0
        %2724 = vmatpush1.msra.mxu0 0.0
        %2725 = vmatprep.subr.mxu0 0.0
        %2726 = vmatpush1.msra.mxu0 0.0
        %2727 = vmatprep.subr.mxu0 0.0
        %2728 = vmatpush1.msra.mxu0 0.0
        %2729 = vmatprep.subr.mxu0 0.0
        %2730 = vmatpush1.msra.mxu0 0.0
        %2731 = vmatprep.subr.mxu0 0.0
        %2732 = vmatpush1.msra.mxu0 0.0
        %2733 = vmatprep.subr.mxu0 0.0
        %2734 = vmatpush1.msra.mxu0 0.0
        %2735 = vmatprep.subr.mxu0 0.0
        %2736 = vmatpush1.msra.mxu0 0.0
        %2737 = vmatprep.subr.mxu0 0.0
        %2738 = vmatpush1.msra.mxu0 0.0
        %2739 = vmatprep.subr.mxu0 0.0
        %2740 = vmatpush1.msra.mxu0 0.0
        %2741 = vmatprep.subr.mxu0 0.0
        %2742 = vmatpush1.msra.mxu0 0.0
        %2743 = vmatprep.subr.mxu0 0.0
        %2744 = vmatpush1.msra.mxu0 0.0
        %2745 = vmatprep.subr.mxu0 0.0
        %2746 = vmatpush1.msra.mxu0 0.0
        %2747 = vmatprep.mubr.f32.mxu0 0.0
        %2748 = vmatmul.mubr.f32.gmra.mrb[0].mxu0 %v2678
        %v2749 = vpop.f32.mrb[0].mxu0
        %v2750 = vadd.f32 0.0, %v2749
        %v2751 = vpop.f32.mrb[0].mxu0
        %2752 = vmatprep.mubr.f32.mxu0 0.0
        %2753 = vmatmul.mubr.f32.gmra.mrb[0].mxu0 %v2681
        %v2754 = vpop.f32.mrb[0].mxu0
        %v2755 = vadd.f32 0.0, %v2754
        %v2756 = vpop.f32.mrb[0].mxu0
        %2757 = vdwg.mxu0
        %2758 = vmatprep.subr.mxu0 0.0
        %2759 = vmatpush1.msra.mxu0 %v2750
        %2760 = vmatprep.subr.mxu0 0.0
        %2761 = vmatpush1.msra.mxu0 %v2755
        %2762 = vmatprep.subr.mxu0 0.0
        %2763 = vmatpush1.msra.mxu0 0.0
        %2764 = vmatprep.subr.mxu0 0.0
        %2765 = vmatpush1.msra.mxu0 0.0
        %2766 = vmatprep.subr.mxu0 0.0
        %2767 = vmatpush1.msra.mxu0 0.0
        %2768 = vmatprep.subr.mxu0 0.0
        %2769 = vmatpush1.msra.mxu0 0.0
        %2770 = vmatprep.subr.mxu0 0.0
        %2771 = vmatpush1.msra.mxu0 0.0
        %2772 = vmatprep.subr.mxu0 0.0
        %2773 = vmatpush1.msra.mxu0 0.0
        %2774 = vmatprep.subr.mxu0 0.0
        %2775 = vmatpush1.msra.mxu0 0.0
        %2776 = vmatprep.subr.mxu0 0.0
        %2777 = vmatpush1.msra.mxu0 0.0
        %2778 = vmatprep.subr.mxu0 0.0
        %2779 = vmatpush1.msra.mxu0 0.0
        %2780 = vmatprep.subr.mxu0 0.0
        %2781 = vmatpush1.msra.mxu0 0.0
        %2782 = vmatprep.subr.mxu0 0.0
        %2783 = vmatpush1.msra.mxu0 0.0
        %2784 = vmatprep.subr.mxu0 0.0
        %2785 = vmatpush1.msra.mxu0 0.0
        %2786 = vmatprep.subr.mxu0 0.0
        %2787 = vmatpush1.msra.mxu0 0.0
        %2788 = vmatprep.subr.mxu0 0.0
        %2789 = vmatpush1.msra.mxu0 0.0
        %2790 = vmatprep.subr.mxu0 0.0
        %2791 = vmatpush1.msra.mxu0 0.0
        %2792 = vmatprep.subr.mxu0 0.0
        %2793 = vmatpush1.msra.mxu0 0.0
        %2794 = vmatprep.subr.mxu0 0.0
        %2795 = vmatpush1.msra.mxu0 0.0
        %2796 = vmatprep.subr.mxu0 0.0
        %2797 = vmatpush1.msra.mxu0 0.0
        %2798 = vmatprep.subr.mxu0 0.0
        %2799 = vmatpush1.msra.mxu0 0.0
        %2800 = vmatprep.subr.mxu0 0.0
        %2801 = vmatpush1.msra.mxu0 0.0
        %2802 = vmatprep.subr.mxu0 0.0
        %2803 = vmatpush1.msra.mxu0 0.0
        %2804 = vmatprep.subr.mxu0 0.0
        %2805 = vmatpush1.msra.mxu0 0.0
        %2806 = vmatprep.subr.mxu0 0.0
        %2807 = vmatpush1.msra.mxu0 0.0
        %2808 = vmatprep.subr.mxu0 0.0
        %2809 = vmatpush1.msra.mxu0 0.0
        %2810 = vmatprep.subr.mxu0 0.0
        %2811 = vmatpush1.msra.mxu0 0.0
        %2812 = vmatprep.subr.mxu0 0.0
        %2813 = vmatpush1.msra.mxu0 0.0
        %2814 = vmatprep.subr.mxu0 0.0
        %2815 = vmatpush1.msra.mxu0 0.0
        %2816 = vmatprep.subr.mxu0 0.0
        %2817 = vmatpush1.msra.mxu0 0.0
        %2818 = vmatprep.subr.mxu0 0.0
        %2819 = vmatpush1.msra.mxu0 0.0
        %2820 = vmatprep.subr.mxu0 0.0
        %2821 = vmatpush1.msra.mxu0 0.0
        %2822 = vmatprep.mubr.f32.mxu0 0.0
        %2823 = vmatmul.mubr.f32.gmra.mrb[0].mxu0 %v276
        %v2824 = vpop.f32.mrb[0].mxu0
        %v2825 = vadd.f32 0.0, %v2824
        %v2826 = vpop.f32.mrb[0].mxu0
        %2827 = vmatprep.mubr.f32.mxu0 0.0
        %2828 = vmatmul.mubr.f32.gmra.mrb[0].mxu0 %v279
        %v2829 = vpop.f32.mrb[0].mxu0
        %v2830 = vadd.f32 0.0, %v2829
        %v2831 = vpop.f32.mrb[0].mxu0
        %2832 = vmatprep.mubr.f32.mxu0 0.0
        %2833 = vmatmul.mubr.f32.gmra.mrb[0].mxu0 %v282
        %v2834 = vpop.f32.mrb[0].mxu0
        %v2835 = vadd.f32 0.0, %v2834
        %v2836 = vpop.f32.mrb[0].mxu0
        %2837 = vmatprep.mubr.f32.mxu0 0.0
        %2838 = vmatmul.mubr.f32.gmra.mrb[0].mxu0 %v285
        %v2839 = vpop.f32.mrb[0].mxu0
        %v2840 = vadd.f32 0.0, %v2839
        %v2841 = vpop.f32.mrb[0].mxu0
        %2842 = vdwg.mxu0
        %2843 = vmatprep.subr.mxu0 0.0
        %2844 = vmatpush1.msra.mxu0 %v183
        %2845 = vmatprep.subr.mxu0 0.0
        %2846 = vmatpush1.msra.mxu0 %v184
        %2847 = vmatprep.subr.mxu0 0.0
        %2848 = vmatpush1.msra.mxu0 0.0
        %2849 = vmatprep.subr.mxu0 0.0
        %2850 = vmatpush1.msra.mxu0 0.0
        %2851 = vmatprep.subr.mxu0 0.0
        %2852 = vmatpush1.msra.mxu0 0.0
        %2853 = vmatprep.subr.mxu0 0.0
        %2854 = vmatpush1.msra.mxu0 0.0
        %2855 = vmatprep.subr.mxu0 0.0
        %2856 = vmatpush1.msra.mxu0 0.0
        %2857 = vmatprep.subr.mxu0 0.0
        %2858 = vmatpush1.msra.mxu0 0.0
        %2859 = vmatprep.subr.mxu0 0.0
        %2860 = vmatpush1.msra.mxu0 0.0
        %2861 = vmatprep.subr.mxu0 0.0
        %2862 = vmatpush1.msra.mxu0 0.0
        %2863 = vmatprep.subr.mxu0 0.0
        %2864 = vmatpush1.msra.mxu0 0.0
        %2865 = vmatprep.subr.mxu0 0.0
        %2866 = vmatpush1.msra.mxu0 0.0
        %2867 = vmatprep.subr.mxu0 0.0
        %2868 = vmatpush1.msra.mxu0 0.0
        %2869 = vmatprep.subr.mxu0 0.0
        %2870 = vmatpush1.msra.mxu0 0.0
        %2871 = vmatprep.subr.mxu0 0.0
        %2872 = vmatpush1.msra.mxu0 0.0
        %2873 = vmatprep.subr.mxu0 0.0
        %2874 = vmatpush1.msra.mxu0 0.0
        %2875 = vmatprep.subr.mxu0 0.0
        %2876 = vmatpush1.msra.mxu0 0.0
        %2877 = vmatprep.subr.mxu0 0.0
        %2878 = vmatpush1.msra.mxu0 0.0
        %2879 = vmatprep.subr.mxu0 0.0
        %2880 = vmatpush1.msra.mxu0 0.0
        %2881 = vmatprep.subr.mxu0 0.0
        %2882 = vmatpush1.msra.mxu0 0.0
        %2883 = vmatprep.subr.mxu0 0.0
        %2884 = vmatpush1.msra.mxu0 0.0
        %2885 = vmatprep.subr.mxu0 0.0
        %2886 = vmatpush1.msra.mxu0 0.0
        %2887 = vmatprep.subr.mxu0 0.0
        %2888 = vmatpush1.msra.mxu0 0.0
        %2889 = vmatprep.subr.mxu0 0.0
        %2890 = vmatpush1.msra.mxu0 0.0
        %2891 = vmatprep.subr.mxu0 0.0
        %2892 = vmatpush1.msra.mxu0 0.0
        %2893 = vmatprep.subr.mxu0 0.0
        %2894 = vmatpush1.msra.mxu0 0.0
        %2895 = vmatprep.subr.mxu0 0.0
        %2896 = vmatpush1.msra.mxu0 0.0
        %2897 = vmatprep.subr.mxu0 0.0
        %2898 = vmatpush1.msra.mxu0 0.0
        %2899 = vmatprep.subr.mxu0 0.0
        %2900 = vmatpush1.msra.mxu0 0.0
        %2901 = vmatprep.subr.mxu0 0.0
        %2902 = vmatpush1.msra.mxu0 0.0
        %2903 = vmatprep.subr.mxu0 0.0
        %2904 = vmatpush1.msra.mxu0 0.0
        %2905 = vmatprep.subr.mxu0 0.0
        %2906 = vmatpush1.msra.mxu0 0.0
        %2907 = vmatprep.mubr.f32.mxu0 0.0
        %2908 = vmatmul.mubr.f32.gmra.mrb[0].mxu0 %v2678
        %v2909 = vpop.f32.mrb[0].mxu0
        %v2910 = vadd.f32 0.0, %v2909
        %v2911 = vpop.f32.mrb[0].mxu0
        %2912 = vmatprep.mubr.f32.mxu0 0.0
        %2913 = vmatmul.mubr.f32.gmra.mrb[0].mxu0 %v2681
        %v2914 = vpop.f32.mrb[0].mxu0
        %v2915 = vadd.f32 0.0, %v2914
        %v2916 = vpop.f32.mrb[0].mxu0
        %2917 = vdwg.mxu0
        %2918 = vmatprep.subr.mxu0 0.0
        %2919 = vmatpush1.msra.mxu0 %v2910
        %2920 = vmatprep.subr.mxu0 0.0
        %2921 = vmatpush1.msra.mxu0 %v2915
        %2922 = vmatprep.subr.mxu0 0.0
        %2923 = vmatpush1.msra.mxu0 0.0
        %2924 = vmatprep.subr.mxu0 0.0
        %2925 = vmatpush1.msra.mxu0 0.0
        %2926 = vmatprep.subr.mxu0 0.0
        %2927 = vmatpush1.msra.mxu0 0.0
        %2928 = vmatprep.subr.mxu0 0.0
        %2929 = vmatpush1.msra.mxu0 0.0
        %2930 = vmatprep.subr.mxu0 0.0
        %2931 = vmatpush1.msra.mxu0 0.0
        %2932 = vmatprep.subr.mxu0 0.0
        %2933 = vmatpush1.msra.mxu0 0.0
        %2934 = vmatprep.subr.mxu0 0.0
        %2935 = vmatpush1.msra.mxu0 0.0
        %2936 = vmatprep.subr.mxu0 0.0
        %2937 = vmatpush1.msra.mxu0 0.0
        %2938 = vmatprep.subr.mxu0 0.0
        %2939 = vmatpush1.msra.mxu0 0.0
        %2940 = vmatprep.subr.mxu0 0.0
        %2941 = vmatpush1.msra.mxu0 0.0
        %2942 = vmatprep.subr.mxu0 0.0
        %2943 = vmatpush1.msra.mxu0 0.0
        %2944 = vmatprep.subr.mxu0 0.0
        %2945 = vmatpush1.msra.mxu0 0.0
        %2946 = vmatprep.subr.mxu0 0.0
        %2947 = vmatpush1.msra.mxu0 0.0
        %2948 = vmatprep.subr.mxu0 0.0
        %2949 = vmatpush1.msra.mxu0 0.0
        %2950 = vmatprep.subr.mxu0 0.0
        %2951 = vmatpush1.msra.mxu0 0.0
        %2952 = vmatprep.subr.mxu0 0.0
        %2953 = vmatpush1.msra.mxu0 0.0
        %2954 = vmatprep.subr.mxu0 0.0
        %2955 = vmatpush1.msra.mxu0 0.0
        %2956 = vmatprep.subr.mxu0 0.0
        %2957 = vmatpush1.msra.mxu0 0.0
        %2958 = vmatprep.subr.mxu0 0.0
        %2959 = vmatpush1.msra.mxu0 0.0
        %2960 = vmatprep.subr.mxu0 0.0
        %2961 = vmatpush1.msra.mxu0 0.0
        %2962 = vmatprep.subr.mxu0 0.0
        %2963 = vmatpush1.msra.mxu0 0.0
        %2964 = vmatprep.subr.mxu0 0.0
        %2965 = vmatpush1.msra.mxu0 0.0
        %2966 = vmatprep.subr.mxu0 0.0
        %2967 = vmatpush1.msra.mxu0 0.0
        %2968 = vmatprep.subr.mxu0 0.0
        %2969 = vmatpush1.msra.mxu0 0.0
        %2970 = vmatprep.subr.mxu0 0.0
        %2971 = vmatpush1.msra.mxu0 0.0
        %2972 = vmatprep.subr.mxu0 0.0
        %2973 = vmatpush1.msra.mxu0 0.0
        %2974 = vmatprep.subr.mxu0 0.0
        %2975 = vmatpush1.msra.mxu0 0.0
        %2976 = vmatprep.subr.mxu0 0.0
        %2977 = vmatpush1.msra.mxu0 0.0
        %2978 = vmatprep.subr.mxu0 0.0
        %2979 = vmatpush1.msra.mxu0 0.0
        %2980 = vmatprep.subr.mxu0 0.0
        %2981 = vmatpush1.msra.mxu0 0.0
        %2982 = vmatprep.mubr.f32.mxu0 0.0
        %2983 = vmatmul.mubr.f32.gmra.mrb[0].mxu0 %v276
        %v2984 = vpop.f32.mrb[0].mxu0
        %v2985 = vadd.f32 0.0, %v2984
        %v2986 = vpop.f32.mrb[0].mxu0
        %2987 = vmatprep.mubr.f32.mxu0 0.0
        %2988 = vmatmul.mubr.f32.gmra.mrb[0].mxu0 %v279
        %v2989 = vpop.f32.mrb[0].mxu0
        %v2990 = vadd.f32 0.0, %v2989
        %v2991 = vpop.f32.mrb[0].mxu0
        %2992 = vmatprep.mubr.f32.mxu0 0.0
        %2993 = vmatmul.mubr.f32.gmra.mrb[0].mxu0 %v282
        %v2994 = vpop.f32.mrb[0].mxu0
        %v2995 = vadd.f32 0.0, %v2994
        %v2996 = vpop.f32.mrb[0].mxu0
        %2997 = vmatprep.mubr.f32.mxu0 0.0
        %2998 = vmatmul.mubr.f32.gmra.mrb[0].mxu0 %v285
        %v2999 = vpop.f32.mrb[0].mxu0
        %v3000 = vadd.f32 0.0, %v2999
        %v3001 = vpop.f32.mrb[0].mxu0
        %3002 = vdwg.mxu0
        %3003 = vmatprep.subr.mxu0 0.0
        %3004 = vmatpush1.msra.mxu0 %v186
        %3005 = vmatprep.subr.mxu0 0.0
        %3006 = vmatpush1.msra.mxu0 %v187
        %3007 = vmatprep.subr.mxu0 0.0
        %3008 = vmatpush1.msra.mxu0 0.0
        %3009 = vmatprep.subr.mxu0 0.0
        %3010 = vmatpush1.msra.mxu0 0.0
        %3011 = vmatprep.subr.mxu0 0.0
        %3012 = vmatpush1.msra.mxu0 0.0
        %3013 = vmatprep.subr.mxu0 0.0
        %3014 = vmatpush1.msra.mxu0 0.0
        %3015 = vmatprep.subr.mxu0 0.0
        %3016 = vmatpush1.msra.mxu0 0.0
        %3017 = vmatprep.subr.mxu0 0.0
        %3018 = vmatpush1.msra.mxu0 0.0
        %3019 = vmatprep.subr.mxu0 0.0
        %3020 = vmatpush1.msra.mxu0 0.0
        %3021 = vmatprep.subr.mxu0 0.0
        %3022 = vmatpush1.msra.mxu0 0.0
        %3023 = vmatprep.subr.mxu0 0.0
        %3024 = vmatpush1.msra.mxu0 0.0
        %3025 = vmatprep.subr.mxu0 0.0
        %3026 = vmatpush1.msra.mxu0 0.0
        %3027 = vmatprep.subr.mxu0 0.0
        %3028 = vmatpush1.msra.mxu0 0.0
        %3029 = vmatprep.subr.mxu0 0.0
        %3030 = vmatpush1.msra.mxu0 0.0
        %3031 = vmatprep.subr.mxu0 0.0
        %3032 = vmatpush1.msra.mxu0 0.0
        %3033 = vmatprep.subr.mxu0 0.0
        %3034 = vmatpush1.msra.mxu0 0.0
        %3035 = vmatprep.subr.mxu0 0.0
        %3036 = vmatpush1.msra.mxu0 0.0
        %3037 = vmatprep.subr.mxu0 0.0
        %3038 = vmatpush1.msra.mxu0 0.0
        %3039 = vmatprep.subr.mxu0 0.0
        %3040 = vmatpush1.msra.mxu0 0.0
        %3041 = vmatprep.subr.mxu0 0.0
        %3042 = vmatpush1.msra.mxu0 0.0
        %3043 = vmatprep.subr.mxu0 0.0
        %3044 = vmatpush1.msra.mxu0 0.0
        %3045 = vmatprep.subr.mxu0 0.0
        %3046 = vmatpush1.msra.mxu0 0.0
        %3047 = vmatprep.subr.mxu0 0.0
        %3048 = vmatpush1.msra.mxu0 0.0
        %3049 = vmatprep.subr.mxu0 0.0
        %3050 = vmatpush1.msra.mxu0 0.0
        %3051 = vmatprep.subr.mxu0 0.0
        %3052 = vmatpush1.msra.mxu0 0.0
        %3053 = vmatprep.subr.mxu0 0.0
        %3054 = vmatpush1.msra.mxu0 0.0
        %3055 = vmatprep.subr.mxu0 0.0
        %3056 = vmatpush1.msra.mxu0 0.0
        %3057 = vmatprep.subr.mxu0 0.0
        %3058 = vmatpush1.msra.mxu0 0.0
        %3059 = vmatprep.subr.mxu0 0.0
        %3060 = vmatpush1.msra.mxu0 0.0
        %3061 = vmatprep.subr.mxu0 0.0
        %3062 = vmatpush1.msra.mxu0 0.0
        %3063 = vmatprep.subr.mxu0 0.0
        %3064 = vmatpush1.msra.mxu0 0.0
        %3065 = vmatprep.subr.mxu0 0.0
        %3066 = vmatpush1.msra.mxu0 0.0
        %3067 = vmatprep.mubr.f32.mxu0 0.0
        %3068 = vmatmul.mubr.f32.gmra.mrb[0].mxu0 %v2678
        %v3069 = vpop.f32.mrb[0].mxu0
        %v3070 = vadd.f32 0.0, %v3069
        %v3071 = vpop.f32.mrb[0].mxu0
        %3072 = vmatprep.mubr.f32.mxu0 0.0
        %3073 = vmatmul.mubr.f32.gmra.mrb[0].mxu0 %v2681
        %v3074 = vpop.f32.mrb[0].mxu0
        %v3075 = vadd.f32 0.0, %v3074
        %v3076 = vpop.f32.mrb[0].mxu0
        %3077 = vdwg.mxu0
        %3078 = vmatprep.subr.mxu0 0.0
        %3079 = vmatpush1.msra.mxu0 %v3070
        %3080 = vmatprep.subr.mxu0 0.0
        %3081 = vmatpush1.msra.mxu0 %v3075
        %3082 = vmatprep.subr.mxu0 0.0
        %3083 = vmatpush1.msra.mxu0 0.0
        %3084 = vmatprep.subr.mxu0 0.0
        %3085 = vmatpush1.msra.mxu0 0.0
        %3086 = vmatprep.subr.mxu0 0.0
        %3087 = vmatpush1.msra.mxu0 0.0
        %3088 = vmatprep.subr.mxu0 0.0
        %3089 = vmatpush1.msra.mxu0 0.0
        %3090 = vmatprep.subr.mxu0 0.0
        %3091 = vmatpush1.msra.mxu0 0.0
        %3092 = vmatprep.subr.mxu0 0.0
        %3093 = vmatpush1.msra.mxu0 0.0
        %3094 = vmatprep.subr.mxu0 0.0
        %3095 = vmatpush1.msra.mxu0 0.0
        %3096 = vmatprep.subr.mxu0 0.0
        %3097 = vmatpush1.msra.mxu0 0.0
        %3098 = vmatprep.subr.mxu0 0.0
        %3099 = vmatpush1.msra.mxu0 0.0
        %3100 = vmatprep.subr.mxu0 0.0
        %3101 = vmatpush1.msra.mxu0 0.0
        %3102 = vmatprep.subr.mxu0 0.0
        %3103 = vmatpush1.msra.mxu0 0.0
        %3104 = vmatprep.subr.mxu0 0.0
        %3105 = vmatpush1.msra.mxu0 0.0
        %3106 = vmatprep.subr.mxu0 0.0
        %3107 = vmatpush1.msra.mxu0 0.0
        %3108 = vmatprep.subr.mxu0 0.0
        %3109 = vmatpush1.msra.mxu0 0.0
        %3110 = vmatprep.subr.mxu0 0.0
        %3111 = vmatpush1.msra.mxu0 0.0
        %3112 = vmatprep.subr.mxu0 0.0
        %3113 = vmatpush1.msra.mxu0 0.0
        %3114 = vmatprep.subr.mxu0 0.0
        %3115 = vmatpush1.msra.mxu0 0.0
        %3116 = vmatprep.subr.mxu0 0.0
        %3117 = vmatpush1.msra.mxu0 0.0
        %3118 = vmatprep.subr.mxu0 0.0
        %3119 = vmatpush1.msra.mxu0 0.0
        %3120 = vmatprep.subr.mxu0 0.0
        %3121 = vmatpush1.msra.mxu0 0.0
        %3122 = vmatprep.subr.mxu0 0.0
        %3123 = vmatpush1.msra.mxu0 0.0
        %3124 = vmatprep.subr.mxu0 0.0
        %3125 = vmatpush1.msra.mxu0 0.0
        %3126 = vmatprep.subr.mxu0 0.0
        %3127 = vmatpush1.msra.mxu0 0.0
        %3128 = vmatprep.subr.mxu0 0.0
        %3129 = vmatpush1.msra.mxu0 0.0
        %3130 = vmatprep.subr.mxu0 0.0
        %3131 = vmatpush1.msra.mxu0 0.0
        %3132 = vmatprep.subr.mxu0 0.0
        %3133 = vmatpush1.msra.mxu0 0.0
        %3134 = vmatprep.subr.mxu0 0.0
        %3135 = vmatpush1.msra.mxu0 0.0
        %3136 = vmatprep.subr.mxu0 0.0
        %3137 = vmatpush1.msra.mxu0 0.0
        %3138 = vmatprep.subr.mxu0 0.0
        %3139 = vmatpush1.msra.mxu0 0.0
        %3140 = vmatprep.subr.mxu0 0.0
        %3141 = vmatpush1.msra.mxu0 0.0
        %3142 = vmatprep.mubr.f32.mxu0 0.0
        %3143 = vmatmul.mubr.f32.gmra.mrb[0].mxu0 %v276
        %v3144 = vpop.f32.mrb[0].mxu0
        %v3145 = vadd.f32 0.0, %v3144
        %v3146 = vpop.f32.mrb[0].mxu0
        %3147 = vmatprep.mubr.f32.mxu0 0.0
        %3148 = vmatmul.mubr.f32.gmra.mrb[0].mxu0 %v279
        %v3149 = vpop.f32.mrb[0].mxu0
        %v3150 = vadd.f32 0.0, %v3149
        %v3151 = vpop.f32.mrb[0].mxu0
        %3152 = vmatprep.mubr.f32.mxu0 0.0
        %3153 = vmatmul.mubr.f32.gmra.mrb[0].mxu0 %v282
        %v3154 = vpop.f32.mrb[0].mxu0
        %v3155 = vadd.f32 0.0, %v3154
        %v3156 = vpop.f32.mrb[0].mxu0
        %3157 = vmatprep.mubr.f32.mxu0 0.0
        %3158 = vmatmul.mubr.f32.gmra.mrb[0].mxu0 %v285
        %v3159 = vpop.f32.mrb[0].mxu0
        %v3160 = vadd.f32 0.0, %v3159
        %v3161 = vpop.f32.mrb[0].mxu0
        %3162 = vdwg.mxu0
        %3163 = vmatprep.subr.mxu0 0.0
        %3164 = vmatpush1.msra.mxu0 %v189
        %3165 = vmatprep.subr.mxu0 0.0
        %3166 = vmatpush1.msra.mxu0 %v190
        %3167 = vmatprep.subr.mxu0 0.0
        %3168 = vmatpush1.msra.mxu0 0.0
        %3169 = vmatprep.subr.mxu0 0.0
        %3170 = vmatpush1.msra.mxu0 0.0
        %3171 = vmatprep.subr.mxu0 0.0
        %3172 = vmatpush1.msra.mxu0 0.0
        %3173 = vmatprep.subr.mxu0 0.0
        %3174 = vmatpush1.msra.mxu0 0.0
        %3175 = vmatprep.subr.mxu0 0.0
        %3176 = vmatpush1.msra.mxu0 0.0
        %3177 = vmatprep.subr.mxu0 0.0
        %3178 = vmatpush1.msra.mxu0 0.0
        %3179 = vmatprep.subr.mxu0 0.0
        %3180 = vmatpush1.msra.mxu0 0.0
        %3181 = vmatprep.subr.mxu0 0.0
        %3182 = vmatpush1.msra.mxu0 0.0
        %3183 = vmatprep.subr.mxu0 0.0
        %3184 = vmatpush1.msra.mxu0 0.0
        %3185 = vmatprep.subr.mxu0 0.0
        %3186 = vmatpush1.msra.mxu0 0.0
        %3187 = vmatprep.subr.mxu0 0.0
        %3188 = vmatpush1.msra.mxu0 0.0
        %3189 = vmatprep.subr.mxu0 0.0
        %3190 = vmatpush1.msra.mxu0 0.0
        %3191 = vmatprep.subr.mxu0 0.0
        %3192 = vmatpush1.msra.mxu0 0.0
        %3193 = vmatprep.subr.mxu0 0.0
        %3194 = vmatpush1.msra.mxu0 0.0
        %3195 = vmatprep.subr.mxu0 0.0
        %3196 = vmatpush1.msra.mxu0 0.0
        %3197 = vmatprep.subr.mxu0 0.0
        %3198 = vmatpush1.msra.mxu0 0.0
        %3199 = vmatprep.subr.mxu0 0.0
        %3200 = vmatpush1.msra.mxu0 0.0
        %3201 = vmatprep.subr.mxu0 0.0
        %3202 = vmatpush1.msra.mxu0 0.0
        %3203 = vmatprep.subr.mxu0 0.0
        %3204 = vmatpush1.msra.mxu0 0.0
        %3205 = vmatprep.subr.mxu0 0.0
        %3206 = vmatpush1.msra.mxu0 0.0
        %3207 = vmatprep.subr.mxu0 0.0
        %3208 = vmatpush1.msra.mxu0 0.0
        %3209 = vmatprep.subr.mxu0 0.0
        %3210 = vmatpush1.msra.mxu0 0.0
        %3211 = vmatprep.subr.mxu0 0.0
        %3212 = vmatpush1.msra.mxu0 0.0
        %3213 = vmatprep.subr.mxu0 0.0
        %3214 = vmatpush1.msra.mxu0 0.0
        %3215 = vmatprep.subr.mxu0 0.0
        %3216 = vmatpush1.msra.mxu0 0.0
        %3217 = vmatprep.subr.mxu0 0.0
        %3218 = vmatpush1.msra.mxu0 0.0
        %3219 = vmatprep.subr.mxu0 0.0
        %3220 = vmatpush1.msra.mxu0 0.0
        %3221 = vmatprep.subr.mxu0 0.0
        %3222 = vmatpush1.msra.mxu0 0.0
        %3223 = vmatprep.subr.mxu0 0.0
        %3224 = vmatpush1.msra.mxu0 0.0
        %3225 = vmatprep.subr.mxu0 0.0
        %3226 = vmatpush1.msra.mxu0 0.0
        %3227 = vmatprep.mubr.f32.mxu0 0.0
        %3228 = vmatmul.mubr.f32.gmra.mrb[0].mxu0 %v2678
        %v3229 = vpop.f32.mrb[0].mxu0
        %v3230 = vadd.f32 0.0, %v3229
        %v3231 = vpop.f32.mrb[0].mxu0
        %3232 = vmatprep.mubr.f32.mxu0 0.0
        %3233 = vmatmul.mubr.f32.gmra.mrb[0].mxu0 %v2681
        %v3234 = vpop.f32.mrb[0].mxu0
        %v3235 = vadd.f32 0.0, %v3234
        %v3236 = vpop.f32.mrb[0].mxu0
        %3237 = vdwg.mxu0
        %3238 = vmatprep.subr.mxu0 0.0
        %3239 = vmatpush1.msra.mxu0 %v3230
        %3240 = vmatprep.subr.mxu0 0.0
        %3241 = vmatpush1.msra.mxu0 %v3235
        %3242 = vmatprep.subr.mxu0 0.0
        %3243 = vmatpush1.msra.mxu0 0.0
        %3244 = vmatprep.subr.mxu0 0.0
        %3245 = vmatpush1.msra.mxu0 0.0
        %3246 = vmatprep.subr.mxu0 0.0
        %3247 = vmatpush1.msra.mxu0 0.0
        %3248 = vmatprep.subr.mxu0 0.0
        %3249 = vmatpush1.msra.mxu0 0.0
        %3250 = vmatprep.subr.mxu0 0.0
        %3251 = vmatpush1.msra.mxu0 0.0
        %3252 = vmatprep.subr.mxu0 0.0
        %3253 = vmatpush1.msra.mxu0 0.0
        %3254 = vmatprep.subr.mxu0 0.0
        %3255 = vmatpush1.msra.mxu0 0.0
        %3256 = vmatprep.subr.mxu0 0.0
        %3257 = vmatpush1.msra.mxu0 0.0
        %3258 = vmatprep.subr.mxu0 0.0
        %3259 = vmatpush1.msra.mxu0 0.0
        %3260 = vmatprep.subr.mxu0 0.0
        %3261 = vmatpush1.msra.mxu0 0.0
        %3262 = vmatprep.subr.mxu0 0.0
        %3263 = vmatpush1.msra.mxu0 0.0
        %3264 = vmatprep.subr.mxu0 0.0
        %3265 = vmatpush1.msra.mxu0 0.0
        %3266 = vmatprep.subr.mxu0 0.0
        %3267 = vmatpush1.msra.mxu0 0.0
        %3268 = vmatprep.subr.mxu0 0.0
        %3269 = vmatpush1.msra.mxu0 0.0
        %3270 = vmatprep.subr.mxu0 0.0
        %3271 = vmatpush1.msra.mxu0 0.0
        %3272 = vmatprep.subr.mxu0 0.0
        %3273 = vmatpush1.msra.mxu0 0.0
        %3274 = vmatprep.subr.mxu0 0.0
        %3275 = vmatpush1.msra.mxu0 0.0
        %3276 = vmatprep.subr.mxu0 0.0
        %3277 = vmatpush1.msra.mxu0 0.0
        %3278 = vmatprep.subr.mxu0 0.0
        %3279 = vmatpush1.msra.mxu0 0.0
        %3280 = vmatprep.subr.mxu0 0.0
        %3281 = vmatpush1.msra.mxu0 0.0
        %3282 = vmatprep.subr.mxu0 0.0
        %3283 = vmatpush1.msra.mxu0 0.0
        %3284 = vmatprep.subr.mxu0 0.0
        %3285 = vmatpush1.msra.mxu0 0.0
        %3286 = vmatprep.subr.mxu0 0.0
        %3287 = vmatpush1.msra.mxu0 0.0
        %3288 = vmatprep.subr.mxu0 0.0
        %3289 = vmatpush1.msra.mxu0 0.0
        %3290 = vmatprep.subr.mxu0 0.0
        %3291 = vmatpush1.msra.mxu0 0.0
        %3292 = vmatprep.subr.mxu0 0.0
        %3293 = vmatpush1.msra.mxu0 0.0
        %3294 = vmatprep.subr.mxu0 0.0
        %3295 = vmatpush1.msra.mxu0 0.0
        %3296 = vmatprep.subr.mxu0 0.0
        %3297 = vmatpush1.msra.mxu0 0.0
        %3298 = vmatprep.subr.mxu0 0.0
        %3299 = vmatpush1.msra.mxu0 0.0
        %3300 = vmatprep.subr.mxu0 0.0
        %3301 = vmatpush1.msra.mxu0 0.0
        %3302 = vmatprep.mubr.f32.mxu0 0.0
        %3303 = vmatmul.mubr.f32.gmra.mrb[0].mxu0 %v276
        %v3304 = vpop.f32.mrb[0].mxu0
        %v3305 = vadd.f32 0.0, %v3304
        %v3306 = vpop.f32.mrb[0].mxu0
        %3307 = vmatprep.mubr.f32.mxu0 0.0
        %3308 = vmatmul.mubr.f32.gmra.mrb[0].mxu0 %v279
        %v3309 = vpop.f32.mrb[0].mxu0
        %v3310 = vadd.f32 0.0, %v3309
        %v3311 = vpop.f32.mrb[0].mxu0
        %3312 = vmatprep.mubr.f32.mxu0 0.0
        %3313 = vmatmul.mubr.f32.gmra.mrb[0].mxu0 %v282
        %v3314 = vpop.f32.mrb[0].mxu0
        %v3315 = vadd.f32 0.0, %v3314
        %v3316 = vpop.f32.mrb[0].mxu0
        %3317 = vmatprep.mubr.f32.mxu0 0.0
        %3318 = vmatmul.mubr.f32.gmra.mrb[0].mxu0 %v285
        %v3319 = vpop.f32.mrb[0].mxu0
        %v3320 = vadd.f32 0.0, %v3319
        %v3321 = vpop.f32.mrb[0].mxu0
        %3322 = vdwg.mxu0
        %s3323 = sld [smem:[#allocation3 + $0x1b]]
        %v3324 = vstv %s3323
        %v3325 = vmul.f32 %v3324, %v2825
        %s3326 = sld [smem:[#allocation3 + $0x1c]]
        %v3327 = vstv %s3326
        %v3328 = vmul.f32 %v3327, %v2985
        %v3329 = vadd.f32 %v3325, %v3328
        %s3330 = sld [smem:[#allocation3 + $0x1d]]
        %v3331 = vstv %s3330
        %v3332 = vmul.f32 %v3331, %v3145
        %v3333 = vadd.f32 %v3329, %v3332
        %s3334 = sld [smem:[#allocation3 + $0x1e]]
        %v3335 = vstv %s3334
        %v3336 = vmul.f32 %v3335, %v2830
        %v3337 = vadd.f32 %v3333, %v3336
        %s3338 = sld [smem:[#allocation3 + $0x1f]]
        %v3339 = vstv %s3338
        %v3340 = vmul.f32 %v3339, %v2990
        %v3341 = vadd.f32 %v3337, %v3340
        %s3342 = sld [smem:[#allocation3 + $0x20]]
        %v3343 = vstv %s3342
        %v3344 = vmul.f32 %v3343, %v3150
        %v3345 = vadd.f32 %v3341, %v3344
        %s3346 = sld [smem:[#allocation3 + $0x21]]
        %v3347 = vstv %s3346
        %v3348 = vmul.f32 %v3347, %v2835
        %v3349 = vadd.f32 %v3345, %v3348
        %s3350 = sld [smem:[#allocation3 + $0x22]]
        %v3351 = vstv %s3350
        %v3352 = vmul.f32 %v3351, %v2995
        %v3353 = vadd.f32 %v3349, %v3352
        %s3354 = sld [smem:[#allocation3 + $0x23]]
        %v3355 = vstv %s3354
        %v3356 = vmul.f32 %v3355, %v3155
        %v3357 = vadd.f32 %v3353, %v3356
        %v3358 = vadd.f32 %v1707, %v3357
        %v3359 = vmul.f32 %v3324, %v2985
        %v3360 = vmul.f32 %v3327, %v3145
        %v3361 = vadd.f32 %v3359, %v3360
        %v3362 = vmul.f32 %v3331, %v3305
        %v3363 = vadd.f32 %v3361, %v3362
        %v3364 = vmul.f32 %v3335, %v2990
        %v3365 = vadd.f32 %v3363, %v3364
        %v3366 = vmul.f32 %v3339, %v3150
        %v3367 = vadd.f32 %v3365, %v3366
        %v3368 = vmul.f32 %v3343, %v3310
        %v3369 = vadd.f32 %v3367, %v3368
        %v3370 = vmul.f32 %v3347, %v2995
        %v3371 = vadd.f32 %v3369, %v3370
        %v3372 = vmul.f32 %v3351, %v3155
        %v3373 = vadd.f32 %v3371, %v3372
        %v3374 = vmul.f32 %v3355, %v3315
        %v3375 = vadd.f32 %v3373, %v3374
        %v3376 = vadd.f32 %v1724, %v3375
        %v3377 = vmul.f32 %v3324, %v2830
        %v3378 = vmul.f32 %v3327, %v2990
        %v3379 = vadd.f32 %v3377, %v3378
        %v3380 = vmul.f32 %v3331, %v3150
        %v3381 = vadd.f32 %v3379, %v3380
        %v3382 = vmul.f32 %v3335, %v2835
        %v3383 = vadd.f32 %v3381, %v3382
        %v3384 = vmul.f32 %v3339, %v2995
        %v3385 = vadd.f32 %v3383, %v3384
        %v3386 = vmul.f32 %v3343, %v3155
        %v3387 = vadd.f32 %v3385, %v3386
        %v3388 = vmul.f32 %v3347, %v2840
        %v3389 = vadd.f32 %v3387, %v3388
        %v3390 = vmul.f32 %v3351, %v3000
        %v3391 = vadd.f32 %v3389, %v3390
        %v3392 = vmul.f32 %v3355, %v3160
        %v3393 = vadd.f32 %v3391, %v3392
        %v3394 = vadd.f32 %v1741, %v3393
        %v3395 = vmul.f32 %v3324, %v2990
        %v3396 = vmul.f32 %v3327, %v3150
        %v3397 = vadd.f32 %v3395, %v3396
        %v3398 = vmul.f32 %v3331, %v3310
        %v3399 = vadd.f32 %v3397, %v3398
        %v3400 = vmul.f32 %v3335, %v2995
        %v3401 = vadd.f32 %v3399, %v3400
        %v3402 = vmul.f32 %v3339, %v3155
        %v3403 = vadd.f32 %v3401, %v3402
        %v3404 = vmul.f32 %v3343, %v3315
        %v3405 = vadd.f32 %v3403, %v3404
        %v3406 = vmul.f32 %v3347, %v3000
        %v3407 = vadd.f32 %v3405, %v3406
        %v3408 = vmul.f32 %v3351, %v3160
        %v3409 = vadd.f32 %v3407, %v3408
        %v3410 = vmul.f32 %v3355, %v3320
        %v3411 = vadd.f32 %v3409, %v3410
        %v3412 = vadd.f32 %v1758, %v3411
        %s3413 = sld [smem:[#allocation3 + $0x3f]]
        %v3414 = vstv %s3413
        %v3415 = vmul.f32 %v3414, %v2825
        %s3416 = sld [smem:[#allocation3 + $0x40]]
        %v3417 = vstv %s3416
        %v3418 = vmul.f32 %v3417, %v2985
        %v3419 = vadd.f32 %v3415, %v3418
        %s3420 = sld [smem:[#allocation3 + $0x41]]
        %v3421 = vstv %s3420
        %v3422 = vmul.f32 %v3421, %v3145
        %v3423 = vadd.f32 %v3419, %v3422
        %s3424 = sld [smem:[#allocation3 + $0x42]]
        %v3425 = vstv %s3424
        %v3426 = vmul.f32 %v3425, %v2830
        %v3427 = vadd.f32 %v3423, %v3426
        %s3428 = sld [smem:[#allocation3 + $0x43]]
        %v3429 = vstv %s3428
        %v3430 = vmul.f32 %v3429, %v2990
        %v3431 = vadd.f32 %v3427, %v3430
        %s3432 = sld [smem:[#allocation3 + $0x44]]
        %v3433 = vstv %s3432
        %v3434 = vmul.f32 %v3433, %v3150
        %v3435 = vadd.f32 %v3431, %v3434
        %s3436 = sld [smem:[#allocation3 + $0x45]]
        %v3437 = vstv %s3436
        %v3438 = vmul.f32 %v3437, %v2835
        %v3439 = vadd.f32 %v3435, %v3438
        %s3440 = sld [smem:[#allocation3 + $0x46]]
        %v3441 = vstv %s3440
        %v3442 = vmul.f32 %v3441, %v2995
        %v3443 = vadd.f32 %v3439, %v3442
        %s3444 = sld [smem:[#allocation3 + $0x47]]
        %v3445 = vstv %s3444
        %v3446 = vmul.f32 %v3445, %v3155
        %v3447 = vadd.f32 %v3443, %v3446
        %v3448 = vadd.f32 %v1793, %v3447
        %v3449 = vmul.f32 %v3414, %v2985
        %v3450 = vmul.f32 %v3417, %v3145
        %v3451 = vadd.f32 %v3449, %v3450
        %v3452 = vmul.f32 %v3421, %v3305
        %v3453 = vadd.f32 %v3451, %v3452
        %v3454 = vmul.f32 %v3425, %v2990
        %v3455 = vadd.f32 %v3453, %v3454
        %v3456 = vmul.f32 %v3429, %v3150
        %v3457 = vadd.f32 %v3455, %v3456
        %v3458 = vmul.f32 %v3433, %v3310
        %v3459 = vadd.f32 %v3457, %v3458
        %v3460 = vmul.f32 %v3437, %v2995
        %v3461 = vadd.f32 %v3459, %v3460
        %v3462 = vmul.f32 %v3441, %v3155
        %v3463 = vadd.f32 %v3461, %v3462
        %v3464 = vmul.f32 %v3445, %v3315
        %v3465 = vadd.f32 %v3463, %v3464
        %v3466 = vadd.f32 %v1810, %v3465
        %v3467 = vmul.f32 %v3414, %v2830
        %v3468 = vmul.f32 %v3417, %v2990
        %v3469 = vadd.f32 %v3467, %v3468
        %v3470 = vmul.f32 %v3421, %v3150
        %v3471 = vadd.f32 %v3469, %v3470
        %v3472 = vmul.f32 %v3425, %v2835
        %v3473 = vadd.f32 %v3471, %v3472
        %v3474 = vmul.f32 %v3429, %v2995
        %v3475 = vadd.f32 %v3473, %v3474
        %v3476 = vmul.f32 %v3433, %v3155
        %v3477 = vadd.f32 %v3475, %v3476
        %v3478 = vmul.f32 %v3437, %v2840
        %v3479 = vadd.f32 %v3477, %v3478
        %v3480 = vmul.f32 %v3441, %v3000
        %v3481 = vadd.f32 %v3479, %v3480
        %v3482 = vmul.f32 %v3445, %v3160
        %v3483 = vadd.f32 %v3481, %v3482
        %v3484 = vadd.f32 %v1827, %v3483
        %v3485 = vmul.f32 %v3414, %v2990
        %v3486 = vmul.f32 %v3417, %v3150
        %v3487 = vadd.f32 %v3485, %v3486
        %v3488 = vmul.f32 %v3421, %v3310
        %v3489 = vadd.f32 %v3487, %v3488
        %v3490 = vmul.f32 %v3425, %v2995
        %v3491 = vadd.f32 %v3489, %v3490
        %v3492 = vmul.f32 %v3429, %v3155
        %v3493 = vadd.f32 %v3491, %v3492
        %v3494 = vmul.f32 %v3433, %v3315
        %v3495 = vadd.f32 %v3493, %v3494
        %v3496 = vmul.f32 %v3437, %v3000
        %v3497 = vadd.f32 %v3495, %v3496
        %v3498 = vmul.f32 %v3441, %v3160
        %v3499 = vadd.f32 %v3497, %v3498
        %v3500 = vmul.f32 %v3445, %v3320
        %v3501 = vadd.f32 %v3499, %v3500
        %v3502 = vadd.f32 %v1844, %v3501
        %v3503 = vadd.f32 %v2529, %v3358
        %vm3504 = vcmask 64512
        %3505 = vst.msk [vmem:[%s170] sm:$0xff] %vm3504, %v3503
        %v3506 = vadd.f32 %v2547, %v3376
        %s3507 = scalar_lea.vmem %s170, 8 [#allocation4]
        %3508 = vst.msk [vmem:[%s3507] sm:$0xff] %vm3504, %v3506
        %v3509 = vadd.f32 %v2565, %v3394
        %s3510 = scalar_lea.vmem %s170, 16 [#allocation4]
        %3511 = vst.msk [vmem:[%s3510] sm:$0xff] %vm3504, %v3509
        %v3512 = vadd.f32 %v2583, %v3412
        %s3513 = scalar_lea.vmem %s170, 24 [#allocation4]
        %3514 = vst.msk [vmem:[%s3513] sm:$0xff] %vm3504, %v3512
        %v3515 = vadd.f32 %v2619, %v3448
        %s3516 = scalar_lea.vmem %s170, 32 [#allocation4]
        %3517 = vst.msk [vmem:[%s3516] sm:$0xff] %vm3504, %v3515
        %v3518 = vadd.f32 %v2637, %v3466
        %s3519 = scalar_lea.vmem %s170, 40 [#allocation4]
        %3520 = vst.msk [vmem:[%s3519] sm:$0xff] %vm3504, %v3518
        %v3521 = vadd.f32 %v2655, %v3484
        %s3522 = scalar_lea.vmem %s170, 48 [#allocation4]
        %3523 = vst.msk [vmem:[%s3522] sm:$0xff] %vm3504, %v3521
        %v3524 = vadd.f32 %v2673, %v3502
        %s3525 = scalar_lea.vmem %s170, 56 [#allocation4]
        %3526 = vst.msk [vmem:[%s3525] sm:$0xff] %vm3504, %v3524
        %s3527 = sand.u32 %s100, 1
        %s3528 = scalar_lea.sflag [#allocation5], %s3527
        %s3529 = sand.u32 %s100, 1
        %s3530 = smul.addr %s3529, 64
        %s3531 = scalar_lea.vmem [#allocation4], %s3530
        // Predicated region
        $region33: #{tpu_custom_call.1} parent=31 // pred_check
          %p3532 = pneg %p110
        $region34: #{tpu_custom_call.1} parent=31 // pred_check_branch
          %3534 = sbr.rel (%p3532) target = $region36
        $region35: #{tpu_custom_call.1} parent=31 // pred_region
          %s3536 = ssub.s32 1024, 1024
          %3537 = vsyncadd %s3528, %s3536
          %s3538 = smul.addr %s24, 8
          %s3539 = smul.addr %s3538, 128
          %s3540 = scalar_lea.hbm %s4, %s3539
          %s3541 = sshll.u32 %s3531, 4
          %s3542 = int_to_ptr.vmem [resolvable:$true] %s3541
          %3547 = dma.vmem_to_hbm [thread:$0]  %s3542, 1024, %s3540, %s3528, 128, 128, 8
        $region36: #{tpu_custom_call.1} parent=31 // pred_fallthru
          _
      $region32: #{tpu_custom_call.1} parent=5 // pred_fallthru
        _
      %p3548 = scmp.le.s32.totalorder 2, %s19
      // Predicated region
      $region37: #{tpu_custom_call.1} parent=5 // pred_check
        %p3549 = pneg %p3548
      $region38: #{tpu_custom_call.1} parent=5 // pred_check_branch
        %3551 = sbr.rel (%p3549) target = $region40
      $region39: #{tpu_custom_call.1} parent=5 // pred_region
        %s3552 = ssub.s32 %s19, 2
        // Predicated region
        $region41: #{tpu_custom_call.1} parent=39 // pred_check
          %p3553 = pneg %p116
        $region42: #{tpu_custom_call.1} parent=39 // pred_check_branch
          %3555 = sbr.rel (%p3553) target = $region44
        $region43: #{tpu_custom_call.1} parent=39 // pred_region
          %s3556 = sand.u32 %s101, 1
          %s3557 = scalar_lea.sflag [#allocation5], %s3556
          %s3558 = sand.u32 %s101, 1
          %s3559 = smul.addr %s3558, 64
          %s3560 = scalar_lea.vmem [#allocation4], %s3559
          %3561 = dma.done %s3557, 1024
        $region44: #{tpu_custom_call.1} parent=39 // pred_fallthru
          _
      $region40: #{tpu_custom_call.1} parent=5 // pred_fallthru
        _
    $region6: #{tpu_custom_call.1} parent=1 // loop_footer
      %s23 = sadd.s32 1, %s19
    $region7: #{tpu_custom_call.1} parent=1 // loop_footer_branch
      %18 = sbr.rel target = $region3
    $region8: #{tpu_custom_call.1} parent=1 // loop_exit
      _
    %3562 = vsyncpa [#allocation5], 1
    %s3563 = scalar_lea.sflag [#allocation5], 1
    %3564 = vsyncpa %s3563, 1

</llo_original>
